<compile_context>
chip_gen: v7x
topology: tpu7x:2x2x1
jax: 0.10.0
libtpu: 0.0.40
codegen_flags: <defaults>
</compile_context>

<pallas_src>
import math

import jax
import jax.numpy as jnp
from jax import lax
from jax.experimental import pallas as pl
from jax.experimental.pallas import tpu as pltpu


def convnextv2_block_kernel(x_ref, wdw_ref, bdw_ref, lnw_ref, lnb_ref,
                            w1_ref, b1_ref, w2_ref, b2_ref, gamma_ref,
                            o_ref, xp_ref):
    # x_ref   : (1, H, W, C)      full (unpadded) NHWC image, DMA'd once per n
    # wdw_ref : (7, 7, C)         depthwise conv weights (HWC), f32
    # w1_ref  : (C, 4C) bf16      pwconv1 weights
    # w2_ref  : (4C, C) bf16      pwconv2 weights
    # o_ref   : (1, TH, W, C)     output row-stripe
    # xp_ref  : (H+6, W+6, C) f32 VMEM scratch holding the zero-padded image
    _, TH, W, C = o_ref.shape
    Himg = x_ref.shape[1]
    h_idx = pl.program_id(1)
    r0 = h_idx * TH

    # ---- once per image (h == 0, first grid step of the inner axis):
    #      build the zero-padded image in VMEM (pad=3 each side of H and W).
    @pl.when(h_idx == 0)
    def _():
        xp_ref[...] = jnp.zeros_like(xp_ref)
        xp_ref[3:3 + Himg, 3:3 + W, :] = x_ref[0].astype(jnp.float32)

    # ---- 7x7 depthwise conv on a (TH + 6)-row window of the padded image.
    # Hoist the 7 kw (sublane-shifted) slabs out of the kh loop; the kh
    # slices are cheap major-axis slices.
    xs = xp_ref[pl.ds(r0, TH + 6), :, :]            # (TH+6, W+6, C) f32
    wdw = wdw_ref[...].astype(jnp.float32)          # (7, 7, C)
    acc = jnp.zeros((TH, W, C), jnp.float32)
    for kw in range(7):
        slab = xs[:, kw:kw + W, :]                  # (TH+6, W, C)
        for kh in range(7):
            acc = acc + slab[kh:kh + TH] * wdw[kh, kw][None, None, :]
    acc = acc + bdw_ref[0][None, None, :]

    # ---- LayerNorm over C, per pixel (eps=1e-5, affine) — one fused pass.
    inv_c = 1.0 / C
    s = jnp.sum(acc, axis=-1, keepdims=True)
    s2 = jnp.sum(acc * acc, axis=-1, keepdims=True)
    mean = s * inv_c
    var = s2 * inv_c - mean * mean
    xn = (acc - mean) * lax.rsqrt(var + 1e-5)
    xn = xn * lnw_ref[0][None, None, :] + lnb_ref[0][None, None, :]

    # ---- pointwise convs as bf16 MXU matmuls with f32 accumulation.
    m = TH * W
    h0 = xn.reshape(m, C).astype(jnp.bfloat16)
    h1 = jnp.dot(h0, w1_ref[...],
                 preferred_element_type=jnp.float32) + b1_ref[0][None, :]
    # exact GELU to match nn.GELU(approximate='none'); a tanh approximation
    # would move this onto the EUP slot if the accuracy budget ever allows.
    h1 = 0.5 * h1 * (1.0 + lax.erf(h1 * (1.0 / math.sqrt(2.0))))
    h2 = jnp.dot(h1.astype(jnp.bfloat16), w2_ref[...],
                 preferred_element_type=jnp.float32) + b2_ref[0][None, :]
    h2 = h2 * gamma_ref[0][None, :]

    # ---- residual from the resident input block (no extra HBM stream).
    res = x_ref[0, pl.ds(r0, TH), :, :].astype(jnp.float32)
    o_ref[0] = (res + h2.reshape(TH, W, C)).astype(o_ref.dtype)


def _pick_tile_h(H, W, C):
    """Largest divisor of H whose (tile_h*W, 4C) f32 GELU slab fits a budget."""
    budget = 2 * 1024 * 1024
    divs = [d for d in range(1, H + 1) if H % d == 0]
    ok = [d for d in divs if d * W * 4 * C * 4 <= budget] or [1]
    aligned = [d for d in ok if (d * W) % 8 == 0]
    return max(aligned) if aligned else max(ok)


def _vmem_limit_bytes():
    try:
        cap = getattr(pltpu.get_tpu_info(), "vmem_capacity_bytes",
                      64 * 1024 * 1024)
    except Exception:
        cap = 64 * 1024 * 1024
    # leave headroom: ~48 MiB on v7x (64 MiB phys), ~96 MiB on v5e/v6e.
    return min(96 * 1024 * 1024, int(cap) * 3 // 4)


def convnextv2_block(x_nchw, params, tile_h=None):
    """x_nchw: (N, C, H, W) float32 -> (N, C, H, W) float32."""
    wdw, bdw, lnw, lnb, w1, b1, w2, b2, gamma = params
    N, C, H, W = x_nchw.shape
    C4 = 4 * C
    if tile_h is None:
        tile_h = _pick_tile_h(H, W, C)
    assert H % tile_h == 0, (H, tile_h)
    nh = H // tile_h

    x = jnp.transpose(x_nchw, (0, 2, 3, 1))          # NHWC; no HBM pad copy
    w1b = w1.astype(jnp.bfloat16)                    # MXU-native weights
    w2b = w2.astype(jnp.bfloat16)

    out_nhwc = pl.pallas_call(
        convnextv2_block_kernel,
        out_shape=jax.ShapeDtypeStruct((N, H, W, C), x.dtype),
        grid_spec=pltpu.PrefetchScalarGridSpec(
            num_scalar_prefetch=0,
            grid=(N, nh),
            in_specs=[
                # full image, block index constant along h -> DMA'd once per n
                pl.BlockSpec((1, H, W, C), lambda n, h: (n, 0, 0, 0)),
                pl.BlockSpec((7, 7, C), lambda n, h: (0, 0, 0)),
                pl.BlockSpec((1, C), lambda n, h: (0, 0)),
                pl.BlockSpec((1, C), lambda n, h: (0, 0)),
                pl.BlockSpec((1, C), lambda n, h: (0, 0)),
                pl.BlockSpec((C, C4), lambda n, h: (0, 0)),
                pl.BlockSpec((1, C4), lambda n, h: (0, 0)),
                pl.BlockSpec((C4, C), lambda n, h: (0, 0)),
                pl.BlockSpec((1, C), lambda n, h: (0, 0)),
                pl.BlockSpec((1, C), lambda n, h: (0, 0)),
            ],
            out_specs=pl.BlockSpec((1, tile_h, W, C),
                                   lambda n, h: (n, h, 0, 0)),
            scratch_shapes=[pltpu.VMEM((H + 6, W + 6, C), jnp.float32)],
        ),
        compiler_params=pltpu.CompilerParams(
            # h axis carries the padded-image scratch -> must stay sequential.
            dimension_semantics=("parallel", "arbitrary"),
            vmem_limit_bytes=_vmem_limit_bytes()),
    )(x, wdw, bdw, lnw, lnb, w1b, b1, w2b, b2, gamma)

    return jnp.transpose(out_nhwc, (0, 3, 1, 2))      # back to NCHW


def reference_block(x, params):
    """Plain-JAX f32 reference (NCHW), mirroring the PyTorch forward."""
    wdw, bdw, lnw, lnb, w1, b1, w2, b2, gamma = params
    N, C, H, W = x.shape
    residual = x
    wdw_oihw = jnp.transpose(wdw, (2, 0, 1))[:, None, :, :]
    y = lax.conv_general_dilated(
        x, wdw_oihw, window_strides=(1, 1), padding=((3, 3), (3, 3)),
        feature_group_count=C,
        dimension_numbers=("NCHW", "OIHW", "NCHW"),
        precision=lax.Precision.HIGHEST)
    y = y + bdw[0][None, :, None, None]
    mean = y.mean(axis=1, keepdims=True)
    var = ((y - mean) ** 2).mean(axis=1, keepdims=True)
    yn = (y - mean) / jnp.sqrt(var + 1e-5)
    yn = yn * lnw[0][None, :, None, None] + lnb[0][None, :, None, None]
    h1 = jnp.einsum("nchw,cd->ndhw", yn, w1,
                    precision=lax.Precision.HIGHEST) + b1[0][None, :, None, None]
    h1 = jax.nn.gelu(h1, approximate=False)
    h2 = jnp.einsum("ndhw,dc->nchw", h1, w2,
                    precision=lax.Precision.HIGHEST) + b2[0][None, :, None, None]
    h2 = h2 * gamma[0][None, :, None, None]
    return residual + h2


def make_params(key, dim):
    # Deterministic synthetic parameters (ConvNeXtV2Block(dim) shapes).
    # NOTE: PyTorch inits gamma to zeros; small random values are used so the
    # full compute path is exercised by the numeric check.
    ks = jax.random.split(key, 9)
    C, C4 = dim, 4 * dim
    wdw = 0.1 * jax.random.normal(ks[0], (7, 7, C), jnp.float32)     # dwconv (HWC)
    bdw = 0.1 * jax.random.normal(ks[1], (1, C), jnp.float32)
    lnw = 1.0 + 0.1 * jax.random.normal(ks[2], (1, C), jnp.float32)  # LN weight
    lnb = 0.1 * jax.random.normal(ks[3], (1, C), jnp.float32)        # LN bias
    w1 = 0.1 * jax.random.normal(ks[4], (C, C4), jnp.float32)        # pwconv1
    b1 = 0.1 * jax.random.normal(ks[5], (1, C4), jnp.float32)
    w2 = 0.1 * jax.random.normal(ks[6], (C4, C), jnp.float32)        # pwconv2
    b2 = 0.1 * jax.random.normal(ks[7], (1, C), jnp.float32)
    gamma = 0.1 * jax.random.normal(ks[8], (1, C), jnp.float32)
    return (wdw, bdw, lnw, lnb, w1, b1, w2, b2, gamma)


if __name__ == "__main__":
    key = jax.random.PRNGKey(0)
    k_x, k_p = jax.random.split(key)

    N, C, H, W = 2, 4, 16, 16          # small NCHW input, dim=4
    x = jax.random.normal(k_x, (N, C, H, W), jnp.float32)
    params = make_params(k_p, C)

    ref = jax.block_until_ready(reference_block(x, params))

    # Multi-stripe path (exercises both top and bottom zero-halo handling).
    out_tiled = jax.block_until_ready(convnextv2_block(x, params, tile_h=8))
    # Auto-picked tiling path.
    out_auto = jax.block_until_ready(convnextv2_block(x, params))

    assert out_tiled.shape == (N, C, H, W)
    # bf16 MXU matmuls -> slightly looser tolerance than an all-f32 kernel.
    assert jnp.allclose(out_tiled, ref, rtol=2e-2, atol=2e-2), (
        float(jnp.max(jnp.abs(out_tiled - ref))))
    assert jnp.allclose(out_auto, ref, rtol=2e-2, atol=2e-2), (
        float(jnp.max(jnp.abs(out_auto - ref))))

    print("KERNEL_OK")
</pallas_src>

<mosaic_0001>
module attributes {stable_mosaic.version = 11 : i64} {
  func.func @convnextv2_block_kernel(%arg0: i32, %arg1: i32, %arg2: memref<1x16x16x4xf32, #tpu.memory_space<vmem>>, %arg3: memref<7x7x4xf32, #tpu.memory_space<vmem>>, %arg4: memref<1x4xf32, #tpu.memory_space<vmem>>, %arg5: memref<1x4xf32, #tpu.memory_space<vmem>>, %arg6: memref<1x4xf32, #tpu.memory_space<vmem>>, %arg7: memref<4x16xbf16, #tpu.memory_space<vmem>>, %arg8: memref<1x16xf32, #tpu.memory_space<vmem>>, %arg9: memref<16x4xbf16, #tpu.memory_space<vmem>>, %arg10: memref<1x4xf32, #tpu.memory_space<vmem>>, %arg11: memref<1x4xf32, #tpu.memory_space<vmem>>, %arg12: memref<1x8x16x4xf32, #tpu.memory_space<vmem>>, %arg13: memref<22x22x4xf32, #tpu.memory_space<vmem>>) attributes {dimension_semantics = [#tpu.dimension_semantics<parallel>, #tpu.dimension_semantics<arbitrary>], iteration_bounds = array<i64: 2, 2>, scalar_prefetch = 0 : i64, scratch_operands = 1 : i64, tpu.core_type = #tpu.core_type<tc>, window_params = [{transform_indices = @transform_0, window_bounds = array<i64: 1, 16, 16, 4>}, {pipeline_mode = #tpu.pipeline_mode<synchronous>, transform_indices = @transform_1, window_bounds = array<i64: 7, 7, 4>}, {pipeline_mode = #tpu.pipeline_mode<synchronous>, transform_indices = @transform_2, window_bounds = array<i64: 1, 4>}, {pipeline_mode = #tpu.pipeline_mode<synchronous>, transform_indices = @transform_3, window_bounds = array<i64: 1, 4>}, {pipeline_mode = #tpu.pipeline_mode<synchronous>, transform_indices = @transform_4, window_bounds = array<i64: 1, 4>}, {pipeline_mode = #tpu.pipeline_mode<synchronous>, transform_indices = @transform_5, window_bounds = array<i64: 4, 16>}, {pipeline_mode = #tpu.pipeline_mode<synchronous>, transform_indices = @transform_6, window_bounds = array<i64: 1, 16>}, {pipeline_mode = #tpu.pipeline_mode<synchronous>, transform_indices = @transform_7, window_bounds = array<i64: 16, 4>}, {pipeline_mode = #tpu.pipeline_mode<synchronous>, transform_indices = @transform_8, window_bounds = array<i64: 1, 4>}, {pipeline_mode = #tpu.pipeline_mode<synchronous>, transform_indices = @transform_9, window_bounds = array<i64: 1, 4>}, {transform_indices = @transform_10, window_bounds = array<i64: 1, 8, 16, 4>}]} {
    %c8_i32 = arith.constant 8 : i32
    %0 = arith.muli %arg1, %c8_i32 : i32
    %c0_i32 = arith.constant 0 : i32
    %1 = arith.cmpi eq, %arg1, %c0_i32 : i32
    %2 = arith.extui %1 : i1 to i32
    %c0_i32_0 = arith.constant 0 : i32
    %3 = arith.cmpi ne, %2, %c0_i32_0 : i32
    scf.if %3 {
      %cst_38 = arith.constant 0.000000e+00 : f32
      %429 = vector.broadcast %cst_38 : f32 to vector<22x22x4xf32>
      %c0_39 = arith.constant 0 : index
      %c0_40 = arith.constant 0 : index
      %c0_41 = arith.constant 0 : index
      %430 = vector.load %arg13[%c0_39, %c0_40, %c0_41] : memref<22x22x4xf32, #tpu.memory_space<vmem>>, vector<22x22x4xf32>
      tpu.vector_store %arg13[%c0_39, %c0_40, %c0_41], %429 {strides = array<i32>} : memref<22x22x4xf32, #tpu.memory_space<vmem>>, vector<22x22x4xf32>,
      %c0_42 = arith.constant 0 : index
      %c0_43 = arith.constant 0 : index
      %c0_44 = arith.constant 0 : index
      %c0_45 = arith.constant 0 : index
      %431 = vector.load %arg2[%c0_42, %c0_43, %c0_44, %c0_45] : memref<1x16x16x4xf32, #tpu.memory_space<vmem>>, vector<1x16x16x4xf32>
      %432 = vector.shape_cast %431 : vector<1x16x16x4xf32> to vector<16x16x4xf32>
      %c3 = arith.constant 3 : index
      %c3_46 = arith.constant 3 : index
      %c0_47 = arith.constant 0 : index
      %433 = vector.load %arg13[%c3, %c3_46, %c0_47] : memref<22x22x4xf32, #tpu.memory_space<vmem>>, vector<16x16x4xf32>
      tpu.vector_store %arg13[%c3, %c3_46, %c0_47], %432 {strides = array<i32>} : memref<22x22x4xf32, #tpu.memory_space<vmem>>, vector<16x16x4xf32>,
    } else {
    }
    %4 = arith.index_cast %0 : i32 to index
    %c0 = arith.constant 0 : index
    %c0_1 = arith.constant 0 : index
    %5 = vector.load %arg13[%4, %c0, %c0_1] : memref<22x22x4xf32, #tpu.memory_space<vmem>>, vector<14x22x4xf32>
    %c0_2 = arith.constant 0 : index
    %c0_3 = arith.constant 0 : index
    %c0_4 = arith.constant 0 : index
    %6 = vector.load %arg3[%c0_2, %c0_3, %c0_4] : memref<7x7x4xf32, #tpu.memory_space<vmem>>, vector<7x7x4xf32>
    %cst = arith.constant 0.000000e+00 : f32
    %7 = vector.broadcast %cst : f32 to vector<8x16x4xf32>
    %8 = vector.extract_strided_slice %5 {offsets = [0, 0, 0], sizes = [14, 16, 4], strides = [1, 1, 1]} : vector<14x22x4xf32> to vector<14x16x4xf32>
    %9 = vector.extract_strided_slice %8 {offsets = [0, 0, 0], sizes = [8, 16, 4], strides = [1, 1, 1]} : vector<14x16x4xf32> to vector<8x16x4xf32>
    %10 = vector.extract_strided_slice %6 {offsets = [0, 0, 0], sizes = [1, 1, 4], strides = [1, 1, 1]} : vector<7x7x4xf32> to vector<1x1x4xf32>
    %11 = vector.shape_cast %10 : vector<1x1x4xf32> to vector<4xf32>
    %12 = vector.shape_cast %11 : vector<4xf32> to vector<1x1x4xf32>
    %13 = vector.broadcast %12 : vector<1x1x4xf32> to vector<8x16x4xf32>
    %14 = arith.mulf %9, %13 : vector<8x16x4xf32>
    %15 = arith.addf %7, %14 : vector<8x16x4xf32>
    %16 = vector.extract_strided_slice %8 {offsets = [1, 0, 0], sizes = [8, 16, 4], strides = [1, 1, 1]} : vector<14x16x4xf32> to vector<8x16x4xf32>
    %17 = vector.extract_strided_slice %6 {offsets = [1, 0, 0], sizes = [1, 1, 4], strides = [1, 1, 1]} : vector<7x7x4xf32> to vector<1x1x4xf32>
    %18 = vector.shape_cast %17 : vector<1x1x4xf32> to vector<4xf32>
    %19 = vector.shape_cast %18 : vector<4xf32> to vector<1x1x4xf32>
    %20 = vector.broadcast %19 : vector<1x1x4xf32> to vector<8x16x4xf32>
    %21 = arith.mulf %16, %20 : vector<8x16x4xf32>
    %22 = arith.addf %15, %21 : vector<8x16x4xf32>
    %23 = vector.extract_strided_slice %8 {offsets = [2, 0, 0], sizes = [8, 16, 4], strides = [1, 1, 1]} : vector<14x16x4xf32> to vector<8x16x4xf32>
    %24 = vector.extract_strided_slice %6 {offsets = [2, 0, 0], sizes = [1, 1, 4], strides = [1, 1, 1]} : vector<7x7x4xf32> to vector<1x1x4xf32>
    %25 = vector.shape_cast %24 : vector<1x1x4xf32> to vector<4xf32>
    %26 = vector.shape_cast %25 : vector<4xf32> to vector<1x1x4xf32>
    %27 = vector.broadcast %26 : vector<1x1x4xf32> to vector<8x16x4xf32>
    %28 = arith.mulf %23, %27 : vector<8x16x4xf32>
    %29 = arith.addf %22, %28 : vector<8x16x4xf32>
    %30 = vector.extract_strided_slice %8 {offsets = [3, 0, 0], sizes = [8, 16, 4], strides = [1, 1, 1]} : vector<14x16x4xf32> to vector<8x16x4xf32>
    %31 = vector.extract_strided_slice %6 {offsets = [3, 0, 0], sizes = [1, 1, 4], strides = [1, 1, 1]} : vector<7x7x4xf32> to vector<1x1x4xf32>
    %32 = vector.shape_cast %31 : vector<1x1x4xf32> to vector<4xf32>
    %33 = vector.shape_cast %32 : vector<4xf32> to vector<1x1x4xf32>
    %34 = vector.broadcast %33 : vector<1x1x4xf32> to vector<8x16x4xf32>
    %35 = arith.mulf %30, %34 : vector<8x16x4xf32>
    %36 = arith.addf %29, %35 : vector<8x16x4xf32>
    %37 = vector.extract_strided_slice %8 {offsets = [4, 0, 0], sizes = [8, 16, 4], strides = [1, 1, 1]} : vector<14x16x4xf32> to vector<8x16x4xf32>
    %38 = vector.extract_strided_slice %6 {offsets = [4, 0, 0], sizes = [1, 1, 4], strides = [1, 1, 1]} : vector<7x7x4xf32> to vector<1x1x4xf32>
    %39 = vector.shape_cast %38 : vector<1x1x4xf32> to vector<4xf32>
    %40 = vector.shape_cast %39 : vector<4xf32> to vector<1x1x4xf32>
    %41 = vector.broadcast %40 : vector<1x1x4xf32> to vector<8x16x4xf32>
    %42 = arith.mulf %37, %41 : vector<8x16x4xf32>
    %43 = arith.addf %36, %42 : vector<8x16x4xf32>
    %44 = vector.extract_strided_slice %8 {offsets = [5, 0, 0], sizes = [8, 16, 4], strides = [1, 1, 1]} : vector<14x16x4xf32> to vector<8x16x4xf32>
    %45 = vector.extract_strided_slice %6 {offsets = [5, 0, 0], sizes = [1, 1, 4], strides = [1, 1, 1]} : vector<7x7x4xf32> to vector<1x1x4xf32>
    %46 = vector.shape_cast %45 : vector<1x1x4xf32> to vector<4xf32>
    %47 = vector.shape_cast %46 : vector<4xf32> to vector<1x1x4xf32>
    %48 = vector.broadcast %47 : vector<1x1x4xf32> to vector<8x16x4xf32>
    %49 = arith.mulf %44, %48 : vector<8x16x4xf32>
    %50 = arith.addf %43, %49 : vector<8x16x4xf32>
    %51 = vector.extract_strided_slice %8 {offsets = [6, 0, 0], sizes = [8, 16, 4], strides = [1, 1, 1]} : vector<14x16x4xf32> to vector<8x16x4xf32>
    %52 = vector.extract_strided_slice %6 {offsets = [6, 0, 0], sizes = [1, 1, 4], strides = [1, 1, 1]} : vector<7x7x4xf32> to vector<1x1x4xf32>
    %53 = vector.shape_cast %52 : vector<1x1x4xf32> to vector<4xf32>
    %54 = vector.shape_cast %53 : vector<4xf32> to vector<1x1x4xf32>
    %55 = vector.broadcast %54 : vector<1x1x4xf32> to vector<8x16x4xf32>
    %56 = arith.mulf %51, %55 : vector<8x16x4xf32>
    %57 = arith.addf %50, %56 : vector<8x16x4xf32>
    %58 = vector.extract_strided_slice %5 {offsets = [0, 1, 0], sizes = [14, 16, 4], strides = [1, 1, 1]} : vector<14x22x4xf32> to vector<14x16x4xf32>
    %59 = vector.extract_strided_slice %58 {offsets = [0, 0, 0], sizes = [8, 16, 4], strides = [1, 1, 1]} : vector<14x16x4xf32> to vector<8x16x4xf32>
    %60 = vector.extract_strided_slice %6 {offsets = [0, 1, 0], sizes = [1, 1, 4], strides = [1, 1, 1]} : vector<7x7x4xf32> to vector<1x1x4xf32>
    %61 = vector.shape_cast %60 : vector<1x1x4xf32> to vector<4xf32>
    %62 = vector.shape_cast %61 : vector<4xf32> to vector<1x1x4xf32>
    %63 = vector.broadcast %62 : vector<1x1x4xf32> to vector<8x16x4xf32>
    %64 = arith.mulf %59, %63 : vector<8x16x4xf32>
    %65 = arith.addf %57, %64 : vector<8x16x4xf32>
    %66 = vector.extract_strided_slice %58 {offsets = [1, 0, 0], sizes = [8, 16, 4], strides = [1, 1, 1]} : vector<14x16x4xf32> to vector<8x16x4xf32>
    %67 = vector.extract_strided_slice %6 {offsets = [1, 1, 0], sizes = [1, 1, 4], strides = [1, 1, 1]} : vector<7x7x4xf32> to vector<1x1x4xf32>
    %68 = vector.shape_cast %67 : vector<1x1x4xf32> to vector<4xf32>
    %69 = vector.shape_cast %68 : vector<4xf32> to vector<1x1x4xf32>
    %70 = vector.broadcast %69 : vector<1x1x4xf32> to vector<8x16x4xf32>
    %71 = arith.mulf %66, %70 : vector<8x16x4xf32>
    %72 = arith.addf %65, %71 : vector<8x16x4xf32>
    %73 = vector.extract_strided_slice %58 {offsets = [2, 0, 0], sizes = [8, 16, 4], strides = [1, 1, 1]} : vector<14x16x4xf32> to vector<8x16x4xf32>
    %74 = vector.extract_strided_slice %6 {offsets = [2, 1, 0], sizes = [1, 1, 4], strides = [1, 1, 1]} : vector<7x7x4xf32> to vector<1x1x4xf32>
    %75 = vector.shape_cast %74 : vector<1x1x4xf32> to vector<4xf32>
    %76 = vector.shape_cast %75 : vector<4xf32> to vector<1x1x4xf32>
    %77 = vector.broadcast %76 : vector<1x1x4xf32> to vector<8x16x4xf32>
    %78 = arith.mulf %73, %77 : vector<8x16x4xf32>
    %79 = arith.addf %72, %78 : vector<8x16x4xf32>
    %80 = vector.extract_strided_slice %58 {offsets = [3, 0, 0], sizes = [8, 16, 4], strides = [1, 1, 1]} : vector<14x16x4xf32> to vector<8x16x4xf32>
    %81 = vector.extract_strided_slice %6 {offsets = [3, 1, 0], sizes = [1, 1, 4], strides = [1, 1, 1]} : vector<7x7x4xf32> to vector<1x1x4xf32>
    %82 = vector.shape_cast %81 : vector<1x1x4xf32> to vector<4xf32>
    %83 = vector.shape_cast %82 : vector<4xf32> to vector<1x1x4xf32>
    %84 = vector.broadcast %83 : vector<1x1x4xf32> to vector<8x16x4xf32>
    %85 = arith.mulf %80, %84 : vector<8x16x4xf32>
    %86 = arith.addf %79, %85 : vector<8x16x4xf32>
    %87 = vector.extract_strided_slice %58 {offsets = [4, 0, 0], sizes = [8, 16, 4], strides = [1, 1, 1]} : vector<14x16x4xf32> to vector<8x16x4xf32>
    %88 = vector.extract_strided_slice %6 {offsets = [4, 1, 0], sizes = [1, 1, 4], strides = [1, 1, 1]} : vector<7x7x4xf32> to vector<1x1x4xf32>
    %89 = vector.shape_cast %88 : vector<1x1x4xf32> to vector<4xf32>
    %90 = vector.shape_cast %89 : vector<4xf32> to vector<1x1x4xf32>
    %91 = vector.broadcast %90 : vector<1x1x4xf32> to vector<8x16x4xf32>
    %92 = arith.mulf %87, %91 : vector<8x16x4xf32>
    %93 = arith.addf %86, %92 : vector<8x16x4xf32>
    %94 = vector.extract_strided_slice %58 {offsets = [5, 0, 0], sizes = [8, 16, 4], strides = [1, 1, 1]} : vector<14x16x4xf32> to vector<8x16x4xf32>
    %95 = vector.extract_strided_slice %6 {offsets = [5, 1, 0], sizes = [1, 1, 4], strides = [1, 1, 1]} : vector<7x7x4xf32> to vector<1x1x4xf32>
    %96 = vector.shape_cast %95 : vector<1x1x4xf32> to vector<4xf32>
    %97 = vector.shape_cast %96 : vector<4xf32> to vector<1x1x4xf32>
    %98 = vector.broadcast %97 : vector<1x1x4xf32> to vector<8x16x4xf32>
    %99 = arith.mulf %94, %98 : vector<8x16x4xf32>
    %100 = arith.addf %93, %99 : vector<8x16x4xf32>
    %101 = vector.extract_strided_slice %58 {offsets = [6, 0, 0], sizes = [8, 16, 4], strides = [1, 1, 1]} : vector<14x16x4xf32> to vector<8x16x4xf32>
    %102 = vector.extract_strided_slice %6 {offsets = [6, 1, 0], sizes = [1, 1, 4], strides = [1, 1, 1]} : vector<7x7x4xf32> to vector<1x1x4xf32>
    %103 = vector.shape_cast %102 : vector<1x1x4xf32> to vector<4xf32>
    %104 = vector.shape_cast %103 : vector<4xf32> to vector<1x1x4xf32>
    %105 = vector.broadcast %104 : vector<1x1x4xf32> to vector<8x16x4xf32>
    %106 = arith.mulf %101, %105 : vector<8x16x4xf32>
    %107 = arith.addf %100, %106 : vector<8x16x4xf32>
    %108 = vector.extract_strided_slice %5 {offsets = [0, 2, 0], sizes = [14, 16, 4], strides = [1, 1, 1]} : vector<14x22x4xf32> to vector<14x16x4xf32>
    %109 = vector.extract_strided_slice %108 {offsets = [0, 0, 0], sizes = [8, 16, 4], strides = [1, 1, 1]} : vector<14x16x4xf32> to vector<8x16x4xf32>
    %110 = vector.extract_strided_slice %6 {offsets = [0, 2, 0], sizes = [1, 1, 4], strides = [1, 1, 1]} : vector<7x7x4xf32> to vector<1x1x4xf32>
    %111 = vector.shape_cast %110 : vector<1x1x4xf32> to vector<4xf32>
    %112 = vector.shape_cast %111 : vector<4xf32> to vector<1x1x4xf32>
    %113 = vector.broadcast %112 : vector<1x1x4xf32> to vector<8x16x4xf32>
    %114 = arith.mulf %109, %113 : vector<8x16x4xf32>
    %115 = arith.addf %107, %114 : vector<8x16x4xf32>
    %116 = vector.extract_strided_slice %108 {offsets = [1, 0, 0], sizes = [8, 16, 4], strides = [1, 1, 1]} : vector<14x16x4xf32> to vector<8x16x4xf32>
    %117 = vector.extract_strided_slice %6 {offsets = [1, 2, 0], sizes = [1, 1, 4], strides = [1, 1, 1]} : vector<7x7x4xf32> to vector<1x1x4xf32>
    %118 = vector.shape_cast %117 : vector<1x1x4xf32> to vector<4xf32>
    %119 = vector.shape_cast %118 : vector<4xf32> to vector<1x1x4xf32>
    %120 = vector.broadcast %119 : vector<1x1x4xf32> to vector<8x16x4xf32>
    %121 = arith.mulf %116, %120 : vector<8x16x4xf32>
    %122 = arith.addf %115, %121 : vector<8x16x4xf32>
    %123 = vector.extract_strided_slice %108 {offsets = [2, 0, 0], sizes = [8, 16, 4], strides = [1, 1, 1]} : vector<14x16x4xf32> to vector<8x16x4xf32>
    %124 = vector.extract_strided_slice %6 {offsets = [2, 2, 0], sizes = [1, 1, 4], strides = [1, 1, 1]} : vector<7x7x4xf32> to vector<1x1x4xf32>
    %125 = vector.shape_cast %124 : vector<1x1x4xf32> to vector<4xf32>
    %126 = vector.shape_cast %125 : vector<4xf32> to vector<1x1x4xf32>
    %127 = vector.broadcast %126 : vector<1x1x4xf32> to vector<8x16x4xf32>
    %128 = arith.mulf %123, %127 : vector<8x16x4xf32>
    %129 = arith.addf %122, %128 : vector<8x16x4xf32>
    %130 = vector.extract_strided_slice %108 {offsets = [3, 0, 0], sizes = [8, 16, 4], strides = [1, 1, 1]} : vector<14x16x4xf32> to vector<8x16x4xf32>
    %131 = vector.extract_strided_slice %6 {offsets = [3, 2, 0], sizes = [1, 1, 4], strides = [1, 1, 1]} : vector<7x7x4xf32> to vector<1x1x4xf32>
    %132 = vector.shape_cast %131 : vector<1x1x4xf32> to vector<4xf32>
    %133 = vector.shape_cast %132 : vector<4xf32> to vector<1x1x4xf32>
    %134 = vector.broadcast %133 : vector<1x1x4xf32> to vector<8x16x4xf32>
    %135 = arith.mulf %130, %134 : vector<8x16x4xf32>
    %136 = arith.addf %129, %135 : vector<8x16x4xf32>
    %137 = vector.extract_strided_slice %108 {offsets = [4, 0, 0], sizes = [8, 16, 4], strides = [1, 1, 1]} : vector<14x16x4xf32> to vector<8x16x4xf32>
    %138 = vector.extract_strided_slice %6 {offsets = [4, 2, 0], sizes = [1, 1, 4], strides = [1, 1, 1]} : vector<7x7x4xf32> to vector<1x1x4xf32>
    %139 = vector.shape_cast %138 : vector<1x1x4xf32> to vector<4xf32>
    %140 = vector.shape_cast %139 : vector<4xf32> to vector<1x1x4xf32>
    %141 = vector.broadcast %140 : vector<1x1x4xf32> to vector<8x16x4xf32>
    %142 = arith.mulf %137, %141 : vector<8x16x4xf32>
    %143 = arith.addf %136, %142 : vector<8x16x4xf32>
    %144 = vector.extract_strided_slice %108 {offsets = [5, 0, 0], sizes = [8, 16, 4], strides = [1, 1, 1]} : vector<14x16x4xf32> to vector<8x16x4xf32>
    %145 = vector.extract_strided_slice %6 {offsets = [5, 2, 0], sizes = [1, 1, 4], strides = [1, 1, 1]} : vector<7x7x4xf32> to vector<1x1x4xf32>
    %146 = vector.shape_cast %145 : vector<1x1x4xf32> to vector<4xf32>
    %147 = vector.shape_cast %146 : vector<4xf32> to vector<1x1x4xf32>
    %148 = vector.broadcast %147 : vector<1x1x4xf32> to vector<8x16x4xf32>
    %149 = arith.mulf %144, %148 : vector<8x16x4xf32>
    %150 = arith.addf %143, %149 : vector<8x16x4xf32>
    %151 = vector.extract_strided_slice %108 {offsets = [6, 0, 0], sizes = [8, 16, 4], strides = [1, 1, 1]} : vector<14x16x4xf32> to vector<8x16x4xf32>
    %152 = vector.extract_strided_slice %6 {offsets = [6, 2, 0], sizes = [1, 1, 4], strides = [1, 1, 1]} : vector<7x7x4xf32> to vector<1x1x4xf32>
    %153 = vector.shape_cast %152 : vector<1x1x4xf32> to vector<4xf32>
    %154 = vector.shape_cast %153 : vector<4xf32> to vector<1x1x4xf32>
    %155 = vector.broadcast %154 : vector<1x1x4xf32> to vector<8x16x4xf32>
    %156 = arith.mulf %151, %155 : vector<8x16x4xf32>
    %157 = arith.addf %150, %156 : vector<8x16x4xf32>
    %158 = vector.extract_strided_slice %5 {offsets = [0, 3, 0], sizes = [14, 16, 4], strides = [1, 1, 1]} : vector<14x22x4xf32> to vector<14x16x4xf32>
    %159 = vector.extract_strided_slice %158 {offsets = [0, 0, 0], sizes = [8, 16, 4], strides = [1, 1, 1]} : vector<14x16x4xf32> to vector<8x16x4xf32>
    %160 = vector.extract_strided_slice %6 {offsets = [0, 3, 0], sizes = [1, 1, 4], strides = [1, 1, 1]} : vector<7x7x4xf32> to vector<1x1x4xf32>
    %161 = vector.shape_cast %160 : vector<1x1x4xf32> to vector<4xf32>
    %162 = vector.shape_cast %161 : vector<4xf32> to vector<1x1x4xf32>
    %163 = vector.broadcast %162 : vector<1x1x4xf32> to vector<8x16x4xf32>
    %164 = arith.mulf %159, %163 : vector<8x16x4xf32>
    %165 = arith.addf %157, %164 : vector<8x16x4xf32>
    %166 = vector.extract_strided_slice %158 {offsets = [1, 0, 0], sizes = [8, 16, 4], strides = [1, 1, 1]} : vector<14x16x4xf32> to vector<8x16x4xf32>
    %167 = vector.extract_strided_slice %6 {offsets = [1, 3, 0], sizes = [1, 1, 4], strides = [1, 1, 1]} : vector<7x7x4xf32> to vector<1x1x4xf32>
    %168 = vector.shape_cast %167 : vector<1x1x4xf32> to vector<4xf32>
    %169 = vector.shape_cast %168 : vector<4xf32> to vector<1x1x4xf32>
    %170 = vector.broadcast %169 : vector<1x1x4xf32> to vector<8x16x4xf32>
    %171 = arith.mulf %166, %170 : vector<8x16x4xf32>
    %172 = arith.addf %165, %171 : vector<8x16x4xf32>
    %173 = vector.extract_strided_slice %158 {offsets = [2, 0, 0], sizes = [8, 16, 4], strides = [1, 1, 1]} : vector<14x16x4xf32> to vector<8x16x4xf32>
    %174 = vector.extract_strided_slice %6 {offsets = [2, 3, 0], sizes = [1, 1, 4], strides = [1, 1, 1]} : vector<7x7x4xf32> to vector<1x1x4xf32>
    %175 = vector.shape_cast %174 : vector<1x1x4xf32> to vector<4xf32>
    %176 = vector.shape_cast %175 : vector<4xf32> to vector<1x1x4xf32>
    %177 = vector.broadcast %176 : vector<1x1x4xf32> to vector<8x16x4xf32>
    %178 = arith.mulf %173, %177 : vector<8x16x4xf32>
    %179 = arith.addf %172, %178 : vector<8x16x4xf32>
    %180 = vector.extract_strided_slice %158 {offsets = [3, 0, 0], sizes = [8, 16, 4], strides = [1, 1, 1]} : vector<14x16x4xf32> to vector<8x16x4xf32>
    %181 = vector.extract_strided_slice %6 {offsets = [3, 3, 0], sizes = [1, 1, 4], strides = [1, 1, 1]} : vector<7x7x4xf32> to vector<1x1x4xf32>
    %182 = vector.shape_cast %181 : vector<1x1x4xf32> to vector<4xf32>
    %183 = vector.shape_cast %182 : vector<4xf32> to vector<1x1x4xf32>
    %184 = vector.broadcast %183 : vector<1x1x4xf32> to vector<8x16x4xf32>
    %185 = arith.mulf %180, %184 : vector<8x16x4xf32>
    %186 = arith.addf %179, %185 : vector<8x16x4xf32>
    %187 = vector.extract_strided_slice %158 {offsets = [4, 0, 0], sizes = [8, 16, 4], strides = [1, 1, 1]} : vector<14x16x4xf32> to vector<8x16x4xf32>
    %188 = vector.extract_strided_slice %6 {offsets = [4, 3, 0], sizes = [1, 1, 4], strides = [1, 1, 1]} : vector<7x7x4xf32> to vector<1x1x4xf32>
    %189 = vector.shape_cast %188 : vector<1x1x4xf32> to vector<4xf32>
    %190 = vector.shape_cast %189 : vector<4xf32> to vector<1x1x4xf32>
    %191 = vector.broadcast %190 : vector<1x1x4xf32> to vector<8x16x4xf32>
    %192 = arith.mulf %187, %191 : vector<8x16x4xf32>
    %193 = arith.addf %186, %192 : vector<8x16x4xf32>
    %194 = vector.extract_strided_slice %158 {offsets = [5, 0, 0], sizes = [8, 16, 4], strides = [1, 1, 1]} : vector<14x16x4xf32> to vector<8x16x4xf32>
    %195 = vector.extract_strided_slice %6 {offsets = [5, 3, 0], sizes = [1, 1, 4], strides = [1, 1, 1]} : vector<7x7x4xf32> to vector<1x1x4xf32>
    %196 = vector.shape_cast %195 : vector<1x1x4xf32> to vector<4xf32>
    %197 = vector.shape_cast %196 : vector<4xf32> to vector<1x1x4xf32>
    %198 = vector.broadcast %197 : vector<1x1x4xf32> to vector<8x16x4xf32>
    %199 = arith.mulf %194, %198 : vector<8x16x4xf32>
    %200 = arith.addf %193, %199 : vector<8x16x4xf32>
    %201 = vector.extract_strided_slice %158 {offsets = [6, 0, 0], sizes = [8, 16, 4], strides = [1, 1, 1]} : vector<14x16x4xf32> to vector<8x16x4xf32>
    %202 = vector.extract_strided_slice %6 {offsets = [6, 3, 0], sizes = [1, 1, 4], strides = [1, 1, 1]} : vector<7x7x4xf32> to vector<1x1x4xf32>
    %203 = vector.shape_cast %202 : vector<1x1x4xf32> to vector<4xf32>
    %204 = vector.shape_cast %203 : vector<4xf32> to vector<1x1x4xf32>
    %205 = vector.broadcast %204 : vector<1x1x4xf32> to vector<8x16x4xf32>
    %206 = arith.mulf %201, %205 : vector<8x16x4xf32>
    %207 = arith.addf %200, %206 : vector<8x16x4xf32>
    %208 = vector.extract_strided_slice %5 {offsets = [0, 4, 0], sizes = [14, 16, 4], strides = [1, 1, 1]} : vector<14x22x4xf32> to vector<14x16x4xf32>
    %209 = vector.extract_strided_slice %208 {offsets = [0, 0, 0], sizes = [8, 16, 4], strides = [1, 1, 1]} : vector<14x16x4xf32> to vector<8x16x4xf32>
    %210 = vector.extract_strided_slice %6 {offsets = [0, 4, 0], sizes = [1, 1, 4], strides = [1, 1, 1]} : vector<7x7x4xf32> to vector<1x1x4xf32>
    %211 = vector.shape_cast %210 : vector<1x1x4xf32> to vector<4xf32>
    %212 = vector.shape_cast %211 : vector<4xf32> to vector<1x1x4xf32>
    %213 = vector.broadcast %212 : vector<1x1x4xf32> to vector<8x16x4xf32>
    %214 = arith.mulf %209, %213 : vector<8x16x4xf32>
    %215 = arith.addf %207, %214 : vector<8x16x4xf32>
    %216 = vector.extract_strided_slice %208 {offsets = [1, 0, 0], sizes = [8, 16, 4], strides = [1, 1, 1]} : vector<14x16x4xf32> to vector<8x16x4xf32>
    %217 = vector.extract_strided_slice %6 {offsets = [1, 4, 0], sizes = [1, 1, 4], strides = [1, 1, 1]} : vector<7x7x4xf32> to vector<1x1x4xf32>
    %218 = vector.shape_cast %217 : vector<1x1x4xf32> to vector<4xf32>
    %219 = vector.shape_cast %218 : vector<4xf32> to vector<1x1x4xf32>
    %220 = vector.broadcast %219 : vector<1x1x4xf32> to vector<8x16x4xf32>
    %221 = arith.mulf %216, %220 : vector<8x16x4xf32>
    %222 = arith.addf %215, %221 : vector<8x16x4xf32>
    %223 = vector.extract_strided_slice %208 {offsets = [2, 0, 0], sizes = [8, 16, 4], strides = [1, 1, 1]} : vector<14x16x4xf32> to vector<8x16x4xf32>
    %224 = vector.extract_strided_slice %6 {offsets = [2, 4, 0], sizes = [1, 1, 4], strides = [1, 1, 1]} : vector<7x7x4xf32> to vector<1x1x4xf32>
    %225 = vector.shape_cast %224 : vector<1x1x4xf32> to vector<4xf32>
    %226 = vector.shape_cast %225 : vector<4xf32> to vector<1x1x4xf32>
    %227 = vector.broadcast %226 : vector<1x1x4xf32> to vector<8x16x4xf32>
    %228 = arith.mulf %223, %227 : vector<8x16x4xf32>
    %229 = arith.addf %222, %228 : vector<8x16x4xf32>
    %230 = vector.extract_strided_slice %208 {offsets = [3, 0, 0], sizes = [8, 16, 4], strides = [1, 1, 1]} : vector<14x16x4xf32> to vector<8x16x4xf32>
    %231 = vector.extract_strided_slice %6 {offsets = [3, 4, 0], sizes = [1, 1, 4], strides = [1, 1, 1]} : vector<7x7x4xf32> to vector<1x1x4xf32>
    %232 = vector.shape_cast %231 : vector<1x1x4xf32> to vector<4xf32>
    %233 = vector.shape_cast %232 : vector<4xf32> to vector<1x1x4xf32>
    %234 = vector.broadcast %233 : vector<1x1x4xf32> to vector<8x16x4xf32>
    %235 = arith.mulf %230, %234 : vector<8x16x4xf32>
    %236 = arith.addf %229, %235 : vector<8x16x4xf32>
    %237 = vector.extract_strided_slice %208 {offsets = [4, 0, 0], sizes = [8, 16, 4], strides = [1, 1, 1]} : vector<14x16x4xf32> to vector<8x16x4xf32>
    %238 = vector.extract_strided_slice %6 {offsets = [4, 4, 0], sizes = [1, 1, 4], strides = [1, 1, 1]} : vector<7x7x4xf32> to vector<1x1x4xf32>
    %239 = vector.shape_cast %238 : vector<1x1x4xf32> to vector<4xf32>
    %240 = vector.shape_cast %239 : vector<4xf32> to vector<1x1x4xf32>
    %241 = vector.broadcast %240 : vector<1x1x4xf32> to vector<8x16x4xf32>
    %242 = arith.mulf %237, %241 : vector<8x16x4xf32>
    %243 = arith.addf %236, %242 : vector<8x16x4xf32>
    %244 = vector.extract_strided_slice %208 {offsets = [5, 0, 0], sizes = [8, 16, 4], strides = [1, 1, 1]} : vector<14x16x4xf32> to vector<8x16x4xf32>
    %245 = vector.extract_strided_slice %6 {offsets = [5, 4, 0], sizes = [1, 1, 4], strides = [1, 1, 1]} : vector<7x7x4xf32> to vector<1x1x4xf32>
    %246 = vector.shape_cast %245 : vector<1x1x4xf32> to vector<4xf32>
    %247 = vector.shape_cast %246 : vector<4xf32> to vector<1x1x4xf32>
    %248 = vector.broadcast %247 : vector<1x1x4xf32> to vector<8x16x4xf32>
    %249 = arith.mulf %244, %248 : vector<8x16x4xf32>
    %250 = arith.addf %243, %249 : vector<8x16x4xf32>
    %251 = vector.extract_strided_slice %208 {offsets = [6, 0, 0], sizes = [8, 16, 4], strides = [1, 1, 1]} : vector<14x16x4xf32> to vector<8x16x4xf32>
    %252 = vector.extract_strided_slice %6 {offsets = [6, 4, 0], sizes = [1, 1, 4], strides = [1, 1, 1]} : vector<7x7x4xf32> to vector<1x1x4xf32>
    %253 = vector.shape_cast %252 : vector<1x1x4xf32> to vector<4xf32>
    %254 = vector.shape_cast %253 : vector<4xf32> to vector<1x1x4xf32>
    %255 = vector.broadcast %254 : vector<1x1x4xf32> to vector<8x16x4xf32>
    %256 = arith.mulf %251, %255 : vector<8x16x4xf32>
    %257 = arith.addf %250, %256 : vector<8x16x4xf32>
    %258 = vector.extract_strided_slice %5 {offsets = [0, 5, 0], sizes = [14, 16, 4], strides = [1, 1, 1]} : vector<14x22x4xf32> to vector<14x16x4xf32>
    %259 = vector.extract_strided_slice %258 {offsets = [0, 0, 0], sizes = [8, 16, 4], strides = [1, 1, 1]} : vector<14x16x4xf32> to vector<8x16x4xf32>
    %260 = vector.extract_strided_slice %6 {offsets = [0, 5, 0], sizes = [1, 1, 4], strides = [1, 1, 1]} : vector<7x7x4xf32> to vector<1x1x4xf32>
    %261 = vector.shape_cast %260 : vector<1x1x4xf32> to vector<4xf32>
    %262 = vector.shape_cast %261 : vector<4xf32> to vector<1x1x4xf32>
    %263 = vector.broadcast %262 : vector<1x1x4xf32> to vector<8x16x4xf32>
    %264 = arith.mulf %259, %263 : vector<8x16x4xf32>
    %265 = arith.addf %257, %264 : vector<8x16x4xf32>
    %266 = vector.extract_strided_slice %258 {offsets = [1, 0, 0], sizes = [8, 16, 4], strides = [1, 1, 1]} : vector<14x16x4xf32> to vector<8x16x4xf32>
    %267 = vector.extract_strided_slice %6 {offsets = [1, 5, 0], sizes = [1, 1, 4], strides = [1, 1, 1]} : vector<7x7x4xf32> to vector<1x1x4xf32>
    %268 = vector.shape_cast %267 : vector<1x1x4xf32> to vector<4xf32>
    %269 = vector.shape_cast %268 : vector<4xf32> to vector<1x1x4xf32>
    %270 = vector.broadcast %269 : vector<1x1x4xf32> to vector<8x16x4xf32>
    %271 = arith.mulf %266, %270 : vector<8x16x4xf32>
    %272 = arith.addf %265, %271 : vector<8x16x4xf32>
    %273 = vector.extract_strided_slice %258 {offsets = [2, 0, 0], sizes = [8, 16, 4], strides = [1, 1, 1]} : vector<14x16x4xf32> to vector<8x16x4xf32>
    %274 = vector.extract_strided_slice %6 {offsets = [2, 5, 0], sizes = [1, 1, 4], strides = [1, 1, 1]} : vector<7x7x4xf32> to vector<1x1x4xf32>
    %275 = vector.shape_cast %274 : vector<1x1x4xf32> to vector<4xf32>
    %276 = vector.shape_cast %275 : vector<4xf32> to vector<1x1x4xf32>
    %277 = vector.broadcast %276 : vector<1x1x4xf32> to vector<8x16x4xf32>
    %278 = arith.mulf %273, %277 : vector<8x16x4xf32>
    %279 = arith.addf %272, %278 : vector<8x16x4xf32>
    %280 = vector.extract_strided_slice %258 {offsets = [3, 0, 0], sizes = [8, 16, 4], strides = [1, 1, 1]} : vector<14x16x4xf32> to vector<8x16x4xf32>
    %281 = vector.extract_strided_slice %6 {offsets = [3, 5, 0], sizes = [1, 1, 4], strides = [1, 1, 1]} : vector<7x7x4xf32> to vector<1x1x4xf32>
    %282 = vector.shape_cast %281 : vector<1x1x4xf32> to vector<4xf32>
    %283 = vector.shape_cast %282 : vector<4xf32> to vector<1x1x4xf32>
    %284 = vector.broadcast %283 : vector<1x1x4xf32> to vector<8x16x4xf32>
    %285 = arith.mulf %280, %284 : vector<8x16x4xf32>
    %286 = arith.addf %279, %285 : vector<8x16x4xf32>
    %287 = vector.extract_strided_slice %258 {offsets = [4, 0, 0], sizes = [8, 16, 4], strides = [1, 1, 1]} : vector<14x16x4xf32> to vector<8x16x4xf32>
    %288 = vector.extract_strided_slice %6 {offsets = [4, 5, 0], sizes = [1, 1, 4], strides = [1, 1, 1]} : vector<7x7x4xf32> to vector<1x1x4xf32>
    %289 = vector.shape_cast %288 : vector<1x1x4xf32> to vector<4xf32>
    %290 = vector.shape_cast %289 : vector<4xf32> to vector<1x1x4xf32>
    %291 = vector.broadcast %290 : vector<1x1x4xf32> to vector<8x16x4xf32>
    %292 = arith.mulf %287, %291 : vector<8x16x4xf32>
    %293 = arith.addf %286, %292 : vector<8x16x4xf32>
    %294 = vector.extract_strided_slice %258 {offsets = [5, 0, 0], sizes = [8, 16, 4], strides = [1, 1, 1]} : vector<14x16x4xf32> to vector<8x16x4xf32>
    %295 = vector.extract_strided_slice %6 {offsets = [5, 5, 0], sizes = [1, 1, 4], strides = [1, 1, 1]} : vector<7x7x4xf32> to vector<1x1x4xf32>
    %296 = vector.shape_cast %295 : vector<1x1x4xf32> to vector<4xf32>
    %297 = vector.shape_cast %296 : vector<4xf32> to vector<1x1x4xf32>
    %298 = vector.broadcast %297 : vector<1x1x4xf32> to vector<8x16x4xf32>
    %299 = arith.mulf %294, %298 : vector<8x16x4xf32>
    %300 = arith.addf %293, %299 : vector<8x16x4xf32>
    %301 = vector.extract_strided_slice %258 {offsets = [6, 0, 0], sizes = [8, 16, 4], strides = [1, 1, 1]} : vector<14x16x4xf32> to vector<8x16x4xf32>
    %302 = vector.extract_strided_slice %6 {offsets = [6, 5, 0], sizes = [1, 1, 4], strides = [1, 1, 1]} : vector<7x7x4xf32> to vector<1x1x4xf32>
    %303 = vector.shape_cast %302 : vector<1x1x4xf32> to vector<4xf32>
    %304 = vector.shape_cast %303 : vector<4xf32> to vector<1x1x4xf32>
    %305 = vector.broadcast %304 : vector<1x1x4xf32> to vector<8x16x4xf32>
    %306 = arith.mulf %301, %305 : vector<8x16x4xf32>
    %307 = arith.addf %300, %306 : vector<8x16x4xf32>
    %308 = vector.extract_strided_slice %5 {offsets = [0, 6, 0], sizes = [14, 16, 4], strides = [1, 1, 1]} : vector<14x22x4xf32> to vector<14x16x4xf32>
    %309 = vector.extract_strided_slice %308 {offsets = [0, 0, 0], sizes = [8, 16, 4], strides = [1, 1, 1]} : vector<14x16x4xf32> to vector<8x16x4xf32>
    %310 = vector.extract_strided_slice %6 {offsets = [0, 6, 0], sizes = [1, 1, 4], strides = [1, 1, 1]} : vector<7x7x4xf32> to vector<1x1x4xf32>
    %311 = vector.shape_cast %310 : vector<1x1x4xf32> to vector<4xf32>
    %312 = vector.shape_cast %311 : vector<4xf32> to vector<1x1x4xf32>
    %313 = vector.broadcast %312 : vector<1x1x4xf32> to vector<8x16x4xf32>
    %314 = arith.mulf %309, %313 : vector<8x16x4xf32>
    %315 = arith.addf %307, %314 : vector<8x16x4xf32>
    %316 = vector.extract_strided_slice %308 {offsets = [1, 0, 0], sizes = [8, 16, 4], strides = [1, 1, 1]} : vector<14x16x4xf32> to vector<8x16x4xf32>
    %317 = vector.extract_strided_slice %6 {offsets = [1, 6, 0], sizes = [1, 1, 4], strides = [1, 1, 1]} : vector<7x7x4xf32> to vector<1x1x4xf32>
    %318 = vector.shape_cast %317 : vector<1x1x4xf32> to vector<4xf32>
    %319 = vector.shape_cast %318 : vector<4xf32> to vector<1x1x4xf32>
    %320 = vector.broadcast %319 : vector<1x1x4xf32> to vector<8x16x4xf32>
    %321 = arith.mulf %316, %320 : vector<8x16x4xf32>
    %322 = arith.addf %315, %321 : vector<8x16x4xf32>
    %323 = vector.extract_strided_slice %308 {offsets = [2, 0, 0], sizes = [8, 16, 4], strides = [1, 1, 1]} : vector<14x16x4xf32> to vector<8x16x4xf32>
    %324 = vector.extract_strided_slice %6 {offsets = [2, 6, 0], sizes = [1, 1, 4], strides = [1, 1, 1]} : vector<7x7x4xf32> to vector<1x1x4xf32>
    %325 = vector.shape_cast %324 : vector<1x1x4xf32> to vector<4xf32>
    %326 = vector.shape_cast %325 : vector<4xf32> to vector<1x1x4xf32>
    %327 = vector.broadcast %326 : vector<1x1x4xf32> to vector<8x16x4xf32>
    %328 = arith.mulf %323, %327 : vector<8x16x4xf32>
    %329 = arith.addf %322, %328 : vector<8x16x4xf32>
    %330 = vector.extract_strided_slice %308 {offsets = [3, 0, 0], sizes = [8, 16, 4], strides = [1, 1, 1]} : vector<14x16x4xf32> to vector<8x16x4xf32>
    %331 = vector.extract_strided_slice %6 {offsets = [3, 6, 0], sizes = [1, 1, 4], strides = [1, 1, 1]} : vector<7x7x4xf32> to vector<1x1x4xf32>
    %332 = vector.shape_cast %331 : vector<1x1x4xf32> to vector<4xf32>
    %333 = vector.shape_cast %332 : vector<4xf32> to vector<1x1x4xf32>
    %334 = vector.broadcast %333 : vector<1x1x4xf32> to vector<8x16x4xf32>
    %335 = arith.mulf %330, %334 : vector<8x16x4xf32>
    %336 = arith.addf %329, %335 : vector<8x16x4xf32>
    %337 = vector.extract_strided_slice %308 {offsets = [4, 0, 0], sizes = [8, 16, 4], strides = [1, 1, 1]} : vector<14x16x4xf32> to vector<8x16x4xf32>
    %338 = vector.extract_strided_slice %6 {offsets = [4, 6, 0], sizes = [1, 1, 4], strides = [1, 1, 1]} : vector<7x7x4xf32> to vector<1x1x4xf32>
    %339 = vector.shape_cast %338 : vector<1x1x4xf32> to vector<4xf32>
    %340 = vector.shape_cast %339 : vector<4xf32> to vector<1x1x4xf32>
    %341 = vector.broadcast %340 : vector<1x1x4xf32> to vector<8x16x4xf32>
    %342 = arith.mulf %337, %341 : vector<8x16x4xf32>
    %343 = arith.addf %336, %342 : vector<8x16x4xf32>
    %344 = vector.extract_strided_slice %308 {offsets = [5, 0, 0], sizes = [8, 16, 4], strides = [1, 1, 1]} : vector<14x16x4xf32> to vector<8x16x4xf32>
    %345 = vector.extract_strided_slice %6 {offsets = [5, 6, 0], sizes = [1, 1, 4], strides = [1, 1, 1]} : vector<7x7x4xf32> to vector<1x1x4xf32>
    %346 = vector.shape_cast %345 : vector<1x1x4xf32> to vector<4xf32>
    %347 = vector.shape_cast %346 : vector<4xf32> to vector<1x1x4xf32>
    %348 = vector.broadcast %347 : vector<1x1x4xf32> to vector<8x16x4xf32>
    %349 = arith.mulf %344, %348 : vector<8x16x4xf32>
    %350 = arith.addf %343, %349 : vector<8x16x4xf32>
    %351 = vector.extract_strided_slice %308 {offsets = [6, 0, 0], sizes = [8, 16, 4], strides = [1, 1, 1]} : vector<14x16x4xf32> to vector<8x16x4xf32>
    %352 = vector.extract_strided_slice %6 {offsets = [6, 6, 0], sizes = [1, 1, 4], strides = [1, 1, 1]} : vector<7x7x4xf32> to vector<1x1x4xf32>
    %353 = vector.shape_cast %352 : vector<1x1x4xf32> to vector<4xf32>
    %354 = vector.shape_cast %353 : vector<4xf32> to vector<1x1x4xf32>
    %355 = vector.broadcast %354 : vector<1x1x4xf32> to vector<8x16x4xf32>
    %356 = arith.mulf %351, %355 : vector<8x16x4xf32>
    %357 = arith.addf %350, %356 : vector<8x16x4xf32>
    %c0_5 = arith.constant 0 : index
    %c0_6 = arith.constant 0 : index
    %358 = vector.load %arg4[%c0_5, %c0_6] : memref<1x4xf32, #tpu.memory_space<vmem>>, vector<1x4xf32>
    %359 = vector.shape_cast %358 : vector<1x4xf32> to vector<4xf32>
    %360 = vector.shape_cast %359 : vector<4xf32> to vector<1x1x4xf32>
    %361 = vector.broadcast %360 : vector<1x1x4xf32> to vector<8x16x4xf32>
    %362 = arith.addf %357, %361 : vector<8x16x4xf32>
    %cst_7 = arith.constant dense<0.000000e+00> : vector<8x16xf32>
    %363 = vector.multi_reduction <add>, %362, %cst_7 [2] : vector<8x16x4xf32> to vector<8x16xf32>
    %364 = vector.shape_cast %363 : vector<8x16xf32> to vector<8x16x1xf32>
    %365 = arith.mulf %362, %362 : vector<8x16x4xf32>
    %cst_8 = arith.constant dense<0.000000e+00> : vector<8x16xf32>
    %366 = vector.multi_reduction <add>, %365, %cst_8 [2] : vector<8x16x4xf32> to vector<8x16xf32>
    %367 = vector.shape_cast %366 : vector<8x16xf32> to vector<8x16x1xf32>
    %cst_9 = arith.constant 2.500000e-01 : f32
    %368 = vector.broadcast %cst_9 : f32 to vector<8x16x1xf32>
    %369 = arith.mulf %364, %368 : vector<8x16x1xf32>
    %cst_10 = arith.constant 2.500000e-01 : f32
    %370 = vector.broadcast %cst_10 : f32 to vector<8x16x1xf32>
    %371 = arith.mulf %367, %370 : vector<8x16x1xf32>
    %372 = arith.mulf %369, %369 : vector<8x16x1xf32>
    %373 = arith.subf %371, %372 : vector<8x16x1xf32>
    %374 = vector.broadcast %369 : vector<8x16x1xf32> to vector<8x16x4xf32>
    %375 = arith.subf %362, %374 : vector<8x16x4xf32>
    %cst_11 = arith.constant 9.99999974E-6 : f32
    %376 = vector.broadcast %cst_11 : f32 to vector<8x16x1xf32>
    %377 = arith.addf %373, %376 : vector<8x16x1xf32>
    %378 = math.rsqrt %377 : vector<8x16x1xf32>
    %379 = vector.broadcast %378 : vector<8x16x1xf32> to vector<8x16x4xf32>
    %380 = arith.mulf %375, %379 : vector<8x16x4xf32>
    %c0_12 = arith.constant 0 : index
    %c0_13 = arith.constant 0 : index
    %381 = vector.load %arg5[%c0_12, %c0_13] : memref<1x4xf32, #tpu.memory_space<vmem>>, vector<1x4xf32>
    %382 = vector.shape_cast %381 : vector<1x4xf32> to vector<4xf32>
    %383 = vector.shape_cast %382 : vector<4xf32> to vector<1x1x4xf32>
    %384 = vector.broadcast %383 : vector<1x1x4xf32> to vector<8x16x4xf32>
    %385 = arith.mulf %380, %384 : vector<8x16x4xf32>
    %c0_14 = arith.constant 0 : index
    %c0_15 = arith.constant 0 : index
    %386 = vector.load %arg6[%c0_14, %c0_15] : memref<1x4xf32, #tpu.memory_space<vmem>>, vector<1x4xf32>
    %387 = vector.shape_cast %386 : vector<1x4xf32> to vector<4xf32>
    %388 = vector.shape_cast %387 : vector<4xf32> to vector<1x1x4xf32>
    %389 = vector.broadcast %388 : vector<1x1x4xf32> to vector<8x16x4xf32>
    %390 = arith.addf %385, %389 : vector<8x16x4xf32>
    %391 = vector.shape_cast %390 : vector<8x16x4xf32> to vector<128x4xf32>
    %392 = arith.truncf %391 : vector<128x4xf32> to vector<128x4xbf16>
    %c0_16 = arith.constant 0 : index
    %c0_17 = arith.constant 0 : index
    %393 = vector.load %arg7[%c0_16, %c0_17] : memref<4x16xbf16, #tpu.memory_space<vmem>>, vector<4x16xbf16>
    %cst_18 = arith.constant dense<0.000000e+00> : vector<128x16xf32>
    %394 = tpu.matmul %392, %393, %cst_18 {dimension_numbers = #tpu.dot_dimension_numbers<[1], [0], [0], [1], [0, 0, 1, 1], [], []>} : vector<128x4xbf16>, vector<4x16xbf16>, vector<128x16xf32> -> vector<128x16xf32>
    %c0_19 = arith.constant 0 : index
    %c0_20 = arith.constant 0 : index
    %395 = vector.load %arg8[%c0_19, %c0_20] : memref<1x16xf32, #tpu.memory_space<vmem>>, vector<1x16xf32>
    %396 = vector.shape_cast %395 : vector<1x16xf32> to vector<16xf32>
    %397 = vector.shape_cast %396 : vector<16xf32> to vector<1x16xf32>
    %398 = vector.broadcast %397 : vector<1x16xf32> to vector<128x16xf32>
    %399 = arith.addf %394, %398 : vector<128x16xf32>
    %cst_21 = arith.constant 5.000000e-01 : f32
    %400 = vector.broadcast %cst_21 : f32 to vector<128x16xf32>
    %401 = arith.mulf %400, %399 : vector<128x16xf32>
    %cst_22 = arith.constant 0.707106769 : f32
    %402 = vector.broadcast %cst_22 : f32 to vector<128x16xf32>
    %403 = arith.mulf %399, %402 : vector<128x16xf32>
    %404 = math.erf %403 : vector<128x16xf32>
    %cst_23 = arith.constant 1.000000e+00 : f32
    %405 = vector.broadcast %cst_23 : f32 to vector<128x16xf32>
    %406 = arith.addf %405, %404 : vector<128x16xf32>
    %407 = arith.mulf %401, %406 : vector<128x16xf32>
    %408 = arith.truncf %407 : vector<128x16xf32> to vector<128x16xbf16>
    %c0_24 = arith.constant 0 : index
    %c0_25 = arith.constant 0 : index
    %409 = vector.load %arg9[%c0_24, %c0_25] : memref<16x4xbf16, #tpu.memory_space<vmem>>, vector<16x4xbf16>
    %cst_26 = arith.constant dense<0.000000e+00> : vector<128x4xf32>
    %410 = tpu.matmul %408, %409, %cst_26 {dimension_numbers = #tpu.dot_dimension_numbers<[1], [0], [0], [1], [0, 0, 1, 1], [], []>} : vector<128x16xbf16>, vector<16x4xbf16>, vector<128x4xf32> -> vector<128x4xf32>
    %c0_27 = arith.constant 0 : index
    %c0_28 = arith.constant 0 : index
    %411 = vector.load %arg10[%c0_27, %c0_28] : memref<1x4xf32, #tpu.memory_space<vmem>>, vector<1x4xf32>
    %412 = vector.shape_cast %411 : vector<1x4xf32> to vector<4xf32>
    %413 = vector.shape_cast %412 : vector<4xf32> to vector<1x4xf32>
    %414 = vector.broadcast %413 : vector<1x4xf32> to vector<128x4xf32>
    %415 = arith.addf %410, %414 : vector<128x4xf32>
    %c0_29 = arith.constant 0 : index
    %c0_30 = arith.constant 0 : index
    %416 = vector.load %arg11[%c0_29, %c0_30] : memref<1x4xf32, #tpu.memory_space<vmem>>, vector<1x4xf32>
    %417 = vector.shape_cast %416 : vector<1x4xf32> to vector<4xf32>
    %418 = vector.shape_cast %417 : vector<4xf32> to vector<1x4xf32>
    %419 = vector.broadcast %418 : vector<1x4xf32> to vector<128x4xf32>
    %420 = arith.mulf %415, %419 : vector<128x4xf32>
    %c0_31 = arith.constant 0 : index
    %421 = arith.index_cast %0 : i32 to index
    %c0_32 = arith.constant 0 : index
    %c0_33 = arith.constant 0 : index
    %422 = vector.load %arg2[%c0_31, %421, %c0_32, %c0_33] : memref<1x16x16x4xf32, #tpu.memory_space<vmem>>, vector<1x8x16x4xf32>
    %423 = vector.shape_cast %422 : vector<1x8x16x4xf32> to vector<8x16x4xf32>
    %424 = vector.shape_cast %420 : vector<128x4xf32> to vector<8x16x4xf32>
    %425 = arith.addf %423, %424 : vector<8x16x4xf32>
    %c0_34 = arith.constant 0 : index
    %c0_35 = arith.constant 0 : index
    %c0_36 = arith.constant 0 : index
    %c0_37 = arith.constant 0 : index
    %426 = vector.load %arg12[%c0_34, %c0_35, %c0_36, %c0_37] : memref<1x8x16x4xf32, #tpu.memory_space<vmem>>, vector<1x8x16x4xf32>
    %427 = vector.shape_cast %426 : vector<1x8x16x4xf32> to vector<8x16x4xf32>
    %428 = vector.shape_cast %425 : vector<8x16x4xf32> to vector<1x8x16x4xf32>
    tpu.vector_store %arg12[%c0_34, %c0_35, %c0_36, %c0_37], %428 {strides = array<i32>} : memref<1x8x16x4xf32, #tpu.memory_space<vmem>>, vector<1x8x16x4xf32>,
    return
  }
  func.func @transform_0(%arg0: i32, %arg1: i32) -> (i32, i32, i32, i32) {
    %c0_i32 = arith.constant 0 : i32
    %c0_i32_0 = arith.constant 0 : i32
    %c0_i32_1 = arith.constant 0 : i32
    %c0_i32_2 = arith.constant 0 : i32
    return %arg0, %c0_i32, %c0_i32_0, %c0_i32_1 : i32, i32, i32, i32
  }
  func.func @transform_1(%arg0: i32, %arg1: i32) -> (i32, i32, i32) {
    %c0_i32 = arith.constant 0 : i32
    %c0_i32_0 = arith.constant 0 : i32
    %c0_i32_1 = arith.constant 0 : i32
    %c0_i32_2 = arith.constant 0 : i32
    return %c0_i32, %c0_i32_0, %c0_i32_1 : i32, i32, i32
  }
  func.func @transform_2(%arg0: i32, %arg1: i32) -> (i32, i32) {
    %c0_i32 = arith.constant 0 : i32
    %c0_i32_0 = arith.constant 0 : i32
    %c0_i32_1 = arith.constant 0 : i32
    return %c0_i32, %c0_i32_0 : i32, i32
  }
  func.func @transform_3(%arg0: i32, %arg1: i32) -> (i32, i32) {
    %c0_i32 = arith.constant 0 : i32
    %c0_i32_0 = arith.constant 0 : i32
    %c0_i32_1 = arith.constant 0 : i32
    return %c0_i32, %c0_i32_0 : i32, i32
  }
  func.func @transform_4(%arg0: i32, %arg1: i32) -> (i32, i32) {
    %c0_i32 = arith.constant 0 : i32
    %c0_i32_0 = arith.constant 0 : i32
    %c0_i32_1 = arith.constant 0 : i32
    return %c0_i32, %c0_i32_0 : i32, i32
  }
  func.func @transform_5(%arg0: i32, %arg1: i32) -> (i32, i32) {
    %c0_i32 = arith.constant 0 : i32
    %c0_i32_0 = arith.constant 0 : i32
    %c0_i32_1 = arith.constant 0 : i32
    return %c0_i32, %c0_i32_0 : i32, i32
  }
  func.func @transform_6(%arg0: i32, %arg1: i32) -> (i32, i32) {
    %c0_i32 = arith.constant 0 : i32
    %c0_i32_0 = arith.constant 0 : i32
    %c0_i32_1 = arith.constant 0 : i32
    return %c0_i32, %c0_i32_0 : i32, i32
  }
  func.func @transform_7(%arg0: i32, %arg1: i32) -> (i32, i32) {
    %c0_i32 = arith.constant 0 : i32
    %c0_i32_0 = arith.constant 0 : i32
    %c0_i32_1 = arith.constant 0 : i32
    return %c0_i32, %c0_i32_0 : i32, i32
  }
  func.func @transform_8(%arg0: i32, %arg1: i32) -> (i32, i32) {
    %c0_i32 = arith.constant 0 : i32
    %c0_i32_0 = arith.constant 0 : i32
    %c0_i32_1 = arith.constant 0 : i32
    return %c0_i32, %c0_i32_0 : i32, i32
  }
  func.func @transform_9(%arg0: i32, %arg1: i32) -> (i32, i32) {
    %c0_i32 = arith.constant 0 : i32
    %c0_i32_0 = arith.constant 0 : i32
    %c0_i32_1 = arith.constant 0 : i32
    return %c0_i32, %c0_i32_0 : i32, i32
  }
  func.func @transform_10(%arg0: i32, %arg1: i32) -> (i32, i32, i32, i32) {
    %c0_i32 = arith.constant 0 : i32
    %c0_i32_0 = arith.constant 0 : i32
    %c0_i32_1 = arith.constant 0 : i32
    return %arg0, %arg1, %c0_i32, %c0_i32_0 : i32, i32, i32, i32
  }
}

</mosaic_0001>

<llo_original>
// kernel: tpu_custom_call.1
$region0: #{tpu_custom_call.1}
  #allocation0 [shape = 'u32[]', space=smem, size = 0x4, offset = 0x4, fixed_abs, tag = 'smem constant byte address 0x4 - core index']
  #allocation1 [shape = 'u32[144,128]{1,0:T(1,128)}', space=vmem, size = 0x12000, scoped, tag = 'internal scratch']
  #allocation2 [shape = 'f32[22,22,4]{2,1,0:T(8,128)}', space=vmem, size = 0x42000, scoped, tag = 'scratch operand']
  %s0 = inlined_call_operand.vmem [shape: f32[2,16,16,4], index: 0, kind: input, shape index: {}]
  %s1 = inlined_call_operand.vmem [shape: f32[7,7,4], index: 1, kind: input, shape index: {}]
  %s2 = inlined_call_operand.vmem [shape: f32[1,4], index: 2, kind: input, shape index: {}]
  %s3 = inlined_call_operand.vmem [shape: f32[1,4], index: 3, kind: input, shape index: {}]
  %s4 = inlined_call_operand.vmem [shape: f32[1,4], index: 4, kind: input, shape index: {}]
  %s5 = inlined_call_operand.vmem [shape: bf16[4,16], index: 5, kind: input, shape index: {}]
  %s6 = inlined_call_operand.vmem [shape: f32[1,16], index: 6, kind: input, shape index: {}]
  %s7 = inlined_call_operand.vmem [shape: bf16[16,4], index: 7, kind: input, shape index: {}]
  %s8 = inlined_call_operand.vmem [shape: f32[1,4], index: 8, kind: input, shape index: {}]
  %s9 = inlined_call_operand.vmem [shape: f32[1,4], index: 9, kind: input, shape index: {}]
  %s10 = inlined_call_operand.vmem [shape: f32[2,16,16,4], index: 10, kind: output, shape index: {}]
  %s11 = sld [smem:[#allocation0]]
  $region77: #{tpu_custom_call.1} parent=0
    _
  %s13 = ssub.s32 1, %s11
  %s14 = scalar_select 0, %s13, %s11
  loop: start=0, step=1, limit=6
  $region2: #{tpu_custom_call.1} parent=0 // loop_pre_header
    _
  $region3: #{tpu_custom_call.1} parent=0 // loop_header
    %s16 = sphi 0, %s20
    %p17 = scmp.ge.s32.totalorder %s16, 6
    %s23 = sphi 0, %s35
    %s24 = sphi 0, %s31
    %s25 = sphi 0, %s23
    %s26 = sphi 0, %s24
    %s27 = sphi 0, %s25
    %s28 = sphi 0, %s26
    %s38 = sphi 0, %s40
    %s41 = sphi 0, %s38
    %s42 = sphi 0, %s41
    %s58 = sphi 0, %s42
    %s62 = sphi 0, %s62
    %s64 = sphi 0, %s62
    %s65 = sphi 0, %s64
    %s79 = sphi 0, %s65
    %s83 = sphi 0, %s83
    %s85 = sphi 0, %s83
    %s86 = sphi 0, %s85
    %s100 = sphi 0, %s86
    %s104 = sphi 0, %s104
    %s106 = sphi 0, %s104
    %s107 = sphi 0, %s106
    %s121 = sphi 0, %s107
    %s125 = sphi 0, %s125
    %s127 = sphi 0, %s125
    %s128 = sphi 0, %s127
    %s142 = sphi 0, %s128
    %s146 = sphi 0, %s146
    %s148 = sphi 0, %s146
    %s149 = sphi 0, %s148
    %s163 = sphi 0, %s149
    %s167 = sphi 0, %s167
    %s169 = sphi 0, %s167
    %s170 = sphi 0, %s169
    %s184 = sphi 0, %s170
    %s188 = sphi 0, %s188
    %s190 = sphi 0, %s188
    %s191 = sphi 0, %s190
    %s205 = sphi 0, %s191
    %s209 = sphi 0, %s209
    %s211 = sphi 0, %s209
    %s212 = sphi 0, %s211
    %s226 = sphi 0, %s212
    %s230 = sphi 0, %s230
    %s232 = sphi 0, %s230
    %s233 = sphi 0, %s232
    %s247 = sphi 0, %s233
    %s255 = sphi 0, %s257
    %s258 = sphi 0, %s255
    %s259 = sphi 0, %s258
    %s275 = sphi 0, %s259
  $region4: #{tpu_custom_call.1} parent=0 // loop_header_branch
    %19 = sbr.rel (%p17) target = $region8
  $region5: #{tpu_custom_call.1} parent=0 // loop_body
    %s21 = ssub.s32 %s16, 1
    %s22 = ssub.s32 %s16, 2
    %s29 = sadd.s32 1, %s24
    %p30 = scmp.ge.s32.totalorder %s29, 2
    %s31 = scalar_select %p30, 0, %s29
    %s32 = sadd.s32 1, %s23
    %s33 = scalar_select %p30, %s32, %s23
    %p34 = scmp.ge.s32.totalorder %s33, 2
    %s35 = scalar_select %p34, 0, %s33
    %s36 = ssub.s32 %s23, %s35
    %p37 = scmp.eq.s32.totalorder %s36, 0
    %s39 = sadd.s32 %s38, 1
    %s40 = scalar_select %p37, %s38, %s39
    %p43 = pneg %p37
    %p44 = scmp.eq.s32.totalorder %s16, 3
    %p45 = por %p43, %p44
    %p46 = scmp.ne.s32.totalorder %s38, %s41
    %p47 = scmp.eq.s32.totalorder %s16, 0
    %p48 = por %p46, %p47
    %p49 = scmp.ne.s32.totalorder %s38, %s41
    %p50 = scmp.eq.s32.totalorder %s21, 3
    %p51 = por %p49, %p50
    %p52 = scmp.ne.s32.totalorder %s41, %s42
    %p53 = scmp.eq.s32.totalorder %s21, 0
    %p54 = por %p52, %p53
    %p55 = scmp.ne.s32.totalorder %s41, %s42
    %p56 = scmp.eq.s32.totalorder %s22, 3
    %p57 = por %p55, %p56
    %p59 = scmp.ne.s32.totalorder %s42, %s58
    %p60 = scmp.eq.s32.totalorder %s22, 0
    %p61 = por %p59, %p60
    %s63 = sadd.s32 %s62, 1
    %p66 = scmp.eq.s32.totalorder %s16, 3
    %p67 = scmp.ne.s32.totalorder %s62, %s64
    %p68 = scmp.eq.s32.totalorder %s16, 0
    %p69 = por %p67, %p68
    %p70 = scmp.ne.s32.totalorder %s62, %s64
    %p71 = scmp.eq.s32.totalorder %s21, 3
    %p72 = por %p70, %p71
    %p73 = scmp.ne.s32.totalorder %s64, %s65
    %p74 = scmp.eq.s32.totalorder %s21, 0
    %p75 = por %p73, %p74
    %p76 = scmp.ne.s32.totalorder %s64, %s65
    %p77 = scmp.eq.s32.totalorder %s22, 3
    %p78 = por %p76, %p77
    %p80 = scmp.ne.s32.totalorder %s65, %s79
    %p81 = scmp.eq.s32.totalorder %s22, 0
    %p82 = por %p80, %p81
    %s84 = sadd.s32 %s83, 1
    %p87 = scmp.eq.s32.totalorder %s16, 3
    %p88 = scmp.ne.s32.totalorder %s83, %s85
    %p89 = scmp.eq.s32.totalorder %s16, 0
    %p90 = por %p88, %p89
    %p91 = scmp.ne.s32.totalorder %s83, %s85
    %p92 = scmp.eq.s32.totalorder %s21, 3
    %p93 = por %p91, %p92
    %p94 = scmp.ne.s32.totalorder %s85, %s86
    %p95 = scmp.eq.s32.totalorder %s21, 0
    %p96 = por %p94, %p95
    %p97 = scmp.ne.s32.totalorder %s85, %s86
    %p98 = scmp.eq.s32.totalorder %s22, 3
    %p99 = por %p97, %p98
    %p101 = scmp.ne.s32.totalorder %s86, %s100
    %p102 = scmp.eq.s32.totalorder %s22, 0
    %p103 = por %p101, %p102
    %s105 = sadd.s32 %s104, 1
    %p108 = scmp.eq.s32.totalorder %s16, 3
    %p109 = scmp.ne.s32.totalorder %s104, %s106
    %p110 = scmp.eq.s32.totalorder %s16, 0
    %p111 = por %p109, %p110
    %p112 = scmp.ne.s32.totalorder %s104, %s106
    %p113 = scmp.eq.s32.totalorder %s21, 3
    %p114 = por %p112, %p113
    %p115 = scmp.ne.s32.totalorder %s106, %s107
    %p116 = scmp.eq.s32.totalorder %s21, 0
    %p117 = por %p115, %p116
    %p118 = scmp.ne.s32.totalorder %s106, %s107
    %p119 = scmp.eq.s32.totalorder %s22, 3
    %p120 = por %p118, %p119
    %p122 = scmp.ne.s32.totalorder %s107, %s121
    %p123 = scmp.eq.s32.totalorder %s22, 0
    %p124 = por %p122, %p123
    %s126 = sadd.s32 %s125, 1
    %p129 = scmp.eq.s32.totalorder %s16, 3
    %p130 = scmp.ne.s32.totalorder %s125, %s127
    %p131 = scmp.eq.s32.totalorder %s16, 0
    %p132 = por %p130, %p131
    %p133 = scmp.ne.s32.totalorder %s125, %s127
    %p134 = scmp.eq.s32.totalorder %s21, 3
    %p135 = por %p133, %p134
    %p136 = scmp.ne.s32.totalorder %s127, %s128
    %p137 = scmp.eq.s32.totalorder %s21, 0
    %p138 = por %p136, %p137
    %p139 = scmp.ne.s32.totalorder %s127, %s128
    %p140 = scmp.eq.s32.totalorder %s22, 3
    %p141 = por %p139, %p140
    %p143 = scmp.ne.s32.totalorder %s128, %s142
    %p144 = scmp.eq.s32.totalorder %s22, 0
    %p145 = por %p143, %p144
    %s147 = sadd.s32 %s146, 1
    %p150 = scmp.eq.s32.totalorder %s16, 3
    %p151 = scmp.ne.s32.totalorder %s146, %s148
    %p152 = scmp.eq.s32.totalorder %s16, 0
    %p153 = por %p151, %p152
    %p154 = scmp.ne.s32.totalorder %s146, %s148
    %p155 = scmp.eq.s32.totalorder %s21, 3
    %p156 = por %p154, %p155
    %p157 = scmp.ne.s32.totalorder %s148, %s149
    %p158 = scmp.eq.s32.totalorder %s21, 0
    %p159 = por %p157, %p158
    %p160 = scmp.ne.s32.totalorder %s148, %s149
    %p161 = scmp.eq.s32.totalorder %s22, 3
    %p162 = por %p160, %p161
    %p164 = scmp.ne.s32.totalorder %s149, %s163
    %p165 = scmp.eq.s32.totalorder %s22, 0
    %p166 = por %p164, %p165
    %s168 = sadd.s32 %s167, 1
    %p171 = scmp.eq.s32.totalorder %s16, 3
    %p172 = scmp.ne.s32.totalorder %s167, %s169
    %p173 = scmp.eq.s32.totalorder %s16, 0
    %p174 = por %p172, %p173
    %p175 = scmp.ne.s32.totalorder %s167, %s169
    %p176 = scmp.eq.s32.totalorder %s21, 3
    %p177 = por %p175, %p176
    %p178 = scmp.ne.s32.totalorder %s169, %s170
    %p179 = scmp.eq.s32.totalorder %s21, 0
    %p180 = por %p178, %p179
    %p181 = scmp.ne.s32.totalorder %s169, %s170
    %p182 = scmp.eq.s32.totalorder %s22, 3
    %p183 = por %p181, %p182
    %p185 = scmp.ne.s32.totalorder %s170, %s184
    %p186 = scmp.eq.s32.totalorder %s22, 0
    %p187 = por %p185, %p186
    %s189 = sadd.s32 %s188, 1
    %p192 = scmp.eq.s32.totalorder %s16, 3
    %p193 = scmp.ne.s32.totalorder %s188, %s190
    %p194 = scmp.eq.s32.totalorder %s16, 0
    %p195 = por %p193, %p194
    %p196 = scmp.ne.s32.totalorder %s188, %s190
    %p197 = scmp.eq.s32.totalorder %s21, 3
    %p198 = por %p196, %p197
    %p199 = scmp.ne.s32.totalorder %s190, %s191
    %p200 = scmp.eq.s32.totalorder %s21, 0
    %p201 = por %p199, %p200
    %p202 = scmp.ne.s32.totalorder %s190, %s191
    %p203 = scmp.eq.s32.totalorder %s22, 3
    %p204 = por %p202, %p203
    %p206 = scmp.ne.s32.totalorder %s191, %s205
    %p207 = scmp.eq.s32.totalorder %s22, 0
    %p208 = por %p206, %p207
    %s210 = sadd.s32 %s209, 1
    %p213 = scmp.eq.s32.totalorder %s16, 3
    %p214 = scmp.ne.s32.totalorder %s209, %s211
    %p215 = scmp.eq.s32.totalorder %s16, 0
    %p216 = por %p214, %p215
    %p217 = scmp.ne.s32.totalorder %s209, %s211
    %p218 = scmp.eq.s32.totalorder %s21, 3
    %p219 = por %p217, %p218
    %p220 = scmp.ne.s32.totalorder %s211, %s212
    %p221 = scmp.eq.s32.totalorder %s21, 0
    %p222 = por %p220, %p221
    %p223 = scmp.ne.s32.totalorder %s211, %s212
    %p224 = scmp.eq.s32.totalorder %s22, 3
    %p225 = por %p223, %p224
    %p227 = scmp.ne.s32.totalorder %s212, %s226
    %p228 = scmp.eq.s32.totalorder %s22, 0
    %p229 = por %p227, %p228
    %s231 = sadd.s32 %s230, 1
    %p234 = scmp.eq.s32.totalorder %s16, 3
    %p235 = scmp.ne.s32.totalorder %s230, %s232
    %p236 = scmp.eq.s32.totalorder %s16, 0
    %p237 = por %p235, %p236
    %p238 = scmp.ne.s32.totalorder %s230, %s232
    %p239 = scmp.eq.s32.totalorder %s21, 3
    %p240 = por %p238, %p239
    %p241 = scmp.ne.s32.totalorder %s232, %s233
    %p242 = scmp.eq.s32.totalorder %s21, 0
    %p243 = por %p241, %p242
    %p244 = scmp.ne.s32.totalorder %s232, %s233
    %p245 = scmp.eq.s32.totalorder %s22, 3
    %p246 = por %p244, %p245
    %p248 = scmp.ne.s32.totalorder %s233, %s247
    %p249 = scmp.eq.s32.totalorder %s22, 0
    %p250 = por %p248, %p249
    %s251 = ssub.s32 %s23, %s35
    %s252 = ssub.s32 %s24, %s31
    %s253 = sor.u32 %s251, %s252
    %p254 = scmp.eq.s32.totalorder %s253, 0
    %s256 = sadd.s32 %s255, 1
    %s257 = scalar_select %p254, %s255, %s256
    %p260 = pneg %p254
    %p261 = scmp.eq.s32.totalorder %s16, 3
    %p262 = por %p260, %p261
    %p263 = scmp.ne.s32.totalorder %s255, %s258
    %p264 = scmp.eq.s32.totalorder %s16, 0
    %p265 = por %p263, %p264
    %p266 = scmp.ne.s32.totalorder %s255, %s258
    %p267 = scmp.eq.s32.totalorder %s21, 3
    %p268 = por %p266, %p267
    %p269 = scmp.ne.s32.totalorder %s258, %s259
    %p270 = scmp.eq.s32.totalorder %s21, 0
    %p271 = por %p269, %p270
    %p272 = scmp.ne.s32.totalorder %s258, %s259
    %p273 = scmp.eq.s32.totalorder %s22, 3
    %p274 = por %p272, %p273
    %p276 = scmp.ne.s32.totalorder %s259, %s275
    %p277 = scmp.eq.s32.totalorder %s22, 0
    %p278 = por %p276, %p277
    %p279 = scmp.le.s32.totalorder 1, %s16
    %p280 = scmp.lt.s32.totalorder %s16, 5
    %p281 = pnand %p279, %p280
    %p282 = pneg %p281
    // Predicated region
    $region9: #{tpu_custom_call.1} parent=5 // pred_check
      _
    $region10: #{tpu_custom_call.1} parent=5 // pred_check_branch
      %284 = sbr.rel (%p281) target = $region12
    $region11: #{tpu_custom_call.1} parent=5 // pred_region
      %s285 = ssub.s32 %s16, 1
      // Predicated region
      $region13: #{tpu_custom_call.1} parent=11 // pred_check
        %p286 = pneg %p75
      $region14: #{tpu_custom_call.1} parent=11 // pred_check_branch
        %288 = sbr.rel (%p286) target = $region16
      $region15: #{tpu_custom_call.1} parent=11 // pred_region
        _
      $region16: #{tpu_custom_call.1} parent=11 // pred_fallthru
        _
      // Predicated region
      $region17: #{tpu_custom_call.1} parent=11 // pred_check
        %p289 = pneg %p96
      $region18: #{tpu_custom_call.1} parent=11 // pred_check_branch
        %291 = sbr.rel (%p289) target = $region20
      $region19: #{tpu_custom_call.1} parent=11 // pred_region
        _
      $region20: #{tpu_custom_call.1} parent=11 // pred_fallthru
        _
      // Predicated region
      $region21: #{tpu_custom_call.1} parent=11 // pred_check
        %p292 = pneg %p117
      $region22: #{tpu_custom_call.1} parent=11 // pred_check_branch
        %294 = sbr.rel (%p292) target = $region24
      $region23: #{tpu_custom_call.1} parent=11 // pred_region
        _
      $region24: #{tpu_custom_call.1} parent=11 // pred_fallthru
        _
      // Predicated region
      $region25: #{tpu_custom_call.1} parent=11 // pred_check
        %p295 = pneg %p138
      $region26: #{tpu_custom_call.1} parent=11 // pred_check_branch
        %297 = sbr.rel (%p295) target = $region28
      $region27: #{tpu_custom_call.1} parent=11 // pred_region
        _
      $region28: #{tpu_custom_call.1} parent=11 // pred_fallthru
        _
      // Predicated region
      $region29: #{tpu_custom_call.1} parent=11 // pred_check
        %p298 = pneg %p159
      $region30: #{tpu_custom_call.1} parent=11 // pred_check_branch
        %300 = sbr.rel (%p298) target = $region32
      $region31: #{tpu_custom_call.1} parent=11 // pred_region
        _
      $region32: #{tpu_custom_call.1} parent=11 // pred_fallthru
        _
      // Predicated region
      $region33: #{tpu_custom_call.1} parent=11 // pred_check
        %p301 = pneg %p180
      $region34: #{tpu_custom_call.1} parent=11 // pred_check_branch
        %303 = sbr.rel (%p301) target = $region36
      $region35: #{tpu_custom_call.1} parent=11 // pred_region
        _
      $region36: #{tpu_custom_call.1} parent=11 // pred_fallthru
        _
      // Predicated region
      $region37: #{tpu_custom_call.1} parent=11 // pred_check
        %p304 = pneg %p201
      $region38: #{tpu_custom_call.1} parent=11 // pred_check_branch
        %306 = sbr.rel (%p304) target = $region40
      $region39: #{tpu_custom_call.1} parent=11 // pred_region
        _
      $region40: #{tpu_custom_call.1} parent=11 // pred_fallthru
        _
      // Predicated region
      $region41: #{tpu_custom_call.1} parent=11 // pred_check
        %p307 = pneg %p222
      $region42: #{tpu_custom_call.1} parent=11 // pred_check_branch
        %309 = sbr.rel (%p307) target = $region44
      $region43: #{tpu_custom_call.1} parent=11 // pred_region
        _
      $region44: #{tpu_custom_call.1} parent=11 // pred_fallthru
        _
      // Predicated region
      $region45: #{tpu_custom_call.1} parent=11 // pred_check
        %p310 = pneg %p243
      $region46: #{tpu_custom_call.1} parent=11 // pred_check_branch
        %312 = sbr.rel (%p310) target = $region48
      $region47: #{tpu_custom_call.1} parent=11 // pred_region
        _
      $region48: #{tpu_custom_call.1} parent=11 // pred_fallthru
        _
    $region12: #{tpu_custom_call.1} parent=5 // pred_fallthru
      _
    %p313 = scmp.lt.s32.totalorder %s16, 4
    // Predicated region
    $region49: #{tpu_custom_call.1} parent=5 // pred_check
      %p314 = pneg %p313
    $region50: #{tpu_custom_call.1} parent=5 // pred_check_branch
      %316 = sbr.rel (%p314) target = $region52
    $region51: #{tpu_custom_call.1} parent=5 // pred_region
      // Predicated region
      $region53: #{tpu_custom_call.1} parent=51 // pred_check
        %p317 = pneg %p48
      $region54: #{tpu_custom_call.1} parent=51 // pred_check_branch
        %319 = sbr.rel (%p317) target = $region56
      $region55: #{tpu_custom_call.1} parent=51 // pred_region
        %p320 = scmp.lt.s32.totalorder %s23, 1
        %s321 = scalar_select %p320, %s23, 1
        %s322 = smul.addr %s321, 32
        %s323 = smul.addr %s322, 8
        %s324 = scalar_lea.vmem %s0, %s323
      $region56: #{tpu_custom_call.1} parent=51 // pred_fallthru
        _
    $region52: #{tpu_custom_call.1} parent=5 // pred_fallthru
      _
    %p325 = scmp.le.s32.totalorder 1, %s16
    %p326 = scmp.lt.s32.totalorder %s16, 5
    %p327 = pnand %p325, %p326
    %p328 = pneg %p327
    // Predicated region
    $region57: #{tpu_custom_call.1} parent=5 // pred_check
      _
    $region58: #{tpu_custom_call.1} parent=5 // pred_check_branch
      %330 = sbr.rel (%p327) target = $region60
    $region59: #{tpu_custom_call.1} parent=5 // pred_region
      %s331 = ssub.s32 %s16, 1
      %p332 = scmp.lt.s32.totalorder %s25, 1
      %s333 = scalar_select %p332, %s25, 1
      %s334 = smul.addr %s333, 32
      %s335 = smul.addr %s334, 8
      %s336 = scalar_lea.vmem %s0, %s335
      %p337 = pneg %p54
      %p338 = pneg %p51
      %p339 = pneg %p75
      %p340 = pneg %p72
      %p341 = pneg %p96
      %p342 = pneg %p93
      %p343 = pneg %p117
      %p344 = pneg %p114
      %p345 = pneg %p138
      %p346 = pneg %p135
      %p347 = pneg %p159
      %p348 = pneg %p156
      %p349 = pneg %p180
      %p350 = pneg %p177
      %p351 = pneg %p201
      %p352 = pneg %p198
      %p353 = pneg %p222
      %p354 = pneg %p219
      %p355 = pneg %p243
      %p356 = pneg %p240
      %p357 = pneg %p271
      %p358 = pneg %p268
      %s359 = smul.u32 8, %s26
      %p360 = scmp.lt.s32.totalorder %s25, 1
      %s361 = scalar_select %p360, %s25, 1
      %p362 = scmp.lt.s32.totalorder %s359, 15
      %s363 = scalar_select %p362, %s359, 15
      %s364 = smul.addr %s363, 2
      %s365 = smul.addr %s361, 32
      %s366 = sadd.s32 %s364, %s365
      %s367 = smul.addr %s366, 8
      %s368 = scalar_lea.vmem %s10, %s367
      %p369 = scmp.lt.s32.totalorder %s25, 1
      %s370 = scalar_select %p369, %s25, 1
      %s371 = smul.addr %s370, 32
      %s372 = smul.addr %s371, 8
      %s373 = scalar_lea.vmem %s0, %s372
      %s374 = smul.u32 8, %s26
      %p375 = scmp.lt.s32.totalorder %s25, 1
      %s376 = scalar_select %p375, %s25, 1
      %p377 = scmp.lt.s32.totalorder %s374, 15
      %s378 = scalar_select %p377, %s374, 15
      %s379 = smul.addr %s378, 2
      %s380 = smul.addr %s376, 32
      %s381 = sadd.s32 %s379, %s380
      %s382 = smul.addr %s381, 8
      %s383 = scalar_lea.vmem %s10, %s382
      %s384 = smul.u32 8, %s26
      %s386 = smul.u32 %s26, 8
      %p387 = scmp.eq.s32.totalorder %s26, 0
      // Predicated region
      $region61: #{tpu_custom_call.1} parent=59 // pred_check
        %p388 = pneg %p387
      $region62: #{tpu_custom_call.1} parent=59 // pred_check_branch
        %390 = sbr.rel (%p388) target = $region64
      $region63: #{tpu_custom_call.1} parent=59 // pred_region
        %vm391 = vcmask 31744
        %392 = vst.msk [vmem:[#allocation2] sm:$0xff] %vm391, 0.0
        %393 = vst.msk [vmem:[#allocation2 + $0x8] sm:$0xff] %vm391, 0.0
        %vm394 = vcmask 29696
        %395 = vst.msk [vmem:[#allocation2 + $0x10] sm:$0x3f] %vm394, 0.0
        %396 = vst.msk [vmem:[#allocation2 + $0x18] sm:$0xff] %vm391, 0.0
        %397 = vst.msk [vmem:[#allocation2 + $0x20] sm:$0xff] %vm391, 0.0
        %398 = vst.msk [vmem:[#allocation2 + $0x28] sm:$0x3f] %vm394, 0.0
        %399 = vst.msk [vmem:[#allocation2 + $0x30] sm:$0xff] %vm391, 0.0
        %400 = vst.msk [vmem:[#allocation2 + $0x38] sm:$0xff] %vm391, 0.0
        %401 = vst.msk [vmem:[#allocation2 + $0x40] sm:$0x3f] %vm394, 0.0
        %402 = vst.msk [vmem:[#allocation2 + $0x48] sm:$0xff] %vm391, 0.0
        %403 = vst.msk [vmem:[#allocation2 + $0x50] sm:$0xff] %vm391, 0.0
        %404 = vst.msk [vmem:[#allocation2 + $0x58] sm:$0x3f] %vm394, 0.0
        %405 = vst.msk [vmem:[#allocation2 + $0x60] sm:$0xff] %vm391, 0.0
        %406 = vst.msk [vmem:[#allocation2 + $0x68] sm:$0xff] %vm391, 0.0
        %407 = vst.msk [vmem:[#allocation2 + $0x70] sm:$0x3f] %vm394, 0.0
        %408 = vst.msk [vmem:[#allocation2 + $0x78] sm:$0xff] %vm391, 0.0
        %409 = vst.msk [vmem:[#allocation2 + $0x80] sm:$0xff] %vm391, 0.0
        %410 = vst.msk [vmem:[#allocation2 + $0x88] sm:$0x3f] %vm394, 0.0
        %411 = vst.msk [vmem:[#allocation2 + $0x90] sm:$0xff] %vm391, 0.0
        %412 = vst.msk [vmem:[#allocation2 + $0x98] sm:$0xff] %vm391, 0.0
        %413 = vst.msk [vmem:[#allocation2 + $0xa0] sm:$0x3f] %vm394, 0.0
        %414 = vst.msk [vmem:[#allocation2 + $0xa8] sm:$0xff] %vm391, 0.0
        %415 = vst.msk [vmem:[#allocation2 + $0xb0] sm:$0xff] %vm391, 0.0
        %416 = vst.msk [vmem:[#allocation2 + $0xb8] sm:$0x3f] %vm394, 0.0
        %417 = vst.msk [vmem:[#allocation2 + $0xc0] sm:$0xff] %vm391, 0.0
        %418 = vst.msk [vmem:[#allocation2 + $0xc8] sm:$0xff] %vm391, 0.0
        %419 = vst.msk [vmem:[#allocation2 + $0xd0] sm:$0x3f] %vm394, 0.0
        %420 = vst.msk [vmem:[#allocation2 + $0xd8] sm:$0xff] %vm391, 0.0
        %421 = vst.msk [vmem:[#allocation2 + $0xe0] sm:$0xff] %vm391, 0.0
        %422 = vst.msk [vmem:[#allocation2 + $0xe8] sm:$0x3f] %vm394, 0.0
        %423 = vst.msk [vmem:[#allocation2 + $0xf0] sm:$0xff] %vm391, 0.0
        %424 = vst.msk [vmem:[#allocation2 + $0xf8] sm:$0xff] %vm391, 0.0
        %425 = vst.msk [vmem:[#allocation2 + $0x100] sm:$0x3f] %vm394, 0.0
        %426 = vst.msk [vmem:[#allocation2 + $0x108] sm:$0xff] %vm391, 0.0
        %427 = vst.msk [vmem:[#allocation2 + $0x110] sm:$0xff] %vm391, 0.0
        %428 = vst.msk [vmem:[#allocation2 + $0x118] sm:$0x3f] %vm394, 0.0
        %429 = vst.msk [vmem:[#allocation2 + $0x120] sm:$0xff] %vm391, 0.0
        %430 = vst.msk [vmem:[#allocation2 + $0x128] sm:$0xff] %vm391, 0.0
        %431 = vst.msk [vmem:[#allocation2 + $0x130] sm:$0x3f] %vm394, 0.0
        %432 = vst.msk [vmem:[#allocation2 + $0x138] sm:$0xff] %vm391, 0.0
        %433 = vst.msk [vmem:[#allocation2 + $0x140] sm:$0xff] %vm391, 0.0
        %434 = vst.msk [vmem:[#allocation2 + $0x148] sm:$0x3f] %vm394, 0.0
        %435 = vst.msk [vmem:[#allocation2 + $0x150] sm:$0xff] %vm391, 0.0
        %436 = vst.msk [vmem:[#allocation2 + $0x158] sm:$0xff] %vm391, 0.0
        %437 = vst.msk [vmem:[#allocation2 + $0x160] sm:$0x3f] %vm394, 0.0
        %438 = vst.msk [vmem:[#allocation2 + $0x168] sm:$0xff] %vm391, 0.0
        %439 = vst.msk [vmem:[#allocation2 + $0x170] sm:$0xff] %vm391, 0.0
        %440 = vst.msk [vmem:[#allocation2 + $0x178] sm:$0x3f] %vm394, 0.0
        %441 = vst.msk [vmem:[#allocation2 + $0x180] sm:$0xff] %vm391, 0.0
        %442 = vst.msk [vmem:[#allocation2 + $0x188] sm:$0xff] %vm391, 0.0
        %443 = vst.msk [vmem:[#allocation2 + $0x190] sm:$0x3f] %vm394, 0.0
        %444 = vst.msk [vmem:[#allocation2 + $0x198] sm:$0xff] %vm391, 0.0
        %445 = vst.msk [vmem:[#allocation2 + $0x1a0] sm:$0xff] %vm391, 0.0
        %446 = vst.msk [vmem:[#allocation2 + $0x1a8] sm:$0x3f] %vm394, 0.0
        %447 = vst.msk [vmem:[#allocation2 + $0x1b0] sm:$0xff] %vm391, 0.0
        %448 = vst.msk [vmem:[#allocation2 + $0x1b8] sm:$0xff] %vm391, 0.0
        %449 = vst.msk [vmem:[#allocation2 + $0x1c0] sm:$0x3f] %vm394, 0.0
        %450 = vst.msk [vmem:[#allocation2 + $0x1c8] sm:$0xff] %vm391, 0.0
        %451 = vst.msk [vmem:[#allocation2 + $0x1d0] sm:$0xff] %vm391, 0.0
        %452 = vst.msk [vmem:[#allocation2 + $0x1d8] sm:$0x3f] %vm394, 0.0
        %453 = vst.msk [vmem:[#allocation2 + $0x1e0] sm:$0xff] %vm391, 0.0
        %454 = vst.msk [vmem:[#allocation2 + $0x1e8] sm:$0xff] %vm391, 0.0
        %455 = vst.msk [vmem:[#allocation2 + $0x1f0] sm:$0x3f] %vm394, 0.0
        %456 = vst.msk [vmem:[#allocation2 + $0x1f8] sm:$0xff] %vm391, 0.0
        %457 = vst.msk [vmem:[#allocation2 + $0x200] sm:$0xff] %vm391, 0.0
        %458 = vst.msk [vmem:[#allocation2 + $0x208] sm:$0x3f] %vm394, 0.0
        %v459 = vld [vmem:[%s373] sm:$0xff]
        %v460 = vld [vmem:[%s373 + $0x8] sm:$0xff]
        %v461 = vld [vmem:[%s373 + $0x10] sm:$0xff]
        %v462 = vld [vmem:[%s373 + $0x18] sm:$0xff]
        %v463 = vld [vmem:[%s373 + $0x20] sm:$0xff]
        %v464 = vld [vmem:[%s373 + $0x28] sm:$0xff]
        %v465 = vld [vmem:[%s373 + $0x30] sm:$0xff]
        %v466 = vld [vmem:[%s373 + $0x38] sm:$0xff]
        %v467 = vld [vmem:[%s373 + $0x40] sm:$0xff]
        %v468 = vld [vmem:[%s373 + $0x48] sm:$0xff]
        %v469 = vld [vmem:[%s373 + $0x50] sm:$0xff]
        %v470 = vld [vmem:[%s373 + $0x58] sm:$0xff]
        %v471 = vld [vmem:[%s373 + $0x60] sm:$0xff]
        %v472 = vld [vmem:[%s373 + $0x68] sm:$0xff]
        %v473 = vld [vmem:[%s373 + $0x70] sm:$0xff]
        %v474 = vld [vmem:[%s373 + $0x78] sm:$0xff]
        %v475 = vld [vmem:[%s373 + $0x80] sm:$0xff]
        %v476 = vld [vmem:[%s373 + $0x88] sm:$0xff]
        %v477 = vld [vmem:[%s373 + $0x90] sm:$0xff]
        %v478 = vld [vmem:[%s373 + $0x98] sm:$0xff]
        %v479 = vld [vmem:[%s373 + $0xa0] sm:$0xff]
        %v480 = vld [vmem:[%s373 + $0xa8] sm:$0xff]
        %v481 = vld [vmem:[%s373 + $0xb0] sm:$0xff]
        %v482 = vld [vmem:[%s373 + $0xb8] sm:$0xff]
        %v483 = vld [vmem:[%s373 + $0xc0] sm:$0xff]
        %v484 = vld [vmem:[%s373 + $0xc8] sm:$0xff]
        %v485 = vld [vmem:[%s373 + $0xd0] sm:$0xff]
        %v486 = vld [vmem:[%s373 + $0xd8] sm:$0xff]
        %v487 = vld [vmem:[%s373 + $0xe0] sm:$0xff]
        %v488 = vld [vmem:[%s373 + $0xe8] sm:$0xff]
        %v489 = vld [vmem:[%s373 + $0xf0] sm:$0xff]
        %v490 = vld [vmem:[%s373 + $0xf8] sm:$0xff]
        %s491 = scalar_lea.vmem [#allocation2], 72
        %492 = vst.msk [vmem:[%s491 + $0x3] sm:$0xff] %vm391, %v459
        %493 = vst.msk [vmem:[%s491 + $0xb] sm:$0xff] %vm391, %v460
        %494 = vst.msk [vmem:[%s491 + $0x1b] sm:$0xff] %vm391, %v461
        %495 = vst.msk [vmem:[%s491 + $0x23] sm:$0xff] %vm391, %v462
        %496 = vst.msk [vmem:[%s491 + $0x33] sm:$0xff] %vm391, %v463
        %497 = vst.msk [vmem:[%s491 + $0x3b] sm:$0xff] %vm391, %v464
        %498 = vst.msk [vmem:[%s491 + $0x4b] sm:$0xff] %vm391, %v465
        %499 = vst.msk [vmem:[%s491 + $0x53] sm:$0xff] %vm391, %v466
        %500 = vst.msk [vmem:[%s491 + $0x63] sm:$0xff] %vm391, %v467
        %501 = vst.msk [vmem:[%s491 + $0x6b] sm:$0xff] %vm391, %v468
        %502 = vst.msk [vmem:[%s491 + $0x7b] sm:$0xff] %vm391, %v469
        %503 = vst.msk [vmem:[%s491 + $0x83] sm:$0xff] %vm391, %v470
        %504 = vst.msk [vmem:[%s491 + $0x93] sm:$0xff] %vm391, %v471
        %505 = vst.msk [vmem:[%s491 + $0x9b] sm:$0xff] %vm391, %v472
        %506 = vst.msk [vmem:[%s491 + $0xab] sm:$0xff] %vm391, %v473
        %507 = vst.msk [vmem:[%s491 + $0xb3] sm:$0xff] %vm391, %v474
        %508 = vst.msk [vmem:[%s491 + $0xc3] sm:$0xff] %vm391, %v475
        %509 = vst.msk [vmem:[%s491 + $0xcb] sm:$0xff] %vm391, %v476
        %510 = vst.msk [vmem:[%s491 + $0xdb] sm:$0xff] %vm391, %v477
        %511 = vst.msk [vmem:[%s491 + $0xe3] sm:$0xff] %vm391, %v478
        %512 = vst.msk [vmem:[%s491 + $0xf3] sm:$0xff] %vm391, %v479
        %513 = vst.msk [vmem:[%s491 + $0xfb] sm:$0xff] %vm391, %v480
        %514 = vst.msk [vmem:[%s491 + $0x10b] sm:$0xff] %vm391, %v481
        %515 = vst.msk [vmem:[%s491 + $0x113] sm:$0xff] %vm391, %v482
        %516 = vst.msk [vmem:[%s491 + $0x123] sm:$0xff] %vm391, %v483
        %517 = vst.msk [vmem:[%s491 + $0x12b] sm:$0xff] %vm391, %v484
        %518 = vst.msk [vmem:[%s491 + $0x13b] sm:$0xff] %vm391, %v485
        %519 = vst.msk [vmem:[%s491 + $0x143] sm:$0xff] %vm391, %v486
        %520 = vst.msk [vmem:[%s491 + $0x153] sm:$0xff] %vm391, %v487
        %521 = vst.msk [vmem:[%s491 + $0x15b] sm:$0xff] %vm391, %v488
        %522 = vst.msk [vmem:[%s491 + $0x16b] sm:$0xff] %vm391, %v489
        %523 = vst.msk [vmem:[%s491 + $0x173] sm:$0xff] %vm391, %v490
      $region64: #{tpu_custom_call.1} parent=59 // pred_fallthru
        _
      %s524 = smul.u32 %s386, 24
      %s525 = scalar_lea.vmem [#allocation2], %s524
      %v526 = vld [vmem:[%s525] sm:$0xff]
      %v527 = vld [vmem:[%s525 + $0x8] sm:$0xff]
      %v528 = vld [vmem:[%s525 + $0x10] sm:$0x3f]
      %v529 = vld [vmem:[%s525 + $0x18] sm:$0xff]
      %v530 = vld [vmem:[%s525 + $0x20] sm:$0xff]
      %v531 = vld [vmem:[%s525 + $0x28] sm:$0x3f]
      %v532 = vld [vmem:[%s525 + $0x30] sm:$0xff]
      %v533 = vld [vmem:[%s525 + $0x38] sm:$0xff]
      %v534 = vld [vmem:[%s525 + $0x40] sm:$0x3f]
      %v535 = vld [vmem:[%s525 + $0x48] sm:$0xff]
      %v536 = vld [vmem:[%s525 + $0x50] sm:$0xff]
      %v537 = vld [vmem:[%s525 + $0x58] sm:$0x3f]
      %v538 = vld [vmem:[%s525 + $0x60] sm:$0xff]
      %v539 = vld [vmem:[%s525 + $0x68] sm:$0xff]
      %v540 = vld [vmem:[%s525 + $0x70] sm:$0x3f]
      %v541 = vld [vmem:[%s525 + $0x78] sm:$0xff]
      %v542 = vld [vmem:[%s525 + $0x80] sm:$0xff]
      %v543 = vld [vmem:[%s525 + $0x88] sm:$0x3f]
      %v544 = vld [vmem:[%s525 + $0x90] sm:$0xff]
      %v545 = vld [vmem:[%s525 + $0x98] sm:$0xff]
      %v546 = vld [vmem:[%s525 + $0xa0] sm:$0x3f]
      %v547 = vld [vmem:[%s525 + $0xa8] sm:$0xff]
      %v548 = vld [vmem:[%s525 + $0xb0] sm:$0xff]
      %v549 = vld [vmem:[%s525 + $0xb8] sm:$0x3f]
      %v550 = vld [vmem:[%s525 + $0xc0] sm:$0xff]
      %v551 = vld [vmem:[%s525 + $0xc8] sm:$0xff]
      %v552 = vld [vmem:[%s525 + $0xd0] sm:$0x3f]
      %v553 = vld [vmem:[%s525 + $0xd8] sm:$0xff]
      %v554 = vld [vmem:[%s525 + $0xe0] sm:$0xff]
      %v555 = vld [vmem:[%s525 + $0xe8] sm:$0x3f]
      %v556 = vld [vmem:[%s525 + $0xf0] sm:$0xff]
      %v557 = vld [vmem:[%s525 + $0xf8] sm:$0xff]
      %v558 = vld [vmem:[%s525 + $0x100] sm:$0x3f]
      %v559 = vld [vmem:[%s525 + $0x108] sm:$0xff]
      %v560 = vld [vmem:[%s525 + $0x110] sm:$0xff]
      %v561 = vld [vmem:[%s525 + $0x118] sm:$0x3f]
      %v562 = vld [vmem:[%s525 + $0x120] sm:$0xff]
      %v563 = vld [vmem:[%s525 + $0x128] sm:$0xff]
      %v564 = vld [vmem:[%s525 + $0x130] sm:$0x3f]
      %v565 = vld [vmem:[%s525 + $0x138] sm:$0xff]
      %v566 = vld [vmem:[%s525 + $0x140] sm:$0xff]
      %v567 = vld [vmem:[%s525 + $0x148] sm:$0x3f]
      %v568 = vld [vmem:[%s1] sm:$0x7f]
      %v569 = vld [vmem:[%s1 + $0x8] sm:$0x7f]
      %v570 = vld [vmem:[%s1 + $0x10] sm:$0x7f]
      %v571 = vld [vmem:[%s1 + $0x18] sm:$0x7f]
      %v572 = vld [vmem:[%s1 + $0x20] sm:$0x7f]
      %v573 = vld [vmem:[%s1 + $0x28] sm:$0x7f]
      %v574 = vld [vmem:[%s1 + $0x30] sm:$0x7f]
      %v575 = vlaneseq
      %v576 = vshrl.u32 %v575, 7
      %v577 = vsub.s32 0, %v576
      %v578 = vrot.slane %v568, %v577
      %v579 = vmul.f32 %v526, %v578
      %v580 = vmul.f32 %v527, %v578
      %v581 = vmul.f32 %v529, %v578
      %v582 = vmul.f32 %v530, %v578
      %v583 = vmul.f32 %v532, %v578
      %v584 = vmul.f32 %v533, %v578
      %v585 = vmul.f32 %v535, %v578
      %v586 = vmul.f32 %v536, %v578
      %v587 = vmul.f32 %v538, %v578
      %v588 = vmul.f32 %v539, %v578
      %v589 = vmul.f32 %v541, %v578
      %v590 = vmul.f32 %v542, %v578
      %v591 = vmul.f32 %v544, %v578
      %v592 = vmul.f32 %v545, %v578
      %v593 = vmul.f32 %v547, %v578
      %v594 = vmul.f32 %v548, %v578
      %v595 = vadd.f32 %v579, 0.0
      %v596 = vadd.f32 %v580, 0.0
      %v597 = vadd.f32 %v581, 0.0
      %v598 = vadd.f32 %v582, 0.0
      %v599 = vadd.f32 %v583, 0.0
      %v600 = vadd.f32 %v584, 0.0
      %v601 = vadd.f32 %v585, 0.0
      %v602 = vadd.f32 %v586, 0.0
      %v603 = vadd.f32 %v587, 0.0
      %v604 = vadd.f32 %v588, 0.0
      %v605 = vadd.f32 %v589, 0.0
      %v606 = vadd.f32 %v590, 0.0
      %v607 = vadd.f32 %v591, 0.0
      %v608 = vadd.f32 %v592, 0.0
      %v609 = vadd.f32 %v593, 0.0
      %v610 = vadd.f32 %v594, 0.0
      %v611 = vlaneseq
      %v612 = vshrl.u32 %v611, 7
      %v613 = vsub.s32 0, %v612
      %v614 = vrot.slane %v569, %v613
      %v615 = vmul.f32 %v529, %v614
      %v616 = vmul.f32 %v530, %v614
      %v617 = vmul.f32 %v532, %v614
      %v618 = vmul.f32 %v533, %v614
      %v619 = vmul.f32 %v535, %v614
      %v620 = vmul.f32 %v536, %v614
      %v621 = vmul.f32 %v538, %v614
      %v622 = vmul.f32 %v539, %v614
      %v623 = vmul.f32 %v541, %v614
      %v624 = vmul.f32 %v542, %v614
      %v625 = vmul.f32 %v544, %v614
      %v626 = vmul.f32 %v545, %v614
      %v627 = vmul.f32 %v547, %v614
      %v628 = vmul.f32 %v548, %v614
      %v629 = vmul.f32 %v550, %v614
      %v630 = vmul.f32 %v551, %v614
      %v631 = vadd.f32 %v595, %v615
      %v632 = vadd.f32 %v596, %v616
      %v633 = vadd.f32 %v597, %v617
      %v634 = vadd.f32 %v598, %v618
      %v635 = vadd.f32 %v599, %v619
      %v636 = vadd.f32 %v600, %v620
      %v637 = vadd.f32 %v601, %v621
      %v638 = vadd.f32 %v602, %v622
      %v639 = vadd.f32 %v603, %v623
      %v640 = vadd.f32 %v604, %v624
      %v641 = vadd.f32 %v605, %v625
      %v642 = vadd.f32 %v606, %v626
      %v643 = vadd.f32 %v607, %v627
      %v644 = vadd.f32 %v608, %v628
      %v645 = vadd.f32 %v609, %v629
      %v646 = vadd.f32 %v610, %v630
      %v647 = vlaneseq
      %v648 = vshrl.u32 %v647, 7
      %v649 = vsub.s32 0, %v648
      %v650 = vrot.slane %v570, %v649
      %v651 = vmul.f32 %v532, %v650
      %v652 = vmul.f32 %v533, %v650
      %v653 = vmul.f32 %v535, %v650
      %v654 = vmul.f32 %v536, %v650
      %v655 = vmul.f32 %v538, %v650
      %v656 = vmul.f32 %v539, %v650
      %v657 = vmul.f32 %v541, %v650
      %v658 = vmul.f32 %v542, %v650
      %v659 = vmul.f32 %v544, %v650
      %v660 = vmul.f32 %v545, %v650
      %v661 = vmul.f32 %v547, %v650
      %v662 = vmul.f32 %v548, %v650
      %v663 = vmul.f32 %v550, %v650
      %v664 = vmul.f32 %v551, %v650
      %v665 = vmul.f32 %v553, %v650
      %v666 = vmul.f32 %v554, %v650
      %v667 = vadd.f32 %v631, %v651
      %v668 = vadd.f32 %v632, %v652
      %v669 = vadd.f32 %v633, %v653
      %v670 = vadd.f32 %v634, %v654
      %v671 = vadd.f32 %v635, %v655
      %v672 = vadd.f32 %v636, %v656
      %v673 = vadd.f32 %v637, %v657
      %v674 = vadd.f32 %v638, %v658
      %v675 = vadd.f32 %v639, %v659
      %v676 = vadd.f32 %v640, %v660
      %v677 = vadd.f32 %v641, %v661
      %v678 = vadd.f32 %v642, %v662
      %v679 = vadd.f32 %v643, %v663
      %v680 = vadd.f32 %v644, %v664
      %v681 = vadd.f32 %v645, %v665
      %v682 = vadd.f32 %v646, %v666
      %v683 = vlaneseq
      %v684 = vshrl.u32 %v683, 7
      %v685 = vsub.s32 0, %v684
      %v686 = vrot.slane %v571, %v685
      %v687 = vmul.f32 %v535, %v686
      %v688 = vmul.f32 %v536, %v686
      %v689 = vmul.f32 %v538, %v686
      %v690 = vmul.f32 %v539, %v686
      %v691 = vmul.f32 %v541, %v686
      %v692 = vmul.f32 %v542, %v686
      %v693 = vmul.f32 %v544, %v686
      %v694 = vmul.f32 %v545, %v686
      %v695 = vmul.f32 %v547, %v686
      %v696 = vmul.f32 %v548, %v686
      %v697 = vmul.f32 %v550, %v686
      %v698 = vmul.f32 %v551, %v686
      %v699 = vmul.f32 %v553, %v686
      %v700 = vmul.f32 %v554, %v686
      %v701 = vmul.f32 %v556, %v686
      %v702 = vmul.f32 %v557, %v686
      %v703 = vadd.f32 %v667, %v687
      %v704 = vadd.f32 %v668, %v688
      %v705 = vadd.f32 %v669, %v689
      %v706 = vadd.f32 %v670, %v690
      %v707 = vadd.f32 %v671, %v691
      %v708 = vadd.f32 %v672, %v692
      %v709 = vadd.f32 %v673, %v693
      %v710 = vadd.f32 %v674, %v694
      %v711 = vadd.f32 %v675, %v695
      %v712 = vadd.f32 %v676, %v696
      %v713 = vadd.f32 %v677, %v697
      %v714 = vadd.f32 %v678, %v698
      %v715 = vadd.f32 %v679, %v699
      %v716 = vadd.f32 %v680, %v700
      %v717 = vadd.f32 %v681, %v701
      %v718 = vadd.f32 %v682, %v702
      %v719 = vlaneseq
      %v720 = vshrl.u32 %v719, 7
      %v721 = vsub.s32 0, %v720
      %v722 = vrot.slane %v572, %v721
      %v723 = vmul.f32 %v538, %v722
      %v724 = vmul.f32 %v539, %v722
      %v725 = vmul.f32 %v541, %v722
      %v726 = vmul.f32 %v542, %v722
      %v727 = vmul.f32 %v544, %v722
      %v728 = vmul.f32 %v545, %v722
      %v729 = vmul.f32 %v547, %v722
      %v730 = vmul.f32 %v548, %v722
      %v731 = vmul.f32 %v550, %v722
      %v732 = vmul.f32 %v551, %v722
      %v733 = vmul.f32 %v553, %v722
      %v734 = vmul.f32 %v554, %v722
      %v735 = vmul.f32 %v556, %v722
      %v736 = vmul.f32 %v557, %v722
      %v737 = vmul.f32 %v559, %v722
      %v738 = vmul.f32 %v560, %v722
      %v739 = vadd.f32 %v703, %v723
      %v740 = vadd.f32 %v704, %v724
      %v741 = vadd.f32 %v705, %v725
      %v742 = vadd.f32 %v706, %v726
      %v743 = vadd.f32 %v707, %v727
      %v744 = vadd.f32 %v708, %v728
      %v745 = vadd.f32 %v709, %v729
      %v746 = vadd.f32 %v710, %v730
      %v747 = vadd.f32 %v711, %v731
      %v748 = vadd.f32 %v712, %v732
      %v749 = vadd.f32 %v713, %v733
      %v750 = vadd.f32 %v714, %v734
      %v751 = vadd.f32 %v715, %v735
      %v752 = vadd.f32 %v716, %v736
      %v753 = vadd.f32 %v717, %v737
      %v754 = vadd.f32 %v718, %v738
      %v755 = vlaneseq
      %v756 = vshrl.u32 %v755, 7
      %v757 = vsub.s32 0, %v756
      %v758 = vrot.slane %v573, %v757
      %v759 = vmul.f32 %v541, %v758
      %v760 = vmul.f32 %v542, %v758
      %v761 = vmul.f32 %v544, %v758
      %v762 = vmul.f32 %v545, %v758
      %v763 = vmul.f32 %v547, %v758
      %v764 = vmul.f32 %v548, %v758
      %v765 = vmul.f32 %v550, %v758
      %v766 = vmul.f32 %v551, %v758
      %v767 = vmul.f32 %v553, %v758
      %v768 = vmul.f32 %v554, %v758
      %v769 = vmul.f32 %v556, %v758
      %v770 = vmul.f32 %v557, %v758
      %v771 = vmul.f32 %v559, %v758
      %v772 = vmul.f32 %v560, %v758
      %v773 = vmul.f32 %v562, %v758
      %v774 = vmul.f32 %v563, %v758
      %v775 = vadd.f32 %v739, %v759
      %v776 = vadd.f32 %v740, %v760
      %v777 = vadd.f32 %v741, %v761
      %v778 = vadd.f32 %v742, %v762
      %v779 = vadd.f32 %v743, %v763
      %v780 = vadd.f32 %v744, %v764
      %v781 = vadd.f32 %v745, %v765
      %v782 = vadd.f32 %v746, %v766
      %v783 = vadd.f32 %v747, %v767
      %v784 = vadd.f32 %v748, %v768
      %v785 = vadd.f32 %v749, %v769
      %v786 = vadd.f32 %v750, %v770
      %v787 = vadd.f32 %v751, %v771
      %v788 = vadd.f32 %v752, %v772
      %v789 = vadd.f32 %v753, %v773
      %v790 = vadd.f32 %v754, %v774
      %v791 = vlaneseq
      %v792 = vshrl.u32 %v791, 7
      %v793 = vsub.s32 0, %v792
      %v794 = vrot.slane %v574, %v793
      %v795 = vmul.f32 %v544, %v794
      %v796 = vmul.f32 %v545, %v794
      %v797 = vmul.f32 %v547, %v794
      %v798 = vmul.f32 %v548, %v794
      %v799 = vmul.f32 %v550, %v794
      %v800 = vmul.f32 %v551, %v794
      %v801 = vmul.f32 %v553, %v794
      %v802 = vmul.f32 %v554, %v794
      %v803 = vmul.f32 %v556, %v794
      %v804 = vmul.f32 %v557, %v794
      %v805 = vmul.f32 %v559, %v794
      %v806 = vmul.f32 %v560, %v794
      %v807 = vmul.f32 %v562, %v794
      %v808 = vmul.f32 %v563, %v794
      %v809 = vmul.f32 %v565, %v794
      %v810 = vmul.f32 %v566, %v794
      %v811 = vadd.f32 %v775, %v795
      %v812 = vadd.f32 %v776, %v796
      %v813 = vadd.f32 %v777, %v797
      %v814 = vadd.f32 %v778, %v798
      %v815 = vadd.f32 %v779, %v799
      %v816 = vadd.f32 %v780, %v800
      %v817 = vadd.f32 %v781, %v801
      %v818 = vadd.f32 %v782, %v802
      %v819 = vadd.f32 %v783, %v803
      %v820 = vadd.f32 %v784, %v804
      %v821 = vadd.f32 %v785, %v805
      %v822 = vadd.f32 %v786, %v806
      %v823 = vadd.f32 %v787, %v807
      %v824 = vadd.f32 %v788, %v808
      %v825 = vadd.f32 %v789, %v809
      %v826 = vadd.f32 %v790, %v810
      %v827 = vlaneseq
      %v828 = vshrl.u32 %v827, 7
      %v829 = vsub.s32 1, %v828
      %v830 = vrot.slane %v568, %v829
      %v831 = vmul.f32 %v526, %v830
      %v832 = vmul.f32 %v527, %v830
      %v833 = vmul.f32 %v528, %v830
      %v834 = vmul.f32 %v529, %v830
      %v835 = vmul.f32 %v530, %v830
      %v836 = vmul.f32 %v531, %v830
      %v837 = vmul.f32 %v532, %v830
      %v838 = vmul.f32 %v533, %v830
      %v839 = vmul.f32 %v534, %v830
      %v840 = vmul.f32 %v535, %v830
      %v841 = vmul.f32 %v536, %v830
      %v842 = vmul.f32 %v537, %v830
      %v843 = vmul.f32 %v538, %v830
      %v844 = vmul.f32 %v539, %v830
      %v845 = vmul.f32 %v540, %v830
      %v846 = vmul.f32 %v541, %v830
      %v847 = vmul.f32 %v542, %v830
      %v848 = vmul.f32 %v543, %v830
      %v849 = vmul.f32 %v544, %v830
      %v850 = vmul.f32 %v545, %v830
      %v851 = vmul.f32 %v546, %v830
      %v852 = vmul.f32 %v547, %v830
      %v853 = vmul.f32 %v548, %v830
      %v854 = vmul.f32 %v549, %v830
      %vm879 = vcmask 1046528
      %v880 = vrot.slane %v831, 1
      %v881 = vrot.slane %v832, 1
      %v882 = vsel %vm879, %v880, %v881
      %v883 = vrot.slane %v833, 1
      %v884 = vsel %vm879, %v881, %v883
      %v885 = vrot.slane %v834, 1
      %v886 = vrot.slane %v835, 1
      %v887 = vsel %vm879, %v885, %v886
      %v888 = vrot.slane %v836, 1
      %v889 = vsel %vm879, %v886, %v888
      %v890 = vrot.slane %v837, 1
      %v891 = vrot.slane %v838, 1
      %v892 = vsel %vm879, %v890, %v891
      %v893 = vrot.slane %v839, 1
      %v894 = vsel %vm879, %v891, %v893
      %v895 = vrot.slane %v840, 1
      %v896 = vrot.slane %v841, 1
      %v897 = vsel %vm879, %v895, %v896
      %v898 = vrot.slane %v842, 1
      %v899 = vsel %vm879, %v896, %v898
      %v900 = vrot.slane %v843, 1
      %v901 = vrot.slane %v844, 1
      %v902 = vsel %vm879, %v900, %v901
      %v903 = vrot.slane %v845, 1
      %v904 = vsel %vm879, %v901, %v903
      %v905 = vrot.slane %v846, 1
      %v906 = vrot.slane %v847, 1
      %v907 = vsel %vm879, %v905, %v906
      %v908 = vrot.slane %v848, 1
      %v909 = vsel %vm879, %v906, %v908
      %v910 = vrot.slane %v849, 1
      %v911 = vrot.slane %v850, 1
      %v912 = vsel %vm879, %v910, %v911
      %v913 = vrot.slane %v851, 1
      %v914 = vsel %vm879, %v911, %v913
      %v915 = vrot.slane %v852, 1
      %v916 = vrot.slane %v853, 1
      %v917 = vsel %vm879, %v915, %v916
      %v918 = vrot.slane %v854, 1
      %v919 = vsel %vm879, %v916, %v918
      %v936 = vadd.f32 %v811, %v882
      %v937 = vadd.f32 %v812, %v884
      %v938 = vadd.f32 %v813, %v887
      %v939 = vadd.f32 %v814, %v889
      %v940 = vadd.f32 %v815, %v892
      %v941 = vadd.f32 %v816, %v894
      %v942 = vadd.f32 %v817, %v897
      %v943 = vadd.f32 %v818, %v899
      %v944 = vadd.f32 %v819, %v902
      %v945 = vadd.f32 %v820, %v904
      %v946 = vadd.f32 %v821, %v907
      %v947 = vadd.f32 %v822, %v909
      %v948 = vadd.f32 %v823, %v912
      %v949 = vadd.f32 %v824, %v914
      %v950 = vadd.f32 %v825, %v917
      %v951 = vadd.f32 %v826, %v919
      %v952 = vlaneseq
      %v953 = vshrl.u32 %v952, 7
      %v954 = vsub.s32 1, %v953
      %v955 = vrot.slane %v569, %v954
      %v956 = vmul.f32 %v529, %v955
      %v957 = vmul.f32 %v530, %v955
      %v958 = vmul.f32 %v531, %v955
      %v959 = vmul.f32 %v532, %v955
      %v960 = vmul.f32 %v533, %v955
      %v961 = vmul.f32 %v534, %v955
      %v962 = vmul.f32 %v535, %v955
      %v963 = vmul.f32 %v536, %v955
      %v964 = vmul.f32 %v537, %v955
      %v965 = vmul.f32 %v538, %v955
      %v966 = vmul.f32 %v539, %v955
      %v967 = vmul.f32 %v540, %v955
      %v968 = vmul.f32 %v541, %v955
      %v969 = vmul.f32 %v542, %v955
      %v970 = vmul.f32 %v543, %v955
      %v971 = vmul.f32 %v544, %v955
      %v972 = vmul.f32 %v545, %v955
      %v973 = vmul.f32 %v546, %v955
      %v974 = vmul.f32 %v547, %v955
      %v975 = vmul.f32 %v548, %v955
      %v976 = vmul.f32 %v549, %v955
      %v977 = vmul.f32 %v550, %v955
      %v978 = vmul.f32 %v551, %v955
      %v979 = vmul.f32 %v552, %v955
      %v1004 = vrot.slane %v956, 1
      %v1005 = vrot.slane %v957, 1
      %v1006 = vsel %vm879, %v1004, %v1005
      %v1007 = vrot.slane %v958, 1
      %v1008 = vsel %vm879, %v1005, %v1007
      %v1009 = vrot.slane %v959, 1
      %v1010 = vrot.slane %v960, 1
      %v1011 = vsel %vm879, %v1009, %v1010
      %v1012 = vrot.slane %v961, 1
      %v1013 = vsel %vm879, %v1010, %v1012
      %v1014 = vrot.slane %v962, 1
      %v1015 = vrot.slane %v963, 1
      %v1016 = vsel %vm879, %v1014, %v1015
      %v1017 = vrot.slane %v964, 1
      %v1018 = vsel %vm879, %v1015, %v1017
      %v1019 = vrot.slane %v965, 1
      %v1020 = vrot.slane %v966, 1
      %v1021 = vsel %vm879, %v1019, %v1020
      %v1022 = vrot.slane %v967, 1
      %v1023 = vsel %vm879, %v1020, %v1022
      %v1024 = vrot.slane %v968, 1
      %v1025 = vrot.slane %v969, 1
      %v1026 = vsel %vm879, %v1024, %v1025
      %v1027 = vrot.slane %v970, 1
      %v1028 = vsel %vm879, %v1025, %v1027
      %v1029 = vrot.slane %v971, 1
      %v1030 = vrot.slane %v972, 1
      %v1031 = vsel %vm879, %v1029, %v1030
      %v1032 = vrot.slane %v973, 1
      %v1033 = vsel %vm879, %v1030, %v1032
      %v1034 = vrot.slane %v974, 1
      %v1035 = vrot.slane %v975, 1
      %v1036 = vsel %vm879, %v1034, %v1035
      %v1037 = vrot.slane %v976, 1
      %v1038 = vsel %vm879, %v1035, %v1037
      %v1039 = vrot.slane %v977, 1
      %v1040 = vrot.slane %v978, 1
      %v1041 = vsel %vm879, %v1039, %v1040
      %v1042 = vrot.slane %v979, 1
      %v1043 = vsel %vm879, %v1040, %v1042
      %v1060 = vadd.f32 %v936, %v1006
      %v1061 = vadd.f32 %v937, %v1008
      %v1062 = vadd.f32 %v938, %v1011
      %v1063 = vadd.f32 %v939, %v1013
      %v1064 = vadd.f32 %v940, %v1016
      %v1065 = vadd.f32 %v941, %v1018
      %v1066 = vadd.f32 %v942, %v1021
      %v1067 = vadd.f32 %v943, %v1023
      %v1068 = vadd.f32 %v944, %v1026
      %v1069 = vadd.f32 %v945, %v1028
      %v1070 = vadd.f32 %v946, %v1031
      %v1071 = vadd.f32 %v947, %v1033
      %v1072 = vadd.f32 %v948, %v1036
      %v1073 = vadd.f32 %v949, %v1038
      %v1074 = vadd.f32 %v950, %v1041
      %v1075 = vadd.f32 %v951, %v1043
      %v1076 = vlaneseq
      %v1077 = vshrl.u32 %v1076, 7
      %v1078 = vsub.s32 1, %v1077
      %v1079 = vrot.slane %v570, %v1078
      %v1080 = vmul.f32 %v532, %v1079
      %v1081 = vmul.f32 %v533, %v1079
      %v1082 = vmul.f32 %v534, %v1079
      %v1083 = vmul.f32 %v535, %v1079
      %v1084 = vmul.f32 %v536, %v1079
      %v1085 = vmul.f32 %v537, %v1079
      %v1086 = vmul.f32 %v538, %v1079
      %v1087 = vmul.f32 %v539, %v1079
      %v1088 = vmul.f32 %v540, %v1079
      %v1089 = vmul.f32 %v541, %v1079
      %v1090 = vmul.f32 %v542, %v1079
      %v1091 = vmul.f32 %v543, %v1079
      %v1092 = vmul.f32 %v544, %v1079
      %v1093 = vmul.f32 %v545, %v1079
      %v1094 = vmul.f32 %v546, %v1079
      %v1095 = vmul.f32 %v547, %v1079
      %v1096 = vmul.f32 %v548, %v1079
      %v1097 = vmul.f32 %v549, %v1079
      %v1098 = vmul.f32 %v550, %v1079
      %v1099 = vmul.f32 %v551, %v1079
      %v1100 = vmul.f32 %v552, %v1079
      %v1101 = vmul.f32 %v553, %v1079
      %v1102 = vmul.f32 %v554, %v1079
      %v1103 = vmul.f32 %v555, %v1079
      %v1128 = vrot.slane %v1080, 1
      %v1129 = vrot.slane %v1081, 1
      %v1130 = vsel %vm879, %v1128, %v1129
      %v1131 = vrot.slane %v1082, 1
      %v1132 = vsel %vm879, %v1129, %v1131
      %v1133 = vrot.slane %v1083, 1
      %v1134 = vrot.slane %v1084, 1
      %v1135 = vsel %vm879, %v1133, %v1134
      %v1136 = vrot.slane %v1085, 1
      %v1137 = vsel %vm879, %v1134, %v1136
      %v1138 = vrot.slane %v1086, 1
      %v1139 = vrot.slane %v1087, 1
      %v1140 = vsel %vm879, %v1138, %v1139
      %v1141 = vrot.slane %v1088, 1
      %v1142 = vsel %vm879, %v1139, %v1141
      %v1143 = vrot.slane %v1089, 1
      %v1144 = vrot.slane %v1090, 1
      %v1145 = vsel %vm879, %v1143, %v1144
      %v1146 = vrot.slane %v1091, 1
      %v1147 = vsel %vm879, %v1144, %v1146
      %v1148 = vrot.slane %v1092, 1
      %v1149 = vrot.slane %v1093, 1
      %v1150 = vsel %vm879, %v1148, %v1149
      %v1151 = vrot.slane %v1094, 1
      %v1152 = vsel %vm879, %v1149, %v1151
      %v1153 = vrot.slane %v1095, 1
      %v1154 = vrot.slane %v1096, 1
      %v1155 = vsel %vm879, %v1153, %v1154
      %v1156 = vrot.slane %v1097, 1
      %v1157 = vsel %vm879, %v1154, %v1156
      %v1158 = vrot.slane %v1098, 1
      %v1159 = vrot.slane %v1099, 1
      %v1160 = vsel %vm879, %v1158, %v1159
      %v1161 = vrot.slane %v1100, 1
      %v1162 = vsel %vm879, %v1159, %v1161
      %v1163 = vrot.slane %v1101, 1
      %v1164 = vrot.slane %v1102, 1
      %v1165 = vsel %vm879, %v1163, %v1164
      %v1166 = vrot.slane %v1103, 1
      %v1167 = vsel %vm879, %v1164, %v1166
      %v1184 = vadd.f32 %v1060, %v1130
      %v1185 = vadd.f32 %v1061, %v1132
      %v1186 = vadd.f32 %v1062, %v1135
      %v1187 = vadd.f32 %v1063, %v1137
      %v1188 = vadd.f32 %v1064, %v1140
      %v1189 = vadd.f32 %v1065, %v1142
      %v1190 = vadd.f32 %v1066, %v1145
      %v1191 = vadd.f32 %v1067, %v1147
      %v1192 = vadd.f32 %v1068, %v1150
      %v1193 = vadd.f32 %v1069, %v1152
      %v1194 = vadd.f32 %v1070, %v1155
      %v1195 = vadd.f32 %v1071, %v1157
      %v1196 = vadd.f32 %v1072, %v1160
      %v1197 = vadd.f32 %v1073, %v1162
      %v1198 = vadd.f32 %v1074, %v1165
      %v1199 = vadd.f32 %v1075, %v1167
      %v1200 = vlaneseq
      %v1201 = vshrl.u32 %v1200, 7
      %v1202 = vsub.s32 1, %v1201
      %v1203 = vrot.slane %v571, %v1202
      %v1204 = vmul.f32 %v535, %v1203
      %v1205 = vmul.f32 %v536, %v1203
      %v1206 = vmul.f32 %v537, %v1203
      %v1207 = vmul.f32 %v538, %v1203
      %v1208 = vmul.f32 %v539, %v1203
      %v1209 = vmul.f32 %v540, %v1203
      %v1210 = vmul.f32 %v541, %v1203
      %v1211 = vmul.f32 %v542, %v1203
      %v1212 = vmul.f32 %v543, %v1203
      %v1213 = vmul.f32 %v544, %v1203
      %v1214 = vmul.f32 %v545, %v1203
      %v1215 = vmul.f32 %v546, %v1203
      %v1216 = vmul.f32 %v547, %v1203
      %v1217 = vmul.f32 %v548, %v1203
      %v1218 = vmul.f32 %v549, %v1203
      %v1219 = vmul.f32 %v550, %v1203
      %v1220 = vmul.f32 %v551, %v1203
      %v1221 = vmul.f32 %v552, %v1203
      %v1222 = vmul.f32 %v553, %v1203
      %v1223 = vmul.f32 %v554, %v1203
      %v1224 = vmul.f32 %v555, %v1203
      %v1225 = vmul.f32 %v556, %v1203
      %v1226 = vmul.f32 %v557, %v1203
      %v1227 = vmul.f32 %v558, %v1203
      %v1252 = vrot.slane %v1204, 1
      %v1253 = vrot.slane %v1205, 1
      %v1254 = vsel %vm879, %v1252, %v1253
      %v1255 = vrot.slane %v1206, 1
      %v1256 = vsel %vm879, %v1253, %v1255
      %v1257 = vrot.slane %v1207, 1
      %v1258 = vrot.slane %v1208, 1
      %v1259 = vsel %vm879, %v1257, %v1258
      %v1260 = vrot.slane %v1209, 1
      %v1261 = vsel %vm879, %v1258, %v1260
      %v1262 = vrot.slane %v1210, 1
      %v1263 = vrot.slane %v1211, 1
      %v1264 = vsel %vm879, %v1262, %v1263
      %v1265 = vrot.slane %v1212, 1
      %v1266 = vsel %vm879, %v1263, %v1265
      %v1267 = vrot.slane %v1213, 1
      %v1268 = vrot.slane %v1214, 1
      %v1269 = vsel %vm879, %v1267, %v1268
      %v1270 = vrot.slane %v1215, 1
      %v1271 = vsel %vm879, %v1268, %v1270
      %v1272 = vrot.slane %v1216, 1
      %v1273 = vrot.slane %v1217, 1
      %v1274 = vsel %vm879, %v1272, %v1273
      %v1275 = vrot.slane %v1218, 1
      %v1276 = vsel %vm879, %v1273, %v1275
      %v1277 = vrot.slane %v1219, 1
      %v1278 = vrot.slane %v1220, 1
      %v1279 = vsel %vm879, %v1277, %v1278
      %v1280 = vrot.slane %v1221, 1
      %v1281 = vsel %vm879, %v1278, %v1280
      %v1282 = vrot.slane %v1222, 1
      %v1283 = vrot.slane %v1223, 1
      %v1284 = vsel %vm879, %v1282, %v1283
      %v1285 = vrot.slane %v1224, 1
      %v1286 = vsel %vm879, %v1283, %v1285
      %v1287 = vrot.slane %v1225, 1
      %v1288 = vrot.slane %v1226, 1
      %v1289 = vsel %vm879, %v1287, %v1288
      %v1290 = vrot.slane %v1227, 1
      %v1291 = vsel %vm879, %v1288, %v1290
      %v1308 = vadd.f32 %v1184, %v1254
      %v1309 = vadd.f32 %v1185, %v1256
      %v1310 = vadd.f32 %v1186, %v1259
      %v1311 = vadd.f32 %v1187, %v1261
      %v1312 = vadd.f32 %v1188, %v1264
      %v1313 = vadd.f32 %v1189, %v1266
      %v1314 = vadd.f32 %v1190, %v1269
      %v1315 = vadd.f32 %v1191, %v1271
      %v1316 = vadd.f32 %v1192, %v1274
      %v1317 = vadd.f32 %v1193, %v1276
      %v1318 = vadd.f32 %v1194, %v1279
      %v1319 = vadd.f32 %v1195, %v1281
      %v1320 = vadd.f32 %v1196, %v1284
      %v1321 = vadd.f32 %v1197, %v1286
      %v1322 = vadd.f32 %v1198, %v1289
      %v1323 = vadd.f32 %v1199, %v1291
      %v1324 = vlaneseq
      %v1325 = vshrl.u32 %v1324, 7
      %v1326 = vsub.s32 1, %v1325
      %v1327 = vrot.slane %v572, %v1326
      %v1328 = vmul.f32 %v538, %v1327
      %v1329 = vmul.f32 %v539, %v1327
      %v1330 = vmul.f32 %v540, %v1327
      %v1331 = vmul.f32 %v541, %v1327
      %v1332 = vmul.f32 %v542, %v1327
      %v1333 = vmul.f32 %v543, %v1327
      %v1334 = vmul.f32 %v544, %v1327
      %v1335 = vmul.f32 %v545, %v1327
      %v1336 = vmul.f32 %v546, %v1327
      %v1337 = vmul.f32 %v547, %v1327
      %v1338 = vmul.f32 %v548, %v1327
      %v1339 = vmul.f32 %v549, %v1327
      %v1340 = vmul.f32 %v550, %v1327
      %v1341 = vmul.f32 %v551, %v1327
      %v1342 = vmul.f32 %v552, %v1327
      %v1343 = vmul.f32 %v553, %v1327
      %v1344 = vmul.f32 %v554, %v1327
      %v1345 = vmul.f32 %v555, %v1327
      %v1346 = vmul.f32 %v556, %v1327
      %v1347 = vmul.f32 %v557, %v1327
      %v1348 = vmul.f32 %v558, %v1327
      %v1349 = vmul.f32 %v559, %v1327
      %v1350 = vmul.f32 %v560, %v1327
      %v1351 = vmul.f32 %v561, %v1327
      %v1376 = vrot.slane %v1328, 1
      %v1377 = vrot.slane %v1329, 1
      %v1378 = vsel %vm879, %v1376, %v1377
      %v1379 = vrot.slane %v1330, 1
      %v1380 = vsel %vm879, %v1377, %v1379
      %v1381 = vrot.slane %v1331, 1
      %v1382 = vrot.slane %v1332, 1
      %v1383 = vsel %vm879, %v1381, %v1382
      %v1384 = vrot.slane %v1333, 1
      %v1385 = vsel %vm879, %v1382, %v1384
      %v1386 = vrot.slane %v1334, 1
      %v1387 = vrot.slane %v1335, 1
      %v1388 = vsel %vm879, %v1386, %v1387
      %v1389 = vrot.slane %v1336, 1
      %v1390 = vsel %vm879, %v1387, %v1389
      %v1391 = vrot.slane %v1337, 1
      %v1392 = vrot.slane %v1338, 1
      %v1393 = vsel %vm879, %v1391, %v1392
      %v1394 = vrot.slane %v1339, 1
      %v1395 = vsel %vm879, %v1392, %v1394
      %v1396 = vrot.slane %v1340, 1
      %v1397 = vrot.slane %v1341, 1
      %v1398 = vsel %vm879, %v1396, %v1397
      %v1399 = vrot.slane %v1342, 1
      %v1400 = vsel %vm879, %v1397, %v1399
      %v1401 = vrot.slane %v1343, 1
      %v1402 = vrot.slane %v1344, 1
      %v1403 = vsel %vm879, %v1401, %v1402
      %v1404 = vrot.slane %v1345, 1
      %v1405 = vsel %vm879, %v1402, %v1404
      %v1406 = vrot.slane %v1346, 1
      %v1407 = vrot.slane %v1347, 1
      %v1408 = vsel %vm879, %v1406, %v1407
      %v1409 = vrot.slane %v1348, 1
      %v1410 = vsel %vm879, %v1407, %v1409
      %v1411 = vrot.slane %v1349, 1
      %v1412 = vrot.slane %v1350, 1
      %v1413 = vsel %vm879, %v1411, %v1412
      %v1414 = vrot.slane %v1351, 1
      %v1415 = vsel %vm879, %v1412, %v1414
      %v1432 = vadd.f32 %v1308, %v1378
      %v1433 = vadd.f32 %v1309, %v1380
      %v1434 = vadd.f32 %v1310, %v1383
      %v1435 = vadd.f32 %v1311, %v1385
      %v1436 = vadd.f32 %v1312, %v1388
      %v1437 = vadd.f32 %v1313, %v1390
      %v1438 = vadd.f32 %v1314, %v1393
      %v1439 = vadd.f32 %v1315, %v1395
      %v1440 = vadd.f32 %v1316, %v1398
      %v1441 = vadd.f32 %v1317, %v1400
      %v1442 = vadd.f32 %v1318, %v1403
      %v1443 = vadd.f32 %v1319, %v1405
      %v1444 = vadd.f32 %v1320, %v1408
      %v1445 = vadd.f32 %v1321, %v1410
      %v1446 = vadd.f32 %v1322, %v1413
      %v1447 = vadd.f32 %v1323, %v1415
      %v1448 = vlaneseq
      %v1449 = vshrl.u32 %v1448, 7
      %v1450 = vsub.s32 1, %v1449
      %v1451 = vrot.slane %v573, %v1450
      %v1452 = vmul.f32 %v541, %v1451
      %v1453 = vmul.f32 %v542, %v1451
      %v1454 = vmul.f32 %v543, %v1451
      %v1455 = vmul.f32 %v544, %v1451
      %v1456 = vmul.f32 %v545, %v1451
      %v1457 = vmul.f32 %v546, %v1451
      %v1458 = vmul.f32 %v547, %v1451
      %v1459 = vmul.f32 %v548, %v1451
      %v1460 = vmul.f32 %v549, %v1451
      %v1461 = vmul.f32 %v550, %v1451
      %v1462 = vmul.f32 %v551, %v1451
      %v1463 = vmul.f32 %v552, %v1451
      %v1464 = vmul.f32 %v553, %v1451
      %v1465 = vmul.f32 %v554, %v1451
      %v1466 = vmul.f32 %v555, %v1451
      %v1467 = vmul.f32 %v556, %v1451
      %v1468 = vmul.f32 %v557, %v1451
      %v1469 = vmul.f32 %v558, %v1451
      %v1470 = vmul.f32 %v559, %v1451
      %v1471 = vmul.f32 %v560, %v1451
      %v1472 = vmul.f32 %v561, %v1451
      %v1473 = vmul.f32 %v562, %v1451
      %v1474 = vmul.f32 %v563, %v1451
      %v1475 = vmul.f32 %v564, %v1451
      %v1500 = vrot.slane %v1452, 1
      %v1501 = vrot.slane %v1453, 1
      %v1502 = vsel %vm879, %v1500, %v1501
      %v1503 = vrot.slane %v1454, 1
      %v1504 = vsel %vm879, %v1501, %v1503
      %v1505 = vrot.slane %v1455, 1
      %v1506 = vrot.slane %v1456, 1
      %v1507 = vsel %vm879, %v1505, %v1506
      %v1508 = vrot.slane %v1457, 1
      %v1509 = vsel %vm879, %v1506, %v1508
      %v1510 = vrot.slane %v1458, 1
      %v1511 = vrot.slane %v1459, 1
      %v1512 = vsel %vm879, %v1510, %v1511
      %v1513 = vrot.slane %v1460, 1
      %v1514 = vsel %vm879, %v1511, %v1513
      %v1515 = vrot.slane %v1461, 1
      %v1516 = vrot.slane %v1462, 1
      %v1517 = vsel %vm879, %v1515, %v1516
      %v1518 = vrot.slane %v1463, 1
      %v1519 = vsel %vm879, %v1516, %v1518
      %v1520 = vrot.slane %v1464, 1
      %v1521 = vrot.slane %v1465, 1
      %v1522 = vsel %vm879, %v1520, %v1521
      %v1523 = vrot.slane %v1466, 1
      %v1524 = vsel %vm879, %v1521, %v1523
      %v1525 = vrot.slane %v1467, 1
      %v1526 = vrot.slane %v1468, 1
      %v1527 = vsel %vm879, %v1525, %v1526
      %v1528 = vrot.slane %v1469, 1
      %v1529 = vsel %vm879, %v1526, %v1528
      %v1530 = vrot.slane %v1470, 1
      %v1531 = vrot.slane %v1471, 1
      %v1532 = vsel %vm879, %v1530, %v1531
      %v1533 = vrot.slane %v1472, 1
      %v1534 = vsel %vm879, %v1531, %v1533
      %v1535 = vrot.slane %v1473, 1
      %v1536 = vrot.slane %v1474, 1
      %v1537 = vsel %vm879, %v1535, %v1536
      %v1538 = vrot.slane %v1475, 1
      %v1539 = vsel %vm879, %v1536, %v1538
      %v1556 = vadd.f32 %v1432, %v1502
      %v1557 = vadd.f32 %v1433, %v1504
      %v1558 = vadd.f32 %v1434, %v1507
      %v1559 = vadd.f32 %v1435, %v1509
      %v1560 = vadd.f32 %v1436, %v1512
      %v1561 = vadd.f32 %v1437, %v1514
      %v1562 = vadd.f32 %v1438, %v1517
      %v1563 = vadd.f32 %v1439, %v1519
      %v1564 = vadd.f32 %v1440, %v1522
      %v1565 = vadd.f32 %v1441, %v1524
      %v1566 = vadd.f32 %v1442, %v1527
      %v1567 = vadd.f32 %v1443, %v1529
      %v1568 = vadd.f32 %v1444, %v1532
      %v1569 = vadd.f32 %v1445, %v1534
      %v1570 = vadd.f32 %v1446, %v1537
      %v1571 = vadd.f32 %v1447, %v1539
      %v1572 = vlaneseq
      %v1573 = vshrl.u32 %v1572, 7
      %v1574 = vsub.s32 1, %v1573
      %v1575 = vrot.slane %v574, %v1574
      %v1576 = vmul.f32 %v544, %v1575
      %v1577 = vmul.f32 %v545, %v1575
      %v1578 = vmul.f32 %v546, %v1575
      %v1579 = vmul.f32 %v547, %v1575
      %v1580 = vmul.f32 %v548, %v1575
      %v1581 = vmul.f32 %v549, %v1575
      %v1582 = vmul.f32 %v550, %v1575
      %v1583 = vmul.f32 %v551, %v1575
      %v1584 = vmul.f32 %v552, %v1575
      %v1585 = vmul.f32 %v553, %v1575
      %v1586 = vmul.f32 %v554, %v1575
      %v1587 = vmul.f32 %v555, %v1575
      %v1588 = vmul.f32 %v556, %v1575
      %v1589 = vmul.f32 %v557, %v1575
      %v1590 = vmul.f32 %v558, %v1575
      %v1591 = vmul.f32 %v559, %v1575
      %v1592 = vmul.f32 %v560, %v1575
      %v1593 = vmul.f32 %v561, %v1575
      %v1594 = vmul.f32 %v562, %v1575
      %v1595 = vmul.f32 %v563, %v1575
      %v1596 = vmul.f32 %v564, %v1575
      %v1597 = vmul.f32 %v565, %v1575
      %v1598 = vmul.f32 %v566, %v1575
      %v1599 = vmul.f32 %v567, %v1575
      %v1624 = vrot.slane %v1576, 1
      %v1625 = vrot.slane %v1577, 1
      %v1626 = vsel %vm879, %v1624, %v1625
      %v1627 = vrot.slane %v1578, 1
      %v1628 = vsel %vm879, %v1625, %v1627
      %v1629 = vrot.slane %v1579, 1
      %v1630 = vrot.slane %v1580, 1
      %v1631 = vsel %vm879, %v1629, %v1630
      %v1632 = vrot.slane %v1581, 1
      %v1633 = vsel %vm879, %v1630, %v1632
      %v1634 = vrot.slane %v1582, 1
      %v1635 = vrot.slane %v1583, 1
      %v1636 = vsel %vm879, %v1634, %v1635
      %v1637 = vrot.slane %v1584, 1
      %v1638 = vsel %vm879, %v1635, %v1637
      %v1639 = vrot.slane %v1585, 1
      %v1640 = vrot.slane %v1586, 1
      %v1641 = vsel %vm879, %v1639, %v1640
      %v1642 = vrot.slane %v1587, 1
      %v1643 = vsel %vm879, %v1640, %v1642
      %v1644 = vrot.slane %v1588, 1
      %v1645 = vrot.slane %v1589, 1
      %v1646 = vsel %vm879, %v1644, %v1645
      %v1647 = vrot.slane %v1590, 1
      %v1648 = vsel %vm879, %v1645, %v1647
      %v1649 = vrot.slane %v1591, 1
      %v1650 = vrot.slane %v1592, 1
      %v1651 = vsel %vm879, %v1649, %v1650
      %v1652 = vrot.slane %v1593, 1
      %v1653 = vsel %vm879, %v1650, %v1652
      %v1654 = vrot.slane %v1594, 1
      %v1655 = vrot.slane %v1595, 1
      %v1656 = vsel %vm879, %v1654, %v1655
      %v1657 = vrot.slane %v1596, 1
      %v1658 = vsel %vm879, %v1655, %v1657
      %v1659 = vrot.slane %v1597, 1
      %v1660 = vrot.slane %v1598, 1
      %v1661 = vsel %vm879, %v1659, %v1660
      %v1662 = vrot.slane %v1599, 1
      %v1663 = vsel %vm879, %v1660, %v1662
      %v1680 = vadd.f32 %v1556, %v1626
      %v1681 = vadd.f32 %v1557, %v1628
      %v1682 = vadd.f32 %v1558, %v1631
      %v1683 = vadd.f32 %v1559, %v1633
      %v1684 = vadd.f32 %v1560, %v1636
      %v1685 = vadd.f32 %v1561, %v1638
      %v1686 = vadd.f32 %v1562, %v1641
      %v1687 = vadd.f32 %v1563, %v1643
      %v1688 = vadd.f32 %v1564, %v1646
      %v1689 = vadd.f32 %v1565, %v1648
      %v1690 = vadd.f32 %v1566, %v1651
      %v1691 = vadd.f32 %v1567, %v1653
      %v1692 = vadd.f32 %v1568, %v1656
      %v1693 = vadd.f32 %v1569, %v1658
      %v1694 = vadd.f32 %v1570, %v1661
      %v1695 = vadd.f32 %v1571, %v1663
      %v1696 = vlaneseq
      %v1697 = vshrl.u32 %v1696, 7
      %v1698 = vsub.s32 2, %v1697
      %v1699 = vrot.slane %v568, %v1698
      %v1700 = vmul.f32 %v526, %v1699
      %v1701 = vmul.f32 %v527, %v1699
      %v1702 = vmul.f32 %v528, %v1699
      %v1703 = vmul.f32 %v529, %v1699
      %v1704 = vmul.f32 %v530, %v1699
      %v1705 = vmul.f32 %v531, %v1699
      %v1706 = vmul.f32 %v532, %v1699
      %v1707 = vmul.f32 %v533, %v1699
      %v1708 = vmul.f32 %v534, %v1699
      %v1709 = vmul.f32 %v535, %v1699
      %v1710 = vmul.f32 %v536, %v1699
      %v1711 = vmul.f32 %v537, %v1699
      %v1712 = vmul.f32 %v538, %v1699
      %v1713 = vmul.f32 %v539, %v1699
      %v1714 = vmul.f32 %v540, %v1699
      %v1715 = vmul.f32 %v541, %v1699
      %v1716 = vmul.f32 %v542, %v1699
      %v1717 = vmul.f32 %v543, %v1699
      %v1718 = vmul.f32 %v544, %v1699
      %v1719 = vmul.f32 %v545, %v1699
      %v1720 = vmul.f32 %v546, %v1699
      %v1721 = vmul.f32 %v547, %v1699
      %v1722 = vmul.f32 %v548, %v1699
      %v1723 = vmul.f32 %v549, %v1699
      %vm1748 = vcmask 1045504
      %v1749 = vrot.slane %v1700, 2
      %v1750 = vrot.slane %v1701, 2
      %v1751 = vsel %vm1748, %v1749, %v1750
      %v1752 = vrot.slane %v1702, 2
      %v1753 = vsel %vm1748, %v1750, %v1752
      %v1754 = vrot.slane %v1703, 2
      %v1755 = vrot.slane %v1704, 2
      %v1756 = vsel %vm1748, %v1754, %v1755
      %v1757 = vrot.slane %v1705, 2
      %v1758 = vsel %vm1748, %v1755, %v1757
      %v1759 = vrot.slane %v1706, 2
      %v1760 = vrot.slane %v1707, 2
      %v1761 = vsel %vm1748, %v1759, %v1760
      %v1762 = vrot.slane %v1708, 2
      %v1763 = vsel %vm1748, %v1760, %v1762
      %v1764 = vrot.slane %v1709, 2
      %v1765 = vrot.slane %v1710, 2
      %v1766 = vsel %vm1748, %v1764, %v1765
      %v1767 = vrot.slane %v1711, 2
      %v1768 = vsel %vm1748, %v1765, %v1767
      %v1769 = vrot.slane %v1712, 2
      %v1770 = vrot.slane %v1713, 2
      %v1771 = vsel %vm1748, %v1769, %v1770
      %v1772 = vrot.slane %v1714, 2
      %v1773 = vsel %vm1748, %v1770, %v1772
      %v1774 = vrot.slane %v1715, 2
      %v1775 = vrot.slane %v1716, 2
      %v1776 = vsel %vm1748, %v1774, %v1775
      %v1777 = vrot.slane %v1717, 2
      %v1778 = vsel %vm1748, %v1775, %v1777
      %v1779 = vrot.slane %v1718, 2
      %v1780 = vrot.slane %v1719, 2
      %v1781 = vsel %vm1748, %v1779, %v1780
      %v1782 = vrot.slane %v1720, 2
      %v1783 = vsel %vm1748, %v1780, %v1782
      %v1784 = vrot.slane %v1721, 2
      %v1785 = vrot.slane %v1722, 2
      %v1786 = vsel %vm1748, %v1784, %v1785
      %v1787 = vrot.slane %v1723, 2
      %v1788 = vsel %vm1748, %v1785, %v1787
      %v1805 = vadd.f32 %v1680, %v1751
      %v1806 = vadd.f32 %v1681, %v1753
      %v1807 = vadd.f32 %v1682, %v1756
      %v1808 = vadd.f32 %v1683, %v1758
      %v1809 = vadd.f32 %v1684, %v1761
      %v1810 = vadd.f32 %v1685, %v1763
      %v1811 = vadd.f32 %v1686, %v1766
      %v1812 = vadd.f32 %v1687, %v1768
      %v1813 = vadd.f32 %v1688, %v1771
      %v1814 = vadd.f32 %v1689, %v1773
      %v1815 = vadd.f32 %v1690, %v1776
      %v1816 = vadd.f32 %v1691, %v1778
      %v1817 = vadd.f32 %v1692, %v1781
      %v1818 = vadd.f32 %v1693, %v1783
      %v1819 = vadd.f32 %v1694, %v1786
      %v1820 = vadd.f32 %v1695, %v1788
      %v1821 = vlaneseq
      %v1822 = vshrl.u32 %v1821, 7
      %v1823 = vsub.s32 2, %v1822
      %v1824 = vrot.slane %v569, %v1823
      %v1825 = vmul.f32 %v529, %v1824
      %v1826 = vmul.f32 %v530, %v1824
      %v1827 = vmul.f32 %v531, %v1824
      %v1828 = vmul.f32 %v532, %v1824
      %v1829 = vmul.f32 %v533, %v1824
      %v1830 = vmul.f32 %v534, %v1824
      %v1831 = vmul.f32 %v535, %v1824
      %v1832 = vmul.f32 %v536, %v1824
      %v1833 = vmul.f32 %v537, %v1824
      %v1834 = vmul.f32 %v538, %v1824
      %v1835 = vmul.f32 %v539, %v1824
      %v1836 = vmul.f32 %v540, %v1824
      %v1837 = vmul.f32 %v541, %v1824
      %v1838 = vmul.f32 %v542, %v1824
      %v1839 = vmul.f32 %v543, %v1824
      %v1840 = vmul.f32 %v544, %v1824
      %v1841 = vmul.f32 %v545, %v1824
      %v1842 = vmul.f32 %v546, %v1824
      %v1843 = vmul.f32 %v547, %v1824
      %v1844 = vmul.f32 %v548, %v1824
      %v1845 = vmul.f32 %v549, %v1824
      %v1846 = vmul.f32 %v550, %v1824
      %v1847 = vmul.f32 %v551, %v1824
      %v1848 = vmul.f32 %v552, %v1824
      %v1873 = vrot.slane %v1825, 2
      %v1874 = vrot.slane %v1826, 2
      %v1875 = vsel %vm1748, %v1873, %v1874
      %v1876 = vrot.slane %v1827, 2
      %v1877 = vsel %vm1748, %v1874, %v1876
      %v1878 = vrot.slane %v1828, 2
      %v1879 = vrot.slane %v1829, 2
      %v1880 = vsel %vm1748, %v1878, %v1879
      %v1881 = vrot.slane %v1830, 2
      %v1882 = vsel %vm1748, %v1879, %v1881
      %v1883 = vrot.slane %v1831, 2
      %v1884 = vrot.slane %v1832, 2
      %v1885 = vsel %vm1748, %v1883, %v1884
      %v1886 = vrot.slane %v1833, 2
      %v1887 = vsel %vm1748, %v1884, %v1886
      %v1888 = vrot.slane %v1834, 2
      %v1889 = vrot.slane %v1835, 2
      %v1890 = vsel %vm1748, %v1888, %v1889
      %v1891 = vrot.slane %v1836, 2
      %v1892 = vsel %vm1748, %v1889, %v1891
      %v1893 = vrot.slane %v1837, 2
      %v1894 = vrot.slane %v1838, 2
      %v1895 = vsel %vm1748, %v1893, %v1894
      %v1896 = vrot.slane %v1839, 2
      %v1897 = vsel %vm1748, %v1894, %v1896
      %v1898 = vrot.slane %v1840, 2
      %v1899 = vrot.slane %v1841, 2
      %v1900 = vsel %vm1748, %v1898, %v1899
      %v1901 = vrot.slane %v1842, 2
      %v1902 = vsel %vm1748, %v1899, %v1901
      %v1903 = vrot.slane %v1843, 2
      %v1904 = vrot.slane %v1844, 2
      %v1905 = vsel %vm1748, %v1903, %v1904
      %v1906 = vrot.slane %v1845, 2
      %v1907 = vsel %vm1748, %v1904, %v1906
      %v1908 = vrot.slane %v1846, 2
      %v1909 = vrot.slane %v1847, 2
      %v1910 = vsel %vm1748, %v1908, %v1909
      %v1911 = vrot.slane %v1848, 2
      %v1912 = vsel %vm1748, %v1909, %v1911
      %v1929 = vadd.f32 %v1805, %v1875
      %v1930 = vadd.f32 %v1806, %v1877
      %v1931 = vadd.f32 %v1807, %v1880
      %v1932 = vadd.f32 %v1808, %v1882
      %v1933 = vadd.f32 %v1809, %v1885
      %v1934 = vadd.f32 %v1810, %v1887
      %v1935 = vadd.f32 %v1811, %v1890
      %v1936 = vadd.f32 %v1812, %v1892
      %v1937 = vadd.f32 %v1813, %v1895
      %v1938 = vadd.f32 %v1814, %v1897
      %v1939 = vadd.f32 %v1815, %v1900
      %v1940 = vadd.f32 %v1816, %v1902
      %v1941 = vadd.f32 %v1817, %v1905
      %v1942 = vadd.f32 %v1818, %v1907
      %v1943 = vadd.f32 %v1819, %v1910
      %v1944 = vadd.f32 %v1820, %v1912
      %v1945 = vlaneseq
      %v1946 = vshrl.u32 %v1945, 7
      %v1947 = vsub.s32 2, %v1946
      %v1948 = vrot.slane %v570, %v1947
      %v1949 = vmul.f32 %v532, %v1948
      %v1950 = vmul.f32 %v533, %v1948
      %v1951 = vmul.f32 %v534, %v1948
      %v1952 = vmul.f32 %v535, %v1948
      %v1953 = vmul.f32 %v536, %v1948
      %v1954 = vmul.f32 %v537, %v1948
      %v1955 = vmul.f32 %v538, %v1948
      %v1956 = vmul.f32 %v539, %v1948
      %v1957 = vmul.f32 %v540, %v1948
      %v1958 = vmul.f32 %v541, %v1948
      %v1959 = vmul.f32 %v542, %v1948
      %v1960 = vmul.f32 %v543, %v1948
      %v1961 = vmul.f32 %v544, %v1948
      %v1962 = vmul.f32 %v545, %v1948
      %v1963 = vmul.f32 %v546, %v1948
      %v1964 = vmul.f32 %v547, %v1948
      %v1965 = vmul.f32 %v548, %v1948
      %v1966 = vmul.f32 %v549, %v1948
      %v1967 = vmul.f32 %v550, %v1948
      %v1968 = vmul.f32 %v551, %v1948
      %v1969 = vmul.f32 %v552, %v1948
      %v1970 = vmul.f32 %v553, %v1948
      %v1971 = vmul.f32 %v554, %v1948
      %v1972 = vmul.f32 %v555, %v1948
      %v1997 = vrot.slane %v1949, 2
      %v1998 = vrot.slane %v1950, 2
      %v1999 = vsel %vm1748, %v1997, %v1998
      %v2000 = vrot.slane %v1951, 2
      %v2001 = vsel %vm1748, %v1998, %v2000
      %v2002 = vrot.slane %v1952, 2
      %v2003 = vrot.slane %v1953, 2
      %v2004 = vsel %vm1748, %v2002, %v2003
      %v2005 = vrot.slane %v1954, 2
      %v2006 = vsel %vm1748, %v2003, %v2005
      %v2007 = vrot.slane %v1955, 2
      %v2008 = vrot.slane %v1956, 2
      %v2009 = vsel %vm1748, %v2007, %v2008
      %v2010 = vrot.slane %v1957, 2
      %v2011 = vsel %vm1748, %v2008, %v2010
      %v2012 = vrot.slane %v1958, 2
      %v2013 = vrot.slane %v1959, 2
      %v2014 = vsel %vm1748, %v2012, %v2013
      %v2015 = vrot.slane %v1960, 2
      %v2016 = vsel %vm1748, %v2013, %v2015
      %v2017 = vrot.slane %v1961, 2
      %v2018 = vrot.slane %v1962, 2
      %v2019 = vsel %vm1748, %v2017, %v2018
      %v2020 = vrot.slane %v1963, 2
      %v2021 = vsel %vm1748, %v2018, %v2020
      %v2022 = vrot.slane %v1964, 2
      %v2023 = vrot.slane %v1965, 2
      %v2024 = vsel %vm1748, %v2022, %v2023
      %v2025 = vrot.slane %v1966, 2
      %v2026 = vsel %vm1748, %v2023, %v2025
      %v2027 = vrot.slane %v1967, 2
      %v2028 = vrot.slane %v1968, 2
      %v2029 = vsel %vm1748, %v2027, %v2028
      %v2030 = vrot.slane %v1969, 2
      %v2031 = vsel %vm1748, %v2028, %v2030
      %v2032 = vrot.slane %v1970, 2
      %v2033 = vrot.slane %v1971, 2
      %v2034 = vsel %vm1748, %v2032, %v2033
      %v2035 = vrot.slane %v1972, 2
      %v2036 = vsel %vm1748, %v2033, %v2035
      %v2053 = vadd.f32 %v1929, %v1999
      %v2054 = vadd.f32 %v1930, %v2001
      %v2055 = vadd.f32 %v1931, %v2004
      %v2056 = vadd.f32 %v1932, %v2006
      %v2057 = vadd.f32 %v1933, %v2009
      %v2058 = vadd.f32 %v1934, %v2011
      %v2059 = vadd.f32 %v1935, %v2014
      %v2060 = vadd.f32 %v1936, %v2016
      %v2061 = vadd.f32 %v1937, %v2019
      %v2062 = vadd.f32 %v1938, %v2021
      %v2063 = vadd.f32 %v1939, %v2024
      %v2064 = vadd.f32 %v1940, %v2026
      %v2065 = vadd.f32 %v1941, %v2029
      %v2066 = vadd.f32 %v1942, %v2031
      %v2067 = vadd.f32 %v1943, %v2034
      %v2068 = vadd.f32 %v1944, %v2036
      %v2069 = vlaneseq
      %v2070 = vshrl.u32 %v2069, 7
      %v2071 = vsub.s32 2, %v2070
      %v2072 = vrot.slane %v571, %v2071
      %v2073 = vmul.f32 %v535, %v2072
      %v2074 = vmul.f32 %v536, %v2072
      %v2075 = vmul.f32 %v537, %v2072
      %v2076 = vmul.f32 %v538, %v2072
      %v2077 = vmul.f32 %v539, %v2072
      %v2078 = vmul.f32 %v540, %v2072
      %v2079 = vmul.f32 %v541, %v2072
      %v2080 = vmul.f32 %v542, %v2072
      %v2081 = vmul.f32 %v543, %v2072
      %v2082 = vmul.f32 %v544, %v2072
      %v2083 = vmul.f32 %v545, %v2072
      %v2084 = vmul.f32 %v546, %v2072
      %v2085 = vmul.f32 %v547, %v2072
      %v2086 = vmul.f32 %v548, %v2072
      %v2087 = vmul.f32 %v549, %v2072
      %v2088 = vmul.f32 %v550, %v2072
      %v2089 = vmul.f32 %v551, %v2072
      %v2090 = vmul.f32 %v552, %v2072
      %v2091 = vmul.f32 %v553, %v2072
      %v2092 = vmul.f32 %v554, %v2072
      %v2093 = vmul.f32 %v555, %v2072
      %v2094 = vmul.f32 %v556, %v2072
      %v2095 = vmul.f32 %v557, %v2072
      %v2096 = vmul.f32 %v558, %v2072
      %v2121 = vrot.slane %v2073, 2
      %v2122 = vrot.slane %v2074, 2
      %v2123 = vsel %vm1748, %v2121, %v2122
      %v2124 = vrot.slane %v2075, 2
      %v2125 = vsel %vm1748, %v2122, %v2124
      %v2126 = vrot.slane %v2076, 2
      %v2127 = vrot.slane %v2077, 2
      %v2128 = vsel %vm1748, %v2126, %v2127
      %v2129 = vrot.slane %v2078, 2
      %v2130 = vsel %vm1748, %v2127, %v2129
      %v2131 = vrot.slane %v2079, 2
      %v2132 = vrot.slane %v2080, 2
      %v2133 = vsel %vm1748, %v2131, %v2132
      %v2134 = vrot.slane %v2081, 2
      %v2135 = vsel %vm1748, %v2132, %v2134
      %v2136 = vrot.slane %v2082, 2
      %v2137 = vrot.slane %v2083, 2
      %v2138 = vsel %vm1748, %v2136, %v2137
      %v2139 = vrot.slane %v2084, 2
      %v2140 = vsel %vm1748, %v2137, %v2139
      %v2141 = vrot.slane %v2085, 2
      %v2142 = vrot.slane %v2086, 2
      %v2143 = vsel %vm1748, %v2141, %v2142
      %v2144 = vrot.slane %v2087, 2
      %v2145 = vsel %vm1748, %v2142, %v2144
      %v2146 = vrot.slane %v2088, 2
      %v2147 = vrot.slane %v2089, 2
      %v2148 = vsel %vm1748, %v2146, %v2147
      %v2149 = vrot.slane %v2090, 2
      %v2150 = vsel %vm1748, %v2147, %v2149
      %v2151 = vrot.slane %v2091, 2
      %v2152 = vrot.slane %v2092, 2
      %v2153 = vsel %vm1748, %v2151, %v2152
      %v2154 = vrot.slane %v2093, 2
      %v2155 = vsel %vm1748, %v2152, %v2154
      %v2156 = vrot.slane %v2094, 2
      %v2157 = vrot.slane %v2095, 2
      %v2158 = vsel %vm1748, %v2156, %v2157
      %v2159 = vrot.slane %v2096, 2
      %v2160 = vsel %vm1748, %v2157, %v2159
      %v2177 = vadd.f32 %v2053, %v2123
      %v2178 = vadd.f32 %v2054, %v2125
      %v2179 = vadd.f32 %v2055, %v2128
      %v2180 = vadd.f32 %v2056, %v2130
      %v2181 = vadd.f32 %v2057, %v2133
      %v2182 = vadd.f32 %v2058, %v2135
      %v2183 = vadd.f32 %v2059, %v2138
      %v2184 = vadd.f32 %v2060, %v2140
      %v2185 = vadd.f32 %v2061, %v2143
      %v2186 = vadd.f32 %v2062, %v2145
      %v2187 = vadd.f32 %v2063, %v2148
      %v2188 = vadd.f32 %v2064, %v2150
      %v2189 = vadd.f32 %v2065, %v2153
      %v2190 = vadd.f32 %v2066, %v2155
      %v2191 = vadd.f32 %v2067, %v2158
      %v2192 = vadd.f32 %v2068, %v2160
      %v2193 = vlaneseq
      %v2194 = vshrl.u32 %v2193, 7
      %v2195 = vsub.s32 2, %v2194
      %v2196 = vrot.slane %v572, %v2195
      %v2197 = vmul.f32 %v538, %v2196
      %v2198 = vmul.f32 %v539, %v2196
      %v2199 = vmul.f32 %v540, %v2196
      %v2200 = vmul.f32 %v541, %v2196
      %v2201 = vmul.f32 %v542, %v2196
      %v2202 = vmul.f32 %v543, %v2196
      %v2203 = vmul.f32 %v544, %v2196
      %v2204 = vmul.f32 %v545, %v2196
      %v2205 = vmul.f32 %v546, %v2196
      %v2206 = vmul.f32 %v547, %v2196
      %v2207 = vmul.f32 %v548, %v2196
      %v2208 = vmul.f32 %v549, %v2196
      %v2209 = vmul.f32 %v550, %v2196
      %v2210 = vmul.f32 %v551, %v2196
      %v2211 = vmul.f32 %v552, %v2196
      %v2212 = vmul.f32 %v553, %v2196
      %v2213 = vmul.f32 %v554, %v2196
      %v2214 = vmul.f32 %v555, %v2196
      %v2215 = vmul.f32 %v556, %v2196
      %v2216 = vmul.f32 %v557, %v2196
      %v2217 = vmul.f32 %v558, %v2196
      %v2218 = vmul.f32 %v559, %v2196
      %v2219 = vmul.f32 %v560, %v2196
      %v2220 = vmul.f32 %v561, %v2196
      %v2245 = vrot.slane %v2197, 2
      %v2246 = vrot.slane %v2198, 2
      %v2247 = vsel %vm1748, %v2245, %v2246
      %v2248 = vrot.slane %v2199, 2
      %v2249 = vsel %vm1748, %v2246, %v2248
      %v2250 = vrot.slane %v2200, 2
      %v2251 = vrot.slane %v2201, 2
      %v2252 = vsel %vm1748, %v2250, %v2251
      %v2253 = vrot.slane %v2202, 2
      %v2254 = vsel %vm1748, %v2251, %v2253
      %v2255 = vrot.slane %v2203, 2
      %v2256 = vrot.slane %v2204, 2
      %v2257 = vsel %vm1748, %v2255, %v2256
      %v2258 = vrot.slane %v2205, 2
      %v2259 = vsel %vm1748, %v2256, %v2258
      %v2260 = vrot.slane %v2206, 2
      %v2261 = vrot.slane %v2207, 2
      %v2262 = vsel %vm1748, %v2260, %v2261
      %v2263 = vrot.slane %v2208, 2
      %v2264 = vsel %vm1748, %v2261, %v2263
      %v2265 = vrot.slane %v2209, 2
      %v2266 = vrot.slane %v2210, 2
      %v2267 = vsel %vm1748, %v2265, %v2266
      %v2268 = vrot.slane %v2211, 2
      %v2269 = vsel %vm1748, %v2266, %v2268
      %v2270 = vrot.slane %v2212, 2
      %v2271 = vrot.slane %v2213, 2
      %v2272 = vsel %vm1748, %v2270, %v2271
      %v2273 = vrot.slane %v2214, 2
      %v2274 = vsel %vm1748, %v2271, %v2273
      %v2275 = vrot.slane %v2215, 2
      %v2276 = vrot.slane %v2216, 2
      %v2277 = vsel %vm1748, %v2275, %v2276
      %v2278 = vrot.slane %v2217, 2
      %v2279 = vsel %vm1748, %v2276, %v2278
      %v2280 = vrot.slane %v2218, 2
      %v2281 = vrot.slane %v2219, 2
      %v2282 = vsel %vm1748, %v2280, %v2281
      %v2283 = vrot.slane %v2220, 2
      %v2284 = vsel %vm1748, %v2281, %v2283
      %v2301 = vadd.f32 %v2177, %v2247
      %v2302 = vadd.f32 %v2178, %v2249
      %v2303 = vadd.f32 %v2179, %v2252
      %v2304 = vadd.f32 %v2180, %v2254
      %v2305 = vadd.f32 %v2181, %v2257
      %v2306 = vadd.f32 %v2182, %v2259
      %v2307 = vadd.f32 %v2183, %v2262
      %v2308 = vadd.f32 %v2184, %v2264
      %v2309 = vadd.f32 %v2185, %v2267
      %v2310 = vadd.f32 %v2186, %v2269
      %v2311 = vadd.f32 %v2187, %v2272
      %v2312 = vadd.f32 %v2188, %v2274
      %v2313 = vadd.f32 %v2189, %v2277
      %v2314 = vadd.f32 %v2190, %v2279
      %v2315 = vadd.f32 %v2191, %v2282
      %v2316 = vadd.f32 %v2192, %v2284
      %v2317 = vlaneseq
      %v2318 = vshrl.u32 %v2317, 7
      %v2319 = vsub.s32 2, %v2318
      %v2320 = vrot.slane %v573, %v2319
      %v2321 = vmul.f32 %v541, %v2320
      %v2322 = vmul.f32 %v542, %v2320
      %v2323 = vmul.f32 %v543, %v2320
      %v2324 = vmul.f32 %v544, %v2320
      %v2325 = vmul.f32 %v545, %v2320
      %v2326 = vmul.f32 %v546, %v2320
      %v2327 = vmul.f32 %v547, %v2320
      %v2328 = vmul.f32 %v548, %v2320
      %v2329 = vmul.f32 %v549, %v2320
      %v2330 = vmul.f32 %v550, %v2320
      %v2331 = vmul.f32 %v551, %v2320
      %v2332 = vmul.f32 %v552, %v2320
      %v2333 = vmul.f32 %v553, %v2320
      %v2334 = vmul.f32 %v554, %v2320
      %v2335 = vmul.f32 %v555, %v2320
      %v2336 = vmul.f32 %v556, %v2320
      %v2337 = vmul.f32 %v557, %v2320
      %v2338 = vmul.f32 %v558, %v2320
      %v2339 = vmul.f32 %v559, %v2320
      %v2340 = vmul.f32 %v560, %v2320
      %v2341 = vmul.f32 %v561, %v2320
      %v2342 = vmul.f32 %v562, %v2320
      %v2343 = vmul.f32 %v563, %v2320
      %v2344 = vmul.f32 %v564, %v2320
      %v2369 = vrot.slane %v2321, 2
      %v2370 = vrot.slane %v2322, 2
      %v2371 = vsel %vm1748, %v2369, %v2370
      %v2372 = vrot.slane %v2323, 2
      %v2373 = vsel %vm1748, %v2370, %v2372
      %v2374 = vrot.slane %v2324, 2
      %v2375 = vrot.slane %v2325, 2
      %v2376 = vsel %vm1748, %v2374, %v2375
      %v2377 = vrot.slane %v2326, 2
      %v2378 = vsel %vm1748, %v2375, %v2377
      %v2379 = vrot.slane %v2327, 2
      %v2380 = vrot.slane %v2328, 2
      %v2381 = vsel %vm1748, %v2379, %v2380
      %v2382 = vrot.slane %v2329, 2
      %v2383 = vsel %vm1748, %v2380, %v2382
      %v2384 = vrot.slane %v2330, 2
      %v2385 = vrot.slane %v2331, 2
      %v2386 = vsel %vm1748, %v2384, %v2385
      %v2387 = vrot.slane %v2332, 2
      %v2388 = vsel %vm1748, %v2385, %v2387
      %v2389 = vrot.slane %v2333, 2
      %v2390 = vrot.slane %v2334, 2
      %v2391 = vsel %vm1748, %v2389, %v2390
      %v2392 = vrot.slane %v2335, 2
      %v2393 = vsel %vm1748, %v2390, %v2392
      %v2394 = vrot.slane %v2336, 2
      %v2395 = vrot.slane %v2337, 2
      %v2396 = vsel %vm1748, %v2394, %v2395
      %v2397 = vrot.slane %v2338, 2
      %v2398 = vsel %vm1748, %v2395, %v2397
      %v2399 = vrot.slane %v2339, 2
      %v2400 = vrot.slane %v2340, 2
      %v2401 = vsel %vm1748, %v2399, %v2400
      %v2402 = vrot.slane %v2341, 2
      %v2403 = vsel %vm1748, %v2400, %v2402
      %v2404 = vrot.slane %v2342, 2
      %v2405 = vrot.slane %v2343, 2
      %v2406 = vsel %vm1748, %v2404, %v2405
      %v2407 = vrot.slane %v2344, 2
      %v2408 = vsel %vm1748, %v2405, %v2407
      %v2425 = vadd.f32 %v2301, %v2371
      %v2426 = vadd.f32 %v2302, %v2373
      %v2427 = vadd.f32 %v2303, %v2376
      %v2428 = vadd.f32 %v2304, %v2378
      %v2429 = vadd.f32 %v2305, %v2381
      %v2430 = vadd.f32 %v2306, %v2383
      %v2431 = vadd.f32 %v2307, %v2386
      %v2432 = vadd.f32 %v2308, %v2388
      %v2433 = vadd.f32 %v2309, %v2391
      %v2434 = vadd.f32 %v2310, %v2393
      %v2435 = vadd.f32 %v2311, %v2396
      %v2436 = vadd.f32 %v2312, %v2398
      %v2437 = vadd.f32 %v2313, %v2401
      %v2438 = vadd.f32 %v2314, %v2403
      %v2439 = vadd.f32 %v2315, %v2406
      %v2440 = vadd.f32 %v2316, %v2408
      %v2441 = vlaneseq
      %v2442 = vshrl.u32 %v2441, 7
      %v2443 = vsub.s32 2, %v2442
      %v2444 = vrot.slane %v574, %v2443
      %v2445 = vmul.f32 %v544, %v2444
      %v2446 = vmul.f32 %v545, %v2444
      %v2447 = vmul.f32 %v546, %v2444
      %v2448 = vmul.f32 %v547, %v2444
      %v2449 = vmul.f32 %v548, %v2444
      %v2450 = vmul.f32 %v549, %v2444
      %v2451 = vmul.f32 %v550, %v2444
      %v2452 = vmul.f32 %v551, %v2444
      %v2453 = vmul.f32 %v552, %v2444
      %v2454 = vmul.f32 %v553, %v2444
      %v2455 = vmul.f32 %v554, %v2444
      %v2456 = vmul.f32 %v555, %v2444
      %v2457 = vmul.f32 %v556, %v2444
      %v2458 = vmul.f32 %v557, %v2444
      %v2459 = vmul.f32 %v558, %v2444
      %v2460 = vmul.f32 %v559, %v2444
      %v2461 = vmul.f32 %v560, %v2444
      %v2462 = vmul.f32 %v561, %v2444
      %v2463 = vmul.f32 %v562, %v2444
      %v2464 = vmul.f32 %v563, %v2444
      %v2465 = vmul.f32 %v564, %v2444
      %v2466 = vmul.f32 %v565, %v2444
      %v2467 = vmul.f32 %v566, %v2444
      %v2468 = vmul.f32 %v567, %v2444
      %v2493 = vrot.slane %v2445, 2
      %v2494 = vrot.slane %v2446, 2
      %v2495 = vsel %vm1748, %v2493, %v2494
      %v2496 = vrot.slane %v2447, 2
      %v2497 = vsel %vm1748, %v2494, %v2496
      %v2498 = vrot.slane %v2448, 2
      %v2499 = vrot.slane %v2449, 2
      %v2500 = vsel %vm1748, %v2498, %v2499
      %v2501 = vrot.slane %v2450, 2
      %v2502 = vsel %vm1748, %v2499, %v2501
      %v2503 = vrot.slane %v2451, 2
      %v2504 = vrot.slane %v2452, 2
      %v2505 = vsel %vm1748, %v2503, %v2504
      %v2506 = vrot.slane %v2453, 2
      %v2507 = vsel %vm1748, %v2504, %v2506
      %v2508 = vrot.slane %v2454, 2
      %v2509 = vrot.slane %v2455, 2
      %v2510 = vsel %vm1748, %v2508, %v2509
      %v2511 = vrot.slane %v2456, 2
      %v2512 = vsel %vm1748, %v2509, %v2511
      %v2513 = vrot.slane %v2457, 2
      %v2514 = vrot.slane %v2458, 2
      %v2515 = vsel %vm1748, %v2513, %v2514
      %v2516 = vrot.slane %v2459, 2
      %v2517 = vsel %vm1748, %v2514, %v2516
      %v2518 = vrot.slane %v2460, 2
      %v2519 = vrot.slane %v2461, 2
      %v2520 = vsel %vm1748, %v2518, %v2519
      %v2521 = vrot.slane %v2462, 2
      %v2522 = vsel %vm1748, %v2519, %v2521
      %v2523 = vrot.slane %v2463, 2
      %v2524 = vrot.slane %v2464, 2
      %v2525 = vsel %vm1748, %v2523, %v2524
      %v2526 = vrot.slane %v2465, 2
      %v2527 = vsel %vm1748, %v2524, %v2526
      %v2528 = vrot.slane %v2466, 2
      %v2529 = vrot.slane %v2467, 2
      %v2530 = vsel %vm1748, %v2528, %v2529
      %v2531 = vrot.slane %v2468, 2
      %v2532 = vsel %vm1748, %v2529, %v2531
      %v2549 = vadd.f32 %v2425, %v2495
      %v2550 = vadd.f32 %v2426, %v2497
      %v2551 = vadd.f32 %v2427, %v2500
      %v2552 = vadd.f32 %v2428, %v2502
      %v2553 = vadd.f32 %v2429, %v2505
      %v2554 = vadd.f32 %v2430, %v2507
      %v2555 = vadd.f32 %v2431, %v2510
      %v2556 = vadd.f32 %v2432, %v2512
      %v2557 = vadd.f32 %v2433, %v2515
      %v2558 = vadd.f32 %v2434, %v2517
      %v2559 = vadd.f32 %v2435, %v2520
      %v2560 = vadd.f32 %v2436, %v2522
      %v2561 = vadd.f32 %v2437, %v2525
      %v2562 = vadd.f32 %v2438, %v2527
      %v2563 = vadd.f32 %v2439, %v2530
      %v2564 = vadd.f32 %v2440, %v2532
      %v2565 = vlaneseq
      %v2566 = vshrl.u32 %v2565, 7
      %v2567 = vsub.s32 3, %v2566
      %v2568 = vrot.slane %v568, %v2567
      %v2569 = vmul.f32 %v526, %v2568
      %v2570 = vmul.f32 %v527, %v2568
      %v2571 = vmul.f32 %v528, %v2568
      %v2572 = vmul.f32 %v529, %v2568
      %v2573 = vmul.f32 %v530, %v2568
      %v2574 = vmul.f32 %v531, %v2568
      %v2575 = vmul.f32 %v532, %v2568
      %v2576 = vmul.f32 %v533, %v2568
      %v2577 = vmul.f32 %v534, %v2568
      %v2578 = vmul.f32 %v535, %v2568
      %v2579 = vmul.f32 %v536, %v2568
      %v2580 = vmul.f32 %v537, %v2568
      %v2581 = vmul.f32 %v538, %v2568
      %v2582 = vmul.f32 %v539, %v2568
      %v2583 = vmul.f32 %v540, %v2568
      %v2584 = vmul.f32 %v541, %v2568
      %v2585 = vmul.f32 %v542, %v2568
      %v2586 = vmul.f32 %v543, %v2568
      %v2587 = vmul.f32 %v544, %v2568
      %v2588 = vmul.f32 %v545, %v2568
      %v2589 = vmul.f32 %v546, %v2568
      %v2590 = vmul.f32 %v547, %v2568
      %v2591 = vmul.f32 %v548, %v2568
      %v2592 = vmul.f32 %v549, %v2568
      %vm2617 = vcmask 1044480
      %v2618 = vrot.slane %v2569, 3
      %v2619 = vrot.slane %v2570, 3
      %v2620 = vsel %vm2617, %v2618, %v2619
      %v2621 = vrot.slane %v2571, 3
      %v2622 = vsel %vm2617, %v2619, %v2621
      %v2623 = vrot.slane %v2572, 3
      %v2624 = vrot.slane %v2573, 3
      %v2625 = vsel %vm2617, %v2623, %v2624
      %v2626 = vrot.slane %v2574, 3
      %v2627 = vsel %vm2617, %v2624, %v2626
      %v2628 = vrot.slane %v2575, 3
      %v2629 = vrot.slane %v2576, 3
      %v2630 = vsel %vm2617, %v2628, %v2629
      %v2631 = vrot.slane %v2577, 3
      %v2632 = vsel %vm2617, %v2629, %v2631
      %v2633 = vrot.slane %v2578, 3
      %v2634 = vrot.slane %v2579, 3
      %v2635 = vsel %vm2617, %v2633, %v2634
      %v2636 = vrot.slane %v2580, 3
      %v2637 = vsel %vm2617, %v2634, %v2636
      %v2638 = vrot.slane %v2581, 3
      %v2639 = vrot.slane %v2582, 3
      %v2640 = vsel %vm2617, %v2638, %v2639
      %v2641 = vrot.slane %v2583, 3
      %v2642 = vsel %vm2617, %v2639, %v2641
      %v2643 = vrot.slane %v2584, 3
      %v2644 = vrot.slane %v2585, 3
      %v2645 = vsel %vm2617, %v2643, %v2644
      %v2646 = vrot.slane %v2586, 3
      %v2647 = vsel %vm2617, %v2644, %v2646
      %v2648 = vrot.slane %v2587, 3
      %v2649 = vrot.slane %v2588, 3
      %v2650 = vsel %vm2617, %v2648, %v2649
      %v2651 = vrot.slane %v2589, 3
      %v2652 = vsel %vm2617, %v2649, %v2651
      %v2653 = vrot.slane %v2590, 3
      %v2654 = vrot.slane %v2591, 3
      %v2655 = vsel %vm2617, %v2653, %v2654
      %v2656 = vrot.slane %v2592, 3
      %v2657 = vsel %vm2617, %v2654, %v2656
      %v2674 = vadd.f32 %v2549, %v2620
      %v2675 = vadd.f32 %v2550, %v2622
      %v2676 = vadd.f32 %v2551, %v2625
      %v2677 = vadd.f32 %v2552, %v2627
      %v2678 = vadd.f32 %v2553, %v2630
      %v2679 = vadd.f32 %v2554, %v2632
      %v2680 = vadd.f32 %v2555, %v2635
      %v2681 = vadd.f32 %v2556, %v2637
      %v2682 = vadd.f32 %v2557, %v2640
      %v2683 = vadd.f32 %v2558, %v2642
      %v2684 = vadd.f32 %v2559, %v2645
      %v2685 = vadd.f32 %v2560, %v2647
      %v2686 = vadd.f32 %v2561, %v2650
      %v2687 = vadd.f32 %v2562, %v2652
      %v2688 = vadd.f32 %v2563, %v2655
      %v2689 = vadd.f32 %v2564, %v2657
      %v2690 = vlaneseq
      %v2691 = vshrl.u32 %v2690, 7
      %v2692 = vsub.s32 3, %v2691
      %v2693 = vrot.slane %v569, %v2692
      %v2694 = vmul.f32 %v529, %v2693
      %v2695 = vmul.f32 %v530, %v2693
      %v2696 = vmul.f32 %v531, %v2693
      %v2697 = vmul.f32 %v532, %v2693
      %v2698 = vmul.f32 %v533, %v2693
      %v2699 = vmul.f32 %v534, %v2693
      %v2700 = vmul.f32 %v535, %v2693
      %v2701 = vmul.f32 %v536, %v2693
      %v2702 = vmul.f32 %v537, %v2693
      %v2703 = vmul.f32 %v538, %v2693
      %v2704 = vmul.f32 %v539, %v2693
      %v2705 = vmul.f32 %v540, %v2693
      %v2706 = vmul.f32 %v541, %v2693
      %v2707 = vmul.f32 %v542, %v2693
      %v2708 = vmul.f32 %v543, %v2693
      %v2709 = vmul.f32 %v544, %v2693
      %v2710 = vmul.f32 %v545, %v2693
      %v2711 = vmul.f32 %v546, %v2693
      %v2712 = vmul.f32 %v547, %v2693
      %v2713 = vmul.f32 %v548, %v2693
      %v2714 = vmul.f32 %v549, %v2693
      %v2715 = vmul.f32 %v550, %v2693
      %v2716 = vmul.f32 %v551, %v2693
      %v2717 = vmul.f32 %v552, %v2693
      %v2742 = vrot.slane %v2694, 3
      %v2743 = vrot.slane %v2695, 3
      %v2744 = vsel %vm2617, %v2742, %v2743
      %v2745 = vrot.slane %v2696, 3
      %v2746 = vsel %vm2617, %v2743, %v2745
      %v2747 = vrot.slane %v2697, 3
      %v2748 = vrot.slane %v2698, 3
      %v2749 = vsel %vm2617, %v2747, %v2748
      %v2750 = vrot.slane %v2699, 3
      %v2751 = vsel %vm2617, %v2748, %v2750
      %v2752 = vrot.slane %v2700, 3
      %v2753 = vrot.slane %v2701, 3
      %v2754 = vsel %vm2617, %v2752, %v2753
      %v2755 = vrot.slane %v2702, 3
      %v2756 = vsel %vm2617, %v2753, %v2755
      %v2757 = vrot.slane %v2703, 3
      %v2758 = vrot.slane %v2704, 3
      %v2759 = vsel %vm2617, %v2757, %v2758
      %v2760 = vrot.slane %v2705, 3
      %v2761 = vsel %vm2617, %v2758, %v2760
      %v2762 = vrot.slane %v2706, 3
      %v2763 = vrot.slane %v2707, 3
      %v2764 = vsel %vm2617, %v2762, %v2763
      %v2765 = vrot.slane %v2708, 3
      %v2766 = vsel %vm2617, %v2763, %v2765
      %v2767 = vrot.slane %v2709, 3
      %v2768 = vrot.slane %v2710, 3
      %v2769 = vsel %vm2617, %v2767, %v2768
      %v2770 = vrot.slane %v2711, 3
      %v2771 = vsel %vm2617, %v2768, %v2770
      %v2772 = vrot.slane %v2712, 3
      %v2773 = vrot.slane %v2713, 3
      %v2774 = vsel %vm2617, %v2772, %v2773
      %v2775 = vrot.slane %v2714, 3
      %v2776 = vsel %vm2617, %v2773, %v2775
      %v2777 = vrot.slane %v2715, 3
      %v2778 = vrot.slane %v2716, 3
      %v2779 = vsel %vm2617, %v2777, %v2778
      %v2780 = vrot.slane %v2717, 3
      %v2781 = vsel %vm2617, %v2778, %v2780
      %v2798 = vadd.f32 %v2674, %v2744
      %v2799 = vadd.f32 %v2675, %v2746
      %v2800 = vadd.f32 %v2676, %v2749
      %v2801 = vadd.f32 %v2677, %v2751
      %v2802 = vadd.f32 %v2678, %v2754
      %v2803 = vadd.f32 %v2679, %v2756
      %v2804 = vadd.f32 %v2680, %v2759
      %v2805 = vadd.f32 %v2681, %v2761
      %v2806 = vadd.f32 %v2682, %v2764
      %v2807 = vadd.f32 %v2683, %v2766
      %v2808 = vadd.f32 %v2684, %v2769
      %v2809 = vadd.f32 %v2685, %v2771
      %v2810 = vadd.f32 %v2686, %v2774
      %v2811 = vadd.f32 %v2687, %v2776
      %v2812 = vadd.f32 %v2688, %v2779
      %v2813 = vadd.f32 %v2689, %v2781
      %v2814 = vlaneseq
      %v2815 = vshrl.u32 %v2814, 7
      %v2816 = vsub.s32 3, %v2815
      %v2817 = vrot.slane %v570, %v2816
      %v2818 = vmul.f32 %v532, %v2817
      %v2819 = vmul.f32 %v533, %v2817
      %v2820 = vmul.f32 %v534, %v2817
      %v2821 = vmul.f32 %v535, %v2817
      %v2822 = vmul.f32 %v536, %v2817
      %v2823 = vmul.f32 %v537, %v2817
      %v2824 = vmul.f32 %v538, %v2817
      %v2825 = vmul.f32 %v539, %v2817
      %v2826 = vmul.f32 %v540, %v2817
      %v2827 = vmul.f32 %v541, %v2817
      %v2828 = vmul.f32 %v542, %v2817
      %v2829 = vmul.f32 %v543, %v2817
      %v2830 = vmul.f32 %v544, %v2817
      %v2831 = vmul.f32 %v545, %v2817
      %v2832 = vmul.f32 %v546, %v2817
      %v2833 = vmul.f32 %v547, %v2817
      %v2834 = vmul.f32 %v548, %v2817
      %v2835 = vmul.f32 %v549, %v2817
      %v2836 = vmul.f32 %v550, %v2817
      %v2837 = vmul.f32 %v551, %v2817
      %v2838 = vmul.f32 %v552, %v2817
      %v2839 = vmul.f32 %v553, %v2817
      %v2840 = vmul.f32 %v554, %v2817
      %v2841 = vmul.f32 %v555, %v2817
      %v2866 = vrot.slane %v2818, 3
      %v2867 = vrot.slane %v2819, 3
      %v2868 = vsel %vm2617, %v2866, %v2867
      %v2869 = vrot.slane %v2820, 3
      %v2870 = vsel %vm2617, %v2867, %v2869
      %v2871 = vrot.slane %v2821, 3
      %v2872 = vrot.slane %v2822, 3
      %v2873 = vsel %vm2617, %v2871, %v2872
      %v2874 = vrot.slane %v2823, 3
      %v2875 = vsel %vm2617, %v2872, %v2874
      %v2876 = vrot.slane %v2824, 3
      %v2877 = vrot.slane %v2825, 3
      %v2878 = vsel %vm2617, %v2876, %v2877
      %v2879 = vrot.slane %v2826, 3
      %v2880 = vsel %vm2617, %v2877, %v2879
      %v2881 = vrot.slane %v2827, 3
      %v2882 = vrot.slane %v2828, 3
      %v2883 = vsel %vm2617, %v2881, %v2882
      %v2884 = vrot.slane %v2829, 3
      %v2885 = vsel %vm2617, %v2882, %v2884
      %v2886 = vrot.slane %v2830, 3
      %v2887 = vrot.slane %v2831, 3
      %v2888 = vsel %vm2617, %v2886, %v2887
      %v2889 = vrot.slane %v2832, 3
      %v2890 = vsel %vm2617, %v2887, %v2889
      %v2891 = vrot.slane %v2833, 3
      %v2892 = vrot.slane %v2834, 3
      %v2893 = vsel %vm2617, %v2891, %v2892
      %v2894 = vrot.slane %v2835, 3
      %v2895 = vsel %vm2617, %v2892, %v2894
      %v2896 = vrot.slane %v2836, 3
      %v2897 = vrot.slane %v2837, 3
      %v2898 = vsel %vm2617, %v2896, %v2897
      %v2899 = vrot.slane %v2838, 3
      %v2900 = vsel %vm2617, %v2897, %v2899
      %v2901 = vrot.slane %v2839, 3
      %v2902 = vrot.slane %v2840, 3
      %v2903 = vsel %vm2617, %v2901, %v2902
      %v2904 = vrot.slane %v2841, 3
      %v2905 = vsel %vm2617, %v2902, %v2904
      %v2922 = vadd.f32 %v2798, %v2868
      %v2923 = vadd.f32 %v2799, %v2870
      %v2924 = vadd.f32 %v2800, %v2873
      %v2925 = vadd.f32 %v2801, %v2875
      %v2926 = vadd.f32 %v2802, %v2878
      %v2927 = vadd.f32 %v2803, %v2880
      %v2928 = vadd.f32 %v2804, %v2883
      %v2929 = vadd.f32 %v2805, %v2885
      %v2930 = vadd.f32 %v2806, %v2888
      %v2931 = vadd.f32 %v2807, %v2890
      %v2932 = vadd.f32 %v2808, %v2893
      %v2933 = vadd.f32 %v2809, %v2895
      %v2934 = vadd.f32 %v2810, %v2898
      %v2935 = vadd.f32 %v2811, %v2900
      %v2936 = vadd.f32 %v2812, %v2903
      %v2937 = vadd.f32 %v2813, %v2905
      %v2938 = vlaneseq
      %v2939 = vshrl.u32 %v2938, 7
      %v2940 = vsub.s32 3, %v2939
      %v2941 = vrot.slane %v571, %v2940
      %v2942 = vmul.f32 %v535, %v2941
      %v2943 = vmul.f32 %v536, %v2941
      %v2944 = vmul.f32 %v537, %v2941
      %v2945 = vmul.f32 %v538, %v2941
      %v2946 = vmul.f32 %v539, %v2941
      %v2947 = vmul.f32 %v540, %v2941
      %v2948 = vmul.f32 %v541, %v2941
      %v2949 = vmul.f32 %v542, %v2941
      %v2950 = vmul.f32 %v543, %v2941
      %v2951 = vmul.f32 %v544, %v2941
      %v2952 = vmul.f32 %v545, %v2941
      %v2953 = vmul.f32 %v546, %v2941
      %v2954 = vmul.f32 %v547, %v2941
      %v2955 = vmul.f32 %v548, %v2941
      %v2956 = vmul.f32 %v549, %v2941
      %v2957 = vmul.f32 %v550, %v2941
      %v2958 = vmul.f32 %v551, %v2941
      %v2959 = vmul.f32 %v552, %v2941
      %v2960 = vmul.f32 %v553, %v2941
      %v2961 = vmul.f32 %v554, %v2941
      %v2962 = vmul.f32 %v555, %v2941
      %v2963 = vmul.f32 %v556, %v2941
      %v2964 = vmul.f32 %v557, %v2941
      %v2965 = vmul.f32 %v558, %v2941
      %v2990 = vrot.slane %v2942, 3
      %v2991 = vrot.slane %v2943, 3
      %v2992 = vsel %vm2617, %v2990, %v2991
      %v2993 = vrot.slane %v2944, 3
      %v2994 = vsel %vm2617, %v2991, %v2993
      %v2995 = vrot.slane %v2945, 3
      %v2996 = vrot.slane %v2946, 3
      %v2997 = vsel %vm2617, %v2995, %v2996
      %v2998 = vrot.slane %v2947, 3
      %v2999 = vsel %vm2617, %v2996, %v2998
      %v3000 = vrot.slane %v2948, 3
      %v3001 = vrot.slane %v2949, 3
      %v3002 = vsel %vm2617, %v3000, %v3001
      %v3003 = vrot.slane %v2950, 3
      %v3004 = vsel %vm2617, %v3001, %v3003
      %v3005 = vrot.slane %v2951, 3
      %v3006 = vrot.slane %v2952, 3
      %v3007 = vsel %vm2617, %v3005, %v3006
      %v3008 = vrot.slane %v2953, 3
      %v3009 = vsel %vm2617, %v3006, %v3008
      %v3010 = vrot.slane %v2954, 3
      %v3011 = vrot.slane %v2955, 3
      %v3012 = vsel %vm2617, %v3010, %v3011
      %v3013 = vrot.slane %v2956, 3
      %v3014 = vsel %vm2617, %v3011, %v3013
      %v3015 = vrot.slane %v2957, 3
      %v3016 = vrot.slane %v2958, 3
      %v3017 = vsel %vm2617, %v3015, %v3016
      %v3018 = vrot.slane %v2959, 3
      %v3019 = vsel %vm2617, %v3016, %v3018
      %v3020 = vrot.slane %v2960, 3
      %v3021 = vrot.slane %v2961, 3
      %v3022 = vsel %vm2617, %v3020, %v3021
      %v3023 = vrot.slane %v2962, 3
      %v3024 = vsel %vm2617, %v3021, %v3023
      %v3025 = vrot.slane %v2963, 3
      %v3026 = vrot.slane %v2964, 3
      %v3027 = vsel %vm2617, %v3025, %v3026
      %v3028 = vrot.slane %v2965, 3
      %v3029 = vsel %vm2617, %v3026, %v3028
      %v3046 = vadd.f32 %v2922, %v2992
      %v3047 = vadd.f32 %v2923, %v2994
      %v3048 = vadd.f32 %v2924, %v2997
      %v3049 = vadd.f32 %v2925, %v2999
      %v3050 = vadd.f32 %v2926, %v3002
      %v3051 = vadd.f32 %v2927, %v3004
      %v3052 = vadd.f32 %v2928, %v3007
      %v3053 = vadd.f32 %v2929, %v3009
      %v3054 = vadd.f32 %v2930, %v3012
      %v3055 = vadd.f32 %v2931, %v3014
      %v3056 = vadd.f32 %v2932, %v3017
      %v3057 = vadd.f32 %v2933, %v3019
      %v3058 = vadd.f32 %v2934, %v3022
      %v3059 = vadd.f32 %v2935, %v3024
      %v3060 = vadd.f32 %v2936, %v3027
      %v3061 = vadd.f32 %v2937, %v3029
      %v3062 = vlaneseq
      %v3063 = vshrl.u32 %v3062, 7
      %v3064 = vsub.s32 3, %v3063
      %v3065 = vrot.slane %v572, %v3064
      %v3066 = vmul.f32 %v538, %v3065
      %v3067 = vmul.f32 %v539, %v3065
      %v3068 = vmul.f32 %v540, %v3065
      %v3069 = vmul.f32 %v541, %v3065
      %v3070 = vmul.f32 %v542, %v3065
      %v3071 = vmul.f32 %v543, %v3065
      %v3072 = vmul.f32 %v544, %v3065
      %v3073 = vmul.f32 %v545, %v3065
      %v3074 = vmul.f32 %v546, %v3065
      %v3075 = vmul.f32 %v547, %v3065
      %v3076 = vmul.f32 %v548, %v3065
      %v3077 = vmul.f32 %v549, %v3065
      %v3078 = vmul.f32 %v550, %v3065
      %v3079 = vmul.f32 %v551, %v3065
      %v3080 = vmul.f32 %v552, %v3065
      %v3081 = vmul.f32 %v553, %v3065
      %v3082 = vmul.f32 %v554, %v3065
      %v3083 = vmul.f32 %v555, %v3065
      %v3084 = vmul.f32 %v556, %v3065
      %v3085 = vmul.f32 %v557, %v3065
      %v3086 = vmul.f32 %v558, %v3065
      %v3087 = vmul.f32 %v559, %v3065
      %v3088 = vmul.f32 %v560, %v3065
      %v3089 = vmul.f32 %v561, %v3065
      %v3114 = vrot.slane %v3066, 3
      %v3115 = vrot.slane %v3067, 3
      %v3116 = vsel %vm2617, %v3114, %v3115
      %v3117 = vrot.slane %v3068, 3
      %v3118 = vsel %vm2617, %v3115, %v3117
      %v3119 = vrot.slane %v3069, 3
      %v3120 = vrot.slane %v3070, 3
      %v3121 = vsel %vm2617, %v3119, %v3120
      %v3122 = vrot.slane %v3071, 3
      %v3123 = vsel %vm2617, %v3120, %v3122
      %v3124 = vrot.slane %v3072, 3
      %v3125 = vrot.slane %v3073, 3
      %v3126 = vsel %vm2617, %v3124, %v3125
      %v3127 = vrot.slane %v3074, 3
      %v3128 = vsel %vm2617, %v3125, %v3127
      %v3129 = vrot.slane %v3075, 3
      %v3130 = vrot.slane %v3076, 3
      %v3131 = vsel %vm2617, %v3129, %v3130
      %v3132 = vrot.slane %v3077, 3
      %v3133 = vsel %vm2617, %v3130, %v3132
      %v3134 = vrot.slane %v3078, 3
      %v3135 = vrot.slane %v3079, 3
      %v3136 = vsel %vm2617, %v3134, %v3135
      %v3137 = vrot.slane %v3080, 3
      %v3138 = vsel %vm2617, %v3135, %v3137
      %v3139 = vrot.slane %v3081, 3
      %v3140 = vrot.slane %v3082, 3
      %v3141 = vsel %vm2617, %v3139, %v3140
      %v3142 = vrot.slane %v3083, 3
      %v3143 = vsel %vm2617, %v3140, %v3142
      %v3144 = vrot.slane %v3084, 3
      %v3145 = vrot.slane %v3085, 3
      %v3146 = vsel %vm2617, %v3144, %v3145
      %v3147 = vrot.slane %v3086, 3
      %v3148 = vsel %vm2617, %v3145, %v3147
      %v3149 = vrot.slane %v3087, 3
      %v3150 = vrot.slane %v3088, 3
      %v3151 = vsel %vm2617, %v3149, %v3150
      %v3152 = vrot.slane %v3089, 3
      %v3153 = vsel %vm2617, %v3150, %v3152
      %v3170 = vadd.f32 %v3046, %v3116
      %v3171 = vadd.f32 %v3047, %v3118
      %v3172 = vadd.f32 %v3048, %v3121
      %v3173 = vadd.f32 %v3049, %v3123
      %v3174 = vadd.f32 %v3050, %v3126
      %v3175 = vadd.f32 %v3051, %v3128
      %v3176 = vadd.f32 %v3052, %v3131
      %v3177 = vadd.f32 %v3053, %v3133
      %v3178 = vadd.f32 %v3054, %v3136
      %v3179 = vadd.f32 %v3055, %v3138
      %v3180 = vadd.f32 %v3056, %v3141
      %v3181 = vadd.f32 %v3057, %v3143
      %v3182 = vadd.f32 %v3058, %v3146
      %v3183 = vadd.f32 %v3059, %v3148
      %v3184 = vadd.f32 %v3060, %v3151
      %v3185 = vadd.f32 %v3061, %v3153
      %v3186 = vlaneseq
      %v3187 = vshrl.u32 %v3186, 7
      %v3188 = vsub.s32 3, %v3187
      %v3189 = vrot.slane %v573, %v3188
      %v3190 = vmul.f32 %v541, %v3189
      %v3191 = vmul.f32 %v542, %v3189
      %v3192 = vmul.f32 %v543, %v3189
      %v3193 = vmul.f32 %v544, %v3189
      %v3194 = vmul.f32 %v545, %v3189
      %v3195 = vmul.f32 %v546, %v3189
      %v3196 = vmul.f32 %v547, %v3189
      %v3197 = vmul.f32 %v548, %v3189
      %v3198 = vmul.f32 %v549, %v3189
      %v3199 = vmul.f32 %v550, %v3189
      %v3200 = vmul.f32 %v551, %v3189
      %v3201 = vmul.f32 %v552, %v3189
      %v3202 = vmul.f32 %v553, %v3189
      %v3203 = vmul.f32 %v554, %v3189
      %v3204 = vmul.f32 %v555, %v3189
      %v3205 = vmul.f32 %v556, %v3189
      %v3206 = vmul.f32 %v557, %v3189
      %v3207 = vmul.f32 %v558, %v3189
      %v3208 = vmul.f32 %v559, %v3189
      %v3209 = vmul.f32 %v560, %v3189
      %v3210 = vmul.f32 %v561, %v3189
      %v3211 = vmul.f32 %v562, %v3189
      %v3212 = vmul.f32 %v563, %v3189
      %v3213 = vmul.f32 %v564, %v3189
      %v3238 = vrot.slane %v3190, 3
      %v3239 = vrot.slane %v3191, 3
      %v3240 = vsel %vm2617, %v3238, %v3239
      %v3241 = vrot.slane %v3192, 3
      %v3242 = vsel %vm2617, %v3239, %v3241
      %v3243 = vrot.slane %v3193, 3
      %v3244 = vrot.slane %v3194, 3
      %v3245 = vsel %vm2617, %v3243, %v3244
      %v3246 = vrot.slane %v3195, 3
      %v3247 = vsel %vm2617, %v3244, %v3246
      %v3248 = vrot.slane %v3196, 3
      %v3249 = vrot.slane %v3197, 3
      %v3250 = vsel %vm2617, %v3248, %v3249
      %v3251 = vrot.slane %v3198, 3
      %v3252 = vsel %vm2617, %v3249, %v3251
      %v3253 = vrot.slane %v3199, 3
      %v3254 = vrot.slane %v3200, 3
      %v3255 = vsel %vm2617, %v3253, %v3254
      %v3256 = vrot.slane %v3201, 3
      %v3257 = vsel %vm2617, %v3254, %v3256
      %v3258 = vrot.slane %v3202, 3
      %v3259 = vrot.slane %v3203, 3
      %v3260 = vsel %vm2617, %v3258, %v3259
      %v3261 = vrot.slane %v3204, 3
      %v3262 = vsel %vm2617, %v3259, %v3261
      %v3263 = vrot.slane %v3205, 3
      %v3264 = vrot.slane %v3206, 3
      %v3265 = vsel %vm2617, %v3263, %v3264
      %v3266 = vrot.slane %v3207, 3
      %v3267 = vsel %vm2617, %v3264, %v3266
      %v3268 = vrot.slane %v3208, 3
      %v3269 = vrot.slane %v3209, 3
      %v3270 = vsel %vm2617, %v3268, %v3269
      %v3271 = vrot.slane %v3210, 3
      %v3272 = vsel %vm2617, %v3269, %v3271
      %v3273 = vrot.slane %v3211, 3
      %v3274 = vrot.slane %v3212, 3
      %v3275 = vsel %vm2617, %v3273, %v3274
      %v3276 = vrot.slane %v3213, 3
      %v3277 = vsel %vm2617, %v3274, %v3276
      %v3294 = vadd.f32 %v3170, %v3240
      %v3295 = vadd.f32 %v3171, %v3242
      %v3296 = vadd.f32 %v3172, %v3245
      %v3297 = vadd.f32 %v3173, %v3247
      %v3298 = vadd.f32 %v3174, %v3250
      %v3299 = vadd.f32 %v3175, %v3252
      %v3300 = vadd.f32 %v3176, %v3255
      %v3301 = vadd.f32 %v3177, %v3257
      %v3302 = vadd.f32 %v3178, %v3260
      %v3303 = vadd.f32 %v3179, %v3262
      %v3304 = vadd.f32 %v3180, %v3265
      %v3305 = vadd.f32 %v3181, %v3267
      %v3306 = vadd.f32 %v3182, %v3270
      %v3307 = vadd.f32 %v3183, %v3272
      %v3308 = vadd.f32 %v3184, %v3275
      %v3309 = vadd.f32 %v3185, %v3277
      %v3310 = vlaneseq
      %v3311 = vshrl.u32 %v3310, 7
      %v3312 = vsub.s32 3, %v3311
      %v3313 = vrot.slane %v574, %v3312
      %v3314 = vmul.f32 %v544, %v3313
      %v3315 = vmul.f32 %v545, %v3313
      %v3316 = vmul.f32 %v546, %v3313
      %v3317 = vmul.f32 %v547, %v3313
      %v3318 = vmul.f32 %v548, %v3313
      %v3319 = vmul.f32 %v549, %v3313
      %v3320 = vmul.f32 %v550, %v3313
      %v3321 = vmul.f32 %v551, %v3313
      %v3322 = vmul.f32 %v552, %v3313
      %v3323 = vmul.f32 %v553, %v3313
      %v3324 = vmul.f32 %v554, %v3313
      %v3325 = vmul.f32 %v555, %v3313
      %v3326 = vmul.f32 %v556, %v3313
      %v3327 = vmul.f32 %v557, %v3313
      %v3328 = vmul.f32 %v558, %v3313
      %v3329 = vmul.f32 %v559, %v3313
      %v3330 = vmul.f32 %v560, %v3313
      %v3331 = vmul.f32 %v561, %v3313
      %v3332 = vmul.f32 %v562, %v3313
      %v3333 = vmul.f32 %v563, %v3313
      %v3334 = vmul.f32 %v564, %v3313
      %v3335 = vmul.f32 %v565, %v3313
      %v3336 = vmul.f32 %v566, %v3313
      %v3337 = vmul.f32 %v567, %v3313
      %v3362 = vrot.slane %v3314, 3
      %v3363 = vrot.slane %v3315, 3
      %v3364 = vsel %vm2617, %v3362, %v3363
      %v3365 = vrot.slane %v3316, 3
      %v3366 = vsel %vm2617, %v3363, %v3365
      %v3367 = vrot.slane %v3317, 3
      %v3368 = vrot.slane %v3318, 3
      %v3369 = vsel %vm2617, %v3367, %v3368
      %v3370 = vrot.slane %v3319, 3
      %v3371 = vsel %vm2617, %v3368, %v3370
      %v3372 = vrot.slane %v3320, 3
      %v3373 = vrot.slane %v3321, 3
      %v3374 = vsel %vm2617, %v3372, %v3373
      %v3375 = vrot.slane %v3322, 3
      %v3376 = vsel %vm2617, %v3373, %v3375
      %v3377 = vrot.slane %v3323, 3
      %v3378 = vrot.slane %v3324, 3
      %v3379 = vsel %vm2617, %v3377, %v3378
      %v3380 = vrot.slane %v3325, 3
      %v3381 = vsel %vm2617, %v3378, %v3380
      %v3382 = vrot.slane %v3326, 3
      %v3383 = vrot.slane %v3327, 3
      %v3384 = vsel %vm2617, %v3382, %v3383
      %v3385 = vrot.slane %v3328, 3
      %v3386 = vsel %vm2617, %v3383, %v3385
      %v3387 = vrot.slane %v3329, 3
      %v3388 = vrot.slane %v3330, 3
      %v3389 = vsel %vm2617, %v3387, %v3388
      %v3390 = vrot.slane %v3331, 3
      %v3391 = vsel %vm2617, %v3388, %v3390
      %v3392 = vrot.slane %v3332, 3
      %v3393 = vrot.slane %v3333, 3
      %v3394 = vsel %vm2617, %v3392, %v3393
      %v3395 = vrot.slane %v3334, 3
      %v3396 = vsel %vm2617, %v3393, %v3395
      %v3397 = vrot.slane %v3335, 3
      %v3398 = vrot.slane %v3336, 3
      %v3399 = vsel %vm2617, %v3397, %v3398
      %v3400 = vrot.slane %v3337, 3
      %v3401 = vsel %vm2617, %v3398, %v3400
      %v3418 = vadd.f32 %v3294, %v3364
      %v3419 = vadd.f32 %v3295, %v3366
      %v3420 = vadd.f32 %v3296, %v3369
      %v3421 = vadd.f32 %v3297, %v3371
      %v3422 = vadd.f32 %v3298, %v3374
      %v3423 = vadd.f32 %v3299, %v3376
      %v3424 = vadd.f32 %v3300, %v3379
      %v3425 = vadd.f32 %v3301, %v3381
      %v3426 = vadd.f32 %v3302, %v3384
      %v3427 = vadd.f32 %v3303, %v3386
      %v3428 = vadd.f32 %v3304, %v3389
      %v3429 = vadd.f32 %v3305, %v3391
      %v3430 = vadd.f32 %v3306, %v3394
      %v3431 = vadd.f32 %v3307, %v3396
      %v3432 = vadd.f32 %v3308, %v3399
      %v3433 = vadd.f32 %v3309, %v3401
      %v3434 = vlaneseq
      %v3435 = vshrl.u32 %v3434, 7
      %v3436 = vsub.s32 4, %v3435
      %v3437 = vrot.slane %v568, %v3436
      %v3438 = vmul.f32 %v526, %v3437
      %v3439 = vmul.f32 %v527, %v3437
      %v3440 = vmul.f32 %v528, %v3437
      %v3441 = vmul.f32 %v529, %v3437
      %v3442 = vmul.f32 %v530, %v3437
      %v3443 = vmul.f32 %v531, %v3437
      %v3444 = vmul.f32 %v532, %v3437
      %v3445 = vmul.f32 %v533, %v3437
      %v3446 = vmul.f32 %v534, %v3437
      %v3447 = vmul.f32 %v535, %v3437
      %v3448 = vmul.f32 %v536, %v3437
      %v3449 = vmul.f32 %v537, %v3437
      %v3450 = vmul.f32 %v538, %v3437
      %v3451 = vmul.f32 %v539, %v3437
      %v3452 = vmul.f32 %v540, %v3437
      %v3453 = vmul.f32 %v541, %v3437
      %v3454 = vmul.f32 %v542, %v3437
      %v3455 = vmul.f32 %v543, %v3437
      %v3456 = vmul.f32 %v544, %v3437
      %v3457 = vmul.f32 %v545, %v3437
      %v3458 = vmul.f32 %v546, %v3437
      %v3459 = vmul.f32 %v547, %v3437
      %v3460 = vmul.f32 %v548, %v3437
      %v3461 = vmul.f32 %v549, %v3437
      %vm3486 = vcmask 1043456
      %v3487 = vrot.slane %v3438, 4
      %v3488 = vrot.slane %v3439, 4
      %v3489 = vsel %vm3486, %v3487, %v3488
      %v3490 = vrot.slane %v3440, 4
      %v3491 = vsel %vm3486, %v3488, %v3490
      %v3492 = vrot.slane %v3441, 4
      %v3493 = vrot.slane %v3442, 4
      %v3494 = vsel %vm3486, %v3492, %v3493
      %v3495 = vrot.slane %v3443, 4
      %v3496 = vsel %vm3486, %v3493, %v3495
      %v3497 = vrot.slane %v3444, 4
      %v3498 = vrot.slane %v3445, 4
      %v3499 = vsel %vm3486, %v3497, %v3498
      %v3500 = vrot.slane %v3446, 4
      %v3501 = vsel %vm3486, %v3498, %v3500
      %v3502 = vrot.slane %v3447, 4
      %v3503 = vrot.slane %v3448, 4
      %v3504 = vsel %vm3486, %v3502, %v3503
      %v3505 = vrot.slane %v3449, 4
      %v3506 = vsel %vm3486, %v3503, %v3505
      %v3507 = vrot.slane %v3450, 4
      %v3508 = vrot.slane %v3451, 4
      %v3509 = vsel %vm3486, %v3507, %v3508
      %v3510 = vrot.slane %v3452, 4
      %v3511 = vsel %vm3486, %v3508, %v3510
      %v3512 = vrot.slane %v3453, 4
      %v3513 = vrot.slane %v3454, 4
      %v3514 = vsel %vm3486, %v3512, %v3513
      %v3515 = vrot.slane %v3455, 4
      %v3516 = vsel %vm3486, %v3513, %v3515
      %v3517 = vrot.slane %v3456, 4
      %v3518 = vrot.slane %v3457, 4
      %v3519 = vsel %vm3486, %v3517, %v3518
      %v3520 = vrot.slane %v3458, 4
      %v3521 = vsel %vm3486, %v3518, %v3520
      %v3522 = vrot.slane %v3459, 4
      %v3523 = vrot.slane %v3460, 4
      %v3524 = vsel %vm3486, %v3522, %v3523
      %v3525 = vrot.slane %v3461, 4
      %v3526 = vsel %vm3486, %v3523, %v3525
      %v3543 = vadd.f32 %v3418, %v3489
      %v3544 = vadd.f32 %v3419, %v3491
      %v3545 = vadd.f32 %v3420, %v3494
      %v3546 = vadd.f32 %v3421, %v3496
      %v3547 = vadd.f32 %v3422, %v3499
      %v3548 = vadd.f32 %v3423, %v3501
      %v3549 = vadd.f32 %v3424, %v3504
      %v3550 = vadd.f32 %v3425, %v3506
      %v3551 = vadd.f32 %v3426, %v3509
      %v3552 = vadd.f32 %v3427, %v3511
      %v3553 = vadd.f32 %v3428, %v3514
      %v3554 = vadd.f32 %v3429, %v3516
      %v3555 = vadd.f32 %v3430, %v3519
      %v3556 = vadd.f32 %v3431, %v3521
      %v3557 = vadd.f32 %v3432, %v3524
      %v3558 = vadd.f32 %v3433, %v3526
      %v3559 = vlaneseq
      %v3560 = vshrl.u32 %v3559, 7
      %v3561 = vsub.s32 4, %v3560
      %v3562 = vrot.slane %v569, %v3561
      %v3563 = vmul.f32 %v529, %v3562
      %v3564 = vmul.f32 %v530, %v3562
      %v3565 = vmul.f32 %v531, %v3562
      %v3566 = vmul.f32 %v532, %v3562
      %v3567 = vmul.f32 %v533, %v3562
      %v3568 = vmul.f32 %v534, %v3562
      %v3569 = vmul.f32 %v535, %v3562
      %v3570 = vmul.f32 %v536, %v3562
      %v3571 = vmul.f32 %v537, %v3562
      %v3572 = vmul.f32 %v538, %v3562
      %v3573 = vmul.f32 %v539, %v3562
      %v3574 = vmul.f32 %v540, %v3562
      %v3575 = vmul.f32 %v541, %v3562
      %v3576 = vmul.f32 %v542, %v3562
      %v3577 = vmul.f32 %v543, %v3562
      %v3578 = vmul.f32 %v544, %v3562
      %v3579 = vmul.f32 %v545, %v3562
      %v3580 = vmul.f32 %v546, %v3562
      %v3581 = vmul.f32 %v547, %v3562
      %v3582 = vmul.f32 %v548, %v3562
      %v3583 = vmul.f32 %v549, %v3562
      %v3584 = vmul.f32 %v550, %v3562
      %v3585 = vmul.f32 %v551, %v3562
      %v3586 = vmul.f32 %v552, %v3562
      %v3611 = vrot.slane %v3563, 4
      %v3612 = vrot.slane %v3564, 4
      %v3613 = vsel %vm3486, %v3611, %v3612
      %v3614 = vrot.slane %v3565, 4
      %v3615 = vsel %vm3486, %v3612, %v3614
      %v3616 = vrot.slane %v3566, 4
      %v3617 = vrot.slane %v3567, 4
      %v3618 = vsel %vm3486, %v3616, %v3617
      %v3619 = vrot.slane %v3568, 4
      %v3620 = vsel %vm3486, %v3617, %v3619
      %v3621 = vrot.slane %v3569, 4
      %v3622 = vrot.slane %v3570, 4
      %v3623 = vsel %vm3486, %v3621, %v3622
      %v3624 = vrot.slane %v3571, 4
      %v3625 = vsel %vm3486, %v3622, %v3624
      %v3626 = vrot.slane %v3572, 4
      %v3627 = vrot.slane %v3573, 4
      %v3628 = vsel %vm3486, %v3626, %v3627
      %v3629 = vrot.slane %v3574, 4
      %v3630 = vsel %vm3486, %v3627, %v3629
      %v3631 = vrot.slane %v3575, 4
      %v3632 = vrot.slane %v3576, 4
      %v3633 = vsel %vm3486, %v3631, %v3632
      %v3634 = vrot.slane %v3577, 4
      %v3635 = vsel %vm3486, %v3632, %v3634
      %v3636 = vrot.slane %v3578, 4
      %v3637 = vrot.slane %v3579, 4
      %v3638 = vsel %vm3486, %v3636, %v3637
      %v3639 = vrot.slane %v3580, 4
      %v3640 = vsel %vm3486, %v3637, %v3639
      %v3641 = vrot.slane %v3581, 4
      %v3642 = vrot.slane %v3582, 4
      %v3643 = vsel %vm3486, %v3641, %v3642
      %v3644 = vrot.slane %v3583, 4
      %v3645 = vsel %vm3486, %v3642, %v3644
      %v3646 = vrot.slane %v3584, 4
      %v3647 = vrot.slane %v3585, 4
      %v3648 = vsel %vm3486, %v3646, %v3647
      %v3649 = vrot.slane %v3586, 4
      %v3650 = vsel %vm3486, %v3647, %v3649
      %v3667 = vadd.f32 %v3543, %v3613
      %v3668 = vadd.f32 %v3544, %v3615
      %v3669 = vadd.f32 %v3545, %v3618
      %v3670 = vadd.f32 %v3546, %v3620
      %v3671 = vadd.f32 %v3547, %v3623
      %v3672 = vadd.f32 %v3548, %v3625
      %v3673 = vadd.f32 %v3549, %v3628
      %v3674 = vadd.f32 %v3550, %v3630
      %v3675 = vadd.f32 %v3551, %v3633
      %v3676 = vadd.f32 %v3552, %v3635
      %v3677 = vadd.f32 %v3553, %v3638
      %v3678 = vadd.f32 %v3554, %v3640
      %v3679 = vadd.f32 %v3555, %v3643
      %v3680 = vadd.f32 %v3556, %v3645
      %v3681 = vadd.f32 %v3557, %v3648
      %v3682 = vadd.f32 %v3558, %v3650
      %v3683 = vlaneseq
      %v3684 = vshrl.u32 %v3683, 7
      %v3685 = vsub.s32 4, %v3684
      %v3686 = vrot.slane %v570, %v3685
      %v3687 = vmul.f32 %v532, %v3686
      %v3688 = vmul.f32 %v533, %v3686
      %v3689 = vmul.f32 %v534, %v3686
      %v3690 = vmul.f32 %v535, %v3686
      %v3691 = vmul.f32 %v536, %v3686
      %v3692 = vmul.f32 %v537, %v3686
      %v3693 = vmul.f32 %v538, %v3686
      %v3694 = vmul.f32 %v539, %v3686
      %v3695 = vmul.f32 %v540, %v3686
      %v3696 = vmul.f32 %v541, %v3686
      %v3697 = vmul.f32 %v542, %v3686
      %v3698 = vmul.f32 %v543, %v3686
      %v3699 = vmul.f32 %v544, %v3686
      %v3700 = vmul.f32 %v545, %v3686
      %v3701 = vmul.f32 %v546, %v3686
      %v3702 = vmul.f32 %v547, %v3686
      %v3703 = vmul.f32 %v548, %v3686
      %v3704 = vmul.f32 %v549, %v3686
      %v3705 = vmul.f32 %v550, %v3686
      %v3706 = vmul.f32 %v551, %v3686
      %v3707 = vmul.f32 %v552, %v3686
      %v3708 = vmul.f32 %v553, %v3686
      %v3709 = vmul.f32 %v554, %v3686
      %v3710 = vmul.f32 %v555, %v3686
      %v3735 = vrot.slane %v3687, 4
      %v3736 = vrot.slane %v3688, 4
      %v3737 = vsel %vm3486, %v3735, %v3736
      %v3738 = vrot.slane %v3689, 4
      %v3739 = vsel %vm3486, %v3736, %v3738
      %v3740 = vrot.slane %v3690, 4
      %v3741 = vrot.slane %v3691, 4
      %v3742 = vsel %vm3486, %v3740, %v3741
      %v3743 = vrot.slane %v3692, 4
      %v3744 = vsel %vm3486, %v3741, %v3743
      %v3745 = vrot.slane %v3693, 4
      %v3746 = vrot.slane %v3694, 4
      %v3747 = vsel %vm3486, %v3745, %v3746
      %v3748 = vrot.slane %v3695, 4
      %v3749 = vsel %vm3486, %v3746, %v3748
      %v3750 = vrot.slane %v3696, 4
      %v3751 = vrot.slane %v3697, 4
      %v3752 = vsel %vm3486, %v3750, %v3751
      %v3753 = vrot.slane %v3698, 4
      %v3754 = vsel %vm3486, %v3751, %v3753
      %v3755 = vrot.slane %v3699, 4
      %v3756 = vrot.slane %v3700, 4
      %v3757 = vsel %vm3486, %v3755, %v3756
      %v3758 = vrot.slane %v3701, 4
      %v3759 = vsel %vm3486, %v3756, %v3758
      %v3760 = vrot.slane %v3702, 4
      %v3761 = vrot.slane %v3703, 4
      %v3762 = vsel %vm3486, %v3760, %v3761
      %v3763 = vrot.slane %v3704, 4
      %v3764 = vsel %vm3486, %v3761, %v3763
      %v3765 = vrot.slane %v3705, 4
      %v3766 = vrot.slane %v3706, 4
      %v3767 = vsel %vm3486, %v3765, %v3766
      %v3768 = vrot.slane %v3707, 4
      %v3769 = vsel %vm3486, %v3766, %v3768
      %v3770 = vrot.slane %v3708, 4
      %v3771 = vrot.slane %v3709, 4
      %v3772 = vsel %vm3486, %v3770, %v3771
      %v3773 = vrot.slane %v3710, 4
      %v3774 = vsel %vm3486, %v3771, %v3773
      %v3791 = vadd.f32 %v3667, %v3737
      %v3792 = vadd.f32 %v3668, %v3739
      %v3793 = vadd.f32 %v3669, %v3742
      %v3794 = vadd.f32 %v3670, %v3744
      %v3795 = vadd.f32 %v3671, %v3747
      %v3796 = vadd.f32 %v3672, %v3749
      %v3797 = vadd.f32 %v3673, %v3752
      %v3798 = vadd.f32 %v3674, %v3754
      %v3799 = vadd.f32 %v3675, %v3757
      %v3800 = vadd.f32 %v3676, %v3759
      %v3801 = vadd.f32 %v3677, %v3762
      %v3802 = vadd.f32 %v3678, %v3764
      %v3803 = vadd.f32 %v3679, %v3767
      %v3804 = vadd.f32 %v3680, %v3769
      %v3805 = vadd.f32 %v3681, %v3772
      %v3806 = vadd.f32 %v3682, %v3774
      %v3807 = vlaneseq
      %v3808 = vshrl.u32 %v3807, 7
      %v3809 = vsub.s32 4, %v3808
      %v3810 = vrot.slane %v571, %v3809
      %v3811 = vmul.f32 %v535, %v3810
      %v3812 = vmul.f32 %v536, %v3810
      %v3813 = vmul.f32 %v537, %v3810
      %v3814 = vmul.f32 %v538, %v3810
      %v3815 = vmul.f32 %v539, %v3810
      %v3816 = vmul.f32 %v540, %v3810
      %v3817 = vmul.f32 %v541, %v3810
      %v3818 = vmul.f32 %v542, %v3810
      %v3819 = vmul.f32 %v543, %v3810
      %v3820 = vmul.f32 %v544, %v3810
      %v3821 = vmul.f32 %v545, %v3810
      %v3822 = vmul.f32 %v546, %v3810
      %v3823 = vmul.f32 %v547, %v3810
      %v3824 = vmul.f32 %v548, %v3810
      %v3825 = vmul.f32 %v549, %v3810
      %v3826 = vmul.f32 %v550, %v3810
      %v3827 = vmul.f32 %v551, %v3810
      %v3828 = vmul.f32 %v552, %v3810
      %v3829 = vmul.f32 %v553, %v3810
      %v3830 = vmul.f32 %v554, %v3810
      %v3831 = vmul.f32 %v555, %v3810
      %v3832 = vmul.f32 %v556, %v3810
      %v3833 = vmul.f32 %v557, %v3810
      %v3834 = vmul.f32 %v558, %v3810
      %v3859 = vrot.slane %v3811, 4
      %v3860 = vrot.slane %v3812, 4
      %v3861 = vsel %vm3486, %v3859, %v3860
      %v3862 = vrot.slane %v3813, 4
      %v3863 = vsel %vm3486, %v3860, %v3862
      %v3864 = vrot.slane %v3814, 4
      %v3865 = vrot.slane %v3815, 4
      %v3866 = vsel %vm3486, %v3864, %v3865
      %v3867 = vrot.slane %v3816, 4
      %v3868 = vsel %vm3486, %v3865, %v3867
      %v3869 = vrot.slane %v3817, 4
      %v3870 = vrot.slane %v3818, 4
      %v3871 = vsel %vm3486, %v3869, %v3870
      %v3872 = vrot.slane %v3819, 4
      %v3873 = vsel %vm3486, %v3870, %v3872
      %v3874 = vrot.slane %v3820, 4
      %v3875 = vrot.slane %v3821, 4
      %v3876 = vsel %vm3486, %v3874, %v3875
      %v3877 = vrot.slane %v3822, 4
      %v3878 = vsel %vm3486, %v3875, %v3877
      %v3879 = vrot.slane %v3823, 4
      %v3880 = vrot.slane %v3824, 4
      %v3881 = vsel %vm3486, %v3879, %v3880
      %v3882 = vrot.slane %v3825, 4
      %v3883 = vsel %vm3486, %v3880, %v3882
      %v3884 = vrot.slane %v3826, 4
      %v3885 = vrot.slane %v3827, 4
      %v3886 = vsel %vm3486, %v3884, %v3885
      %v3887 = vrot.slane %v3828, 4
      %v3888 = vsel %vm3486, %v3885, %v3887
      %v3889 = vrot.slane %v3829, 4
      %v3890 = vrot.slane %v3830, 4
      %v3891 = vsel %vm3486, %v3889, %v3890
      %v3892 = vrot.slane %v3831, 4
      %v3893 = vsel %vm3486, %v3890, %v3892
      %v3894 = vrot.slane %v3832, 4
      %v3895 = vrot.slane %v3833, 4
      %v3896 = vsel %vm3486, %v3894, %v3895
      %v3897 = vrot.slane %v3834, 4
      %v3898 = vsel %vm3486, %v3895, %v3897
      %v3915 = vadd.f32 %v3791, %v3861
      %v3916 = vadd.f32 %v3792, %v3863
      %v3917 = vadd.f32 %v3793, %v3866
      %v3918 = vadd.f32 %v3794, %v3868
      %v3919 = vadd.f32 %v3795, %v3871
      %v3920 = vadd.f32 %v3796, %v3873
      %v3921 = vadd.f32 %v3797, %v3876
      %v3922 = vadd.f32 %v3798, %v3878
      %v3923 = vadd.f32 %v3799, %v3881
      %v3924 = vadd.f32 %v3800, %v3883
      %v3925 = vadd.f32 %v3801, %v3886
      %v3926 = vadd.f32 %v3802, %v3888
      %v3927 = vadd.f32 %v3803, %v3891
      %v3928 = vadd.f32 %v3804, %v3893
      %v3929 = vadd.f32 %v3805, %v3896
      %v3930 = vadd.f32 %v3806, %v3898
      %v3931 = vlaneseq
      %v3932 = vshrl.u32 %v3931, 7
      %v3933 = vsub.s32 4, %v3932
      %v3934 = vrot.slane %v572, %v3933
      %v3935 = vmul.f32 %v538, %v3934
      %v3936 = vmul.f32 %v539, %v3934
      %v3937 = vmul.f32 %v540, %v3934
      %v3938 = vmul.f32 %v541, %v3934
      %v3939 = vmul.f32 %v542, %v3934
      %v3940 = vmul.f32 %v543, %v3934
      %v3941 = vmul.f32 %v544, %v3934
      %v3942 = vmul.f32 %v545, %v3934
      %v3943 = vmul.f32 %v546, %v3934
      %v3944 = vmul.f32 %v547, %v3934
      %v3945 = vmul.f32 %v548, %v3934
      %v3946 = vmul.f32 %v549, %v3934
      %v3947 = vmul.f32 %v550, %v3934
      %v3948 = vmul.f32 %v551, %v3934
      %v3949 = vmul.f32 %v552, %v3934
      %v3950 = vmul.f32 %v553, %v3934
      %v3951 = vmul.f32 %v554, %v3934
      %v3952 = vmul.f32 %v555, %v3934
      %v3953 = vmul.f32 %v556, %v3934
      %v3954 = vmul.f32 %v557, %v3934
      %v3955 = vmul.f32 %v558, %v3934
      %v3956 = vmul.f32 %v559, %v3934
      %v3957 = vmul.f32 %v560, %v3934
      %v3958 = vmul.f32 %v561, %v3934
      %v3983 = vrot.slane %v3935, 4
      %v3984 = vrot.slane %v3936, 4
      %v3985 = vsel %vm3486, %v3983, %v3984
      %v3986 = vrot.slane %v3937, 4
      %v3987 = vsel %vm3486, %v3984, %v3986
      %v3988 = vrot.slane %v3938, 4
      %v3989 = vrot.slane %v3939, 4
      %v3990 = vsel %vm3486, %v3988, %v3989
      %v3991 = vrot.slane %v3940, 4
      %v3992 = vsel %vm3486, %v3989, %v3991
      %v3993 = vrot.slane %v3941, 4
      %v3994 = vrot.slane %v3942, 4
      %v3995 = vsel %vm3486, %v3993, %v3994
      %v3996 = vrot.slane %v3943, 4
      %v3997 = vsel %vm3486, %v3994, %v3996
      %v3998 = vrot.slane %v3944, 4
      %v3999 = vrot.slane %v3945, 4
      %v4000 = vsel %vm3486, %v3998, %v3999
      %v4001 = vrot.slane %v3946, 4
      %v4002 = vsel %vm3486, %v3999, %v4001
      %v4003 = vrot.slane %v3947, 4
      %v4004 = vrot.slane %v3948, 4
      %v4005 = vsel %vm3486, %v4003, %v4004
      %v4006 = vrot.slane %v3949, 4
      %v4007 = vsel %vm3486, %v4004, %v4006
      %v4008 = vrot.slane %v3950, 4
      %v4009 = vrot.slane %v3951, 4
      %v4010 = vsel %vm3486, %v4008, %v4009
      %v4011 = vrot.slane %v3952, 4
      %v4012 = vsel %vm3486, %v4009, %v4011
      %v4013 = vrot.slane %v3953, 4
      %v4014 = vrot.slane %v3954, 4
      %v4015 = vsel %vm3486, %v4013, %v4014
      %v4016 = vrot.slane %v3955, 4
      %v4017 = vsel %vm3486, %v4014, %v4016
      %v4018 = vrot.slane %v3956, 4
      %v4019 = vrot.slane %v3957, 4
      %v4020 = vsel %vm3486, %v4018, %v4019
      %v4021 = vrot.slane %v3958, 4
      %v4022 = vsel %vm3486, %v4019, %v4021
      %v4039 = vadd.f32 %v3915, %v3985
      %v4040 = vadd.f32 %v3916, %v3987
      %v4041 = vadd.f32 %v3917, %v3990
      %v4042 = vadd.f32 %v3918, %v3992
      %v4043 = vadd.f32 %v3919, %v3995
      %v4044 = vadd.f32 %v3920, %v3997
      %v4045 = vadd.f32 %v3921, %v4000
      %v4046 = vadd.f32 %v3922, %v4002
      %v4047 = vadd.f32 %v3923, %v4005
      %v4048 = vadd.f32 %v3924, %v4007
      %v4049 = vadd.f32 %v3925, %v4010
      %v4050 = vadd.f32 %v3926, %v4012
      %v4051 = vadd.f32 %v3927, %v4015
      %v4052 = vadd.f32 %v3928, %v4017
      %v4053 = vadd.f32 %v3929, %v4020
      %v4054 = vadd.f32 %v3930, %v4022
      %v4055 = vlaneseq
      %v4056 = vshrl.u32 %v4055, 7
      %v4057 = vsub.s32 4, %v4056
      %v4058 = vrot.slane %v573, %v4057
      %v4059 = vmul.f32 %v541, %v4058
      %v4060 = vmul.f32 %v542, %v4058
      %v4061 = vmul.f32 %v543, %v4058
      %v4062 = vmul.f32 %v544, %v4058
      %v4063 = vmul.f32 %v545, %v4058
      %v4064 = vmul.f32 %v546, %v4058
      %v4065 = vmul.f32 %v547, %v4058
      %v4066 = vmul.f32 %v548, %v4058
      %v4067 = vmul.f32 %v549, %v4058
      %v4068 = vmul.f32 %v550, %v4058
      %v4069 = vmul.f32 %v551, %v4058
      %v4070 = vmul.f32 %v552, %v4058
      %v4071 = vmul.f32 %v553, %v4058
      %v4072 = vmul.f32 %v554, %v4058
      %v4073 = vmul.f32 %v555, %v4058
      %v4074 = vmul.f32 %v556, %v4058
      %v4075 = vmul.f32 %v557, %v4058
      %v4076 = vmul.f32 %v558, %v4058
      %v4077 = vmul.f32 %v559, %v4058
      %v4078 = vmul.f32 %v560, %v4058
      %v4079 = vmul.f32 %v561, %v4058
      %v4080 = vmul.f32 %v562, %v4058
      %v4081 = vmul.f32 %v563, %v4058
      %v4082 = vmul.f32 %v564, %v4058
      %v4107 = vrot.slane %v4059, 4
      %v4108 = vrot.slane %v4060, 4
      %v4109 = vsel %vm3486, %v4107, %v4108
      %v4110 = vrot.slane %v4061, 4
      %v4111 = vsel %vm3486, %v4108, %v4110
      %v4112 = vrot.slane %v4062, 4
      %v4113 = vrot.slane %v4063, 4
      %v4114 = vsel %vm3486, %v4112, %v4113
      %v4115 = vrot.slane %v4064, 4
      %v4116 = vsel %vm3486, %v4113, %v4115
      %v4117 = vrot.slane %v4065, 4
      %v4118 = vrot.slane %v4066, 4
      %v4119 = vsel %vm3486, %v4117, %v4118
      %v4120 = vrot.slane %v4067, 4
      %v4121 = vsel %vm3486, %v4118, %v4120
      %v4122 = vrot.slane %v4068, 4
      %v4123 = vrot.slane %v4069, 4
      %v4124 = vsel %vm3486, %v4122, %v4123
      %v4125 = vrot.slane %v4070, 4
      %v4126 = vsel %vm3486, %v4123, %v4125
      %v4127 = vrot.slane %v4071, 4
      %v4128 = vrot.slane %v4072, 4
      %v4129 = vsel %vm3486, %v4127, %v4128
      %v4130 = vrot.slane %v4073, 4
      %v4131 = vsel %vm3486, %v4128, %v4130
      %v4132 = vrot.slane %v4074, 4
      %v4133 = vrot.slane %v4075, 4
      %v4134 = vsel %vm3486, %v4132, %v4133
      %v4135 = vrot.slane %v4076, 4
      %v4136 = vsel %vm3486, %v4133, %v4135
      %v4137 = vrot.slane %v4077, 4
      %v4138 = vrot.slane %v4078, 4
      %v4139 = vsel %vm3486, %v4137, %v4138
      %v4140 = vrot.slane %v4079, 4
      %v4141 = vsel %vm3486, %v4138, %v4140
      %v4142 = vrot.slane %v4080, 4
      %v4143 = vrot.slane %v4081, 4
      %v4144 = vsel %vm3486, %v4142, %v4143
      %v4145 = vrot.slane %v4082, 4
      %v4146 = vsel %vm3486, %v4143, %v4145
      %v4163 = vadd.f32 %v4039, %v4109
      %v4164 = vadd.f32 %v4040, %v4111
      %v4165 = vadd.f32 %v4041, %v4114
      %v4166 = vadd.f32 %v4042, %v4116
      %v4167 = vadd.f32 %v4043, %v4119
      %v4168 = vadd.f32 %v4044, %v4121
      %v4169 = vadd.f32 %v4045, %v4124
      %v4170 = vadd.f32 %v4046, %v4126
      %v4171 = vadd.f32 %v4047, %v4129
      %v4172 = vadd.f32 %v4048, %v4131
      %v4173 = vadd.f32 %v4049, %v4134
      %v4174 = vadd.f32 %v4050, %v4136
      %v4175 = vadd.f32 %v4051, %v4139
      %v4176 = vadd.f32 %v4052, %v4141
      %v4177 = vadd.f32 %v4053, %v4144
      %v4178 = vadd.f32 %v4054, %v4146
      %v4179 = vlaneseq
      %v4180 = vshrl.u32 %v4179, 7
      %v4181 = vsub.s32 4, %v4180
      %v4182 = vrot.slane %v574, %v4181
      %v4183 = vmul.f32 %v544, %v4182
      %v4184 = vmul.f32 %v545, %v4182
      %v4185 = vmul.f32 %v546, %v4182
      %v4186 = vmul.f32 %v547, %v4182
      %v4187 = vmul.f32 %v548, %v4182
      %v4188 = vmul.f32 %v549, %v4182
      %v4189 = vmul.f32 %v550, %v4182
      %v4190 = vmul.f32 %v551, %v4182
      %v4191 = vmul.f32 %v552, %v4182
      %v4192 = vmul.f32 %v553, %v4182
      %v4193 = vmul.f32 %v554, %v4182
      %v4194 = vmul.f32 %v555, %v4182
      %v4195 = vmul.f32 %v556, %v4182
      %v4196 = vmul.f32 %v557, %v4182
      %v4197 = vmul.f32 %v558, %v4182
      %v4198 = vmul.f32 %v559, %v4182
      %v4199 = vmul.f32 %v560, %v4182
      %v4200 = vmul.f32 %v561, %v4182
      %v4201 = vmul.f32 %v562, %v4182
      %v4202 = vmul.f32 %v563, %v4182
      %v4203 = vmul.f32 %v564, %v4182
      %v4204 = vmul.f32 %v565, %v4182
      %v4205 = vmul.f32 %v566, %v4182
      %v4206 = vmul.f32 %v567, %v4182
      %v4231 = vrot.slane %v4183, 4
      %v4232 = vrot.slane %v4184, 4
      %v4233 = vsel %vm3486, %v4231, %v4232
      %v4234 = vrot.slane %v4185, 4
      %v4235 = vsel %vm3486, %v4232, %v4234
      %v4236 = vrot.slane %v4186, 4
      %v4237 = vrot.slane %v4187, 4
      %v4238 = vsel %vm3486, %v4236, %v4237
      %v4239 = vrot.slane %v4188, 4
      %v4240 = vsel %vm3486, %v4237, %v4239
      %v4241 = vrot.slane %v4189, 4
      %v4242 = vrot.slane %v4190, 4
      %v4243 = vsel %vm3486, %v4241, %v4242
      %v4244 = vrot.slane %v4191, 4
      %v4245 = vsel %vm3486, %v4242, %v4244
      %v4246 = vrot.slane %v4192, 4
      %v4247 = vrot.slane %v4193, 4
      %v4248 = vsel %vm3486, %v4246, %v4247
      %v4249 = vrot.slane %v4194, 4
      %v4250 = vsel %vm3486, %v4247, %v4249
      %v4251 = vrot.slane %v4195, 4
      %v4252 = vrot.slane %v4196, 4
      %v4253 = vsel %vm3486, %v4251, %v4252
      %v4254 = vrot.slane %v4197, 4
      %v4255 = vsel %vm3486, %v4252, %v4254
      %v4256 = vrot.slane %v4198, 4
      %v4257 = vrot.slane %v4199, 4
      %v4258 = vsel %vm3486, %v4256, %v4257
      %v4259 = vrot.slane %v4200, 4
      %v4260 = vsel %vm3486, %v4257, %v4259
      %v4261 = vrot.slane %v4201, 4
      %v4262 = vrot.slane %v4202, 4
      %v4263 = vsel %vm3486, %v4261, %v4262
      %v4264 = vrot.slane %v4203, 4
      %v4265 = vsel %vm3486, %v4262, %v4264
      %v4266 = vrot.slane %v4204, 4
      %v4267 = vrot.slane %v4205, 4
      %v4268 = vsel %vm3486, %v4266, %v4267
      %v4269 = vrot.slane %v4206, 4
      %v4270 = vsel %vm3486, %v4267, %v4269
      %v4287 = vadd.f32 %v4163, %v4233
      %v4288 = vadd.f32 %v4164, %v4235
      %v4289 = vadd.f32 %v4165, %v4238
      %v4290 = vadd.f32 %v4166, %v4240
      %v4291 = vadd.f32 %v4167, %v4243
      %v4292 = vadd.f32 %v4168, %v4245
      %v4293 = vadd.f32 %v4169, %v4248
      %v4294 = vadd.f32 %v4170, %v4250
      %v4295 = vadd.f32 %v4171, %v4253
      %v4296 = vadd.f32 %v4172, %v4255
      %v4297 = vadd.f32 %v4173, %v4258
      %v4298 = vadd.f32 %v4174, %v4260
      %v4299 = vadd.f32 %v4175, %v4263
      %v4300 = vadd.f32 %v4176, %v4265
      %v4301 = vadd.f32 %v4177, %v4268
      %v4302 = vadd.f32 %v4178, %v4270
      %v4303 = vlaneseq
      %v4304 = vshrl.u32 %v4303, 7
      %v4305 = vsub.s32 5, %v4304
      %v4306 = vrot.slane %v568, %v4305
      %v4307 = vmul.f32 %v526, %v4306
      %v4308 = vmul.f32 %v527, %v4306
      %v4309 = vmul.f32 %v528, %v4306
      %v4310 = vmul.f32 %v529, %v4306
      %v4311 = vmul.f32 %v530, %v4306
      %v4312 = vmul.f32 %v531, %v4306
      %v4313 = vmul.f32 %v532, %v4306
      %v4314 = vmul.f32 %v533, %v4306
      %v4315 = vmul.f32 %v534, %v4306
      %v4316 = vmul.f32 %v535, %v4306
      %v4317 = vmul.f32 %v536, %v4306
      %v4318 = vmul.f32 %v537, %v4306
      %v4319 = vmul.f32 %v538, %v4306
      %v4320 = vmul.f32 %v539, %v4306
      %v4321 = vmul.f32 %v540, %v4306
      %v4322 = vmul.f32 %v541, %v4306
      %v4323 = vmul.f32 %v542, %v4306
      %v4324 = vmul.f32 %v543, %v4306
      %v4325 = vmul.f32 %v544, %v4306
      %v4326 = vmul.f32 %v545, %v4306
      %v4327 = vmul.f32 %v546, %v4306
      %v4328 = vmul.f32 %v547, %v4306
      %v4329 = vmul.f32 %v548, %v4306
      %v4330 = vmul.f32 %v549, %v4306
      %vm4355 = vcmask 1042432
      %v4356 = vrot.slane %v4307, 5
      %v4357 = vrot.slane %v4308, 5
      %v4358 = vsel %vm4355, %v4356, %v4357
      %v4359 = vrot.slane %v4309, 5
      %v4360 = vsel %vm4355, %v4357, %v4359
      %v4361 = vrot.slane %v4310, 5
      %v4362 = vrot.slane %v4311, 5
      %v4363 = vsel %vm4355, %v4361, %v4362
      %v4364 = vrot.slane %v4312, 5
      %v4365 = vsel %vm4355, %v4362, %v4364
      %v4366 = vrot.slane %v4313, 5
      %v4367 = vrot.slane %v4314, 5
      %v4368 = vsel %vm4355, %v4366, %v4367
      %v4369 = vrot.slane %v4315, 5
      %v4370 = vsel %vm4355, %v4367, %v4369
      %v4371 = vrot.slane %v4316, 5
      %v4372 = vrot.slane %v4317, 5
      %v4373 = vsel %vm4355, %v4371, %v4372
      %v4374 = vrot.slane %v4318, 5
      %v4375 = vsel %vm4355, %v4372, %v4374
      %v4376 = vrot.slane %v4319, 5
      %v4377 = vrot.slane %v4320, 5
      %v4378 = vsel %vm4355, %v4376, %v4377
      %v4379 = vrot.slane %v4321, 5
      %v4380 = vsel %vm4355, %v4377, %v4379
      %v4381 = vrot.slane %v4322, 5
      %v4382 = vrot.slane %v4323, 5
      %v4383 = vsel %vm4355, %v4381, %v4382
      %v4384 = vrot.slane %v4324, 5
      %v4385 = vsel %vm4355, %v4382, %v4384
      %v4386 = vrot.slane %v4325, 5
      %v4387 = vrot.slane %v4326, 5
      %v4388 = vsel %vm4355, %v4386, %v4387
      %v4389 = vrot.slane %v4327, 5
      %v4390 = vsel %vm4355, %v4387, %v4389
      %v4391 = vrot.slane %v4328, 5
      %v4392 = vrot.slane %v4329, 5
      %v4393 = vsel %vm4355, %v4391, %v4392
      %v4394 = vrot.slane %v4330, 5
      %v4395 = vsel %vm4355, %v4392, %v4394
      %v4412 = vadd.f32 %v4287, %v4358
      %v4413 = vadd.f32 %v4288, %v4360
      %v4414 = vadd.f32 %v4289, %v4363
      %v4415 = vadd.f32 %v4290, %v4365
      %v4416 = vadd.f32 %v4291, %v4368
      %v4417 = vadd.f32 %v4292, %v4370
      %v4418 = vadd.f32 %v4293, %v4373
      %v4419 = vadd.f32 %v4294, %v4375
      %v4420 = vadd.f32 %v4295, %v4378
      %v4421 = vadd.f32 %v4296, %v4380
      %v4422 = vadd.f32 %v4297, %v4383
      %v4423 = vadd.f32 %v4298, %v4385
      %v4424 = vadd.f32 %v4299, %v4388
      %v4425 = vadd.f32 %v4300, %v4390
      %v4426 = vadd.f32 %v4301, %v4393
      %v4427 = vadd.f32 %v4302, %v4395
      %v4428 = vlaneseq
      %v4429 = vshrl.u32 %v4428, 7
      %v4430 = vsub.s32 5, %v4429
      %v4431 = vrot.slane %v569, %v4430
      %v4432 = vmul.f32 %v529, %v4431
      %v4433 = vmul.f32 %v530, %v4431
      %v4434 = vmul.f32 %v531, %v4431
      %v4435 = vmul.f32 %v532, %v4431
      %v4436 = vmul.f32 %v533, %v4431
      %v4437 = vmul.f32 %v534, %v4431
      %v4438 = vmul.f32 %v535, %v4431
      %v4439 = vmul.f32 %v536, %v4431
      %v4440 = vmul.f32 %v537, %v4431
      %v4441 = vmul.f32 %v538, %v4431
      %v4442 = vmul.f32 %v539, %v4431
      %v4443 = vmul.f32 %v540, %v4431
      %v4444 = vmul.f32 %v541, %v4431
      %v4445 = vmul.f32 %v542, %v4431
      %v4446 = vmul.f32 %v543, %v4431
      %v4447 = vmul.f32 %v544, %v4431
      %v4448 = vmul.f32 %v545, %v4431
      %v4449 = vmul.f32 %v546, %v4431
      %v4450 = vmul.f32 %v547, %v4431
      %v4451 = vmul.f32 %v548, %v4431
      %v4452 = vmul.f32 %v549, %v4431
      %v4453 = vmul.f32 %v550, %v4431
      %v4454 = vmul.f32 %v551, %v4431
      %v4455 = vmul.f32 %v552, %v4431
      %v4480 = vrot.slane %v4432, 5
      %v4481 = vrot.slane %v4433, 5
      %v4482 = vsel %vm4355, %v4480, %v4481
      %v4483 = vrot.slane %v4434, 5
      %v4484 = vsel %vm4355, %v4481, %v4483
      %v4485 = vrot.slane %v4435, 5
      %v4486 = vrot.slane %v4436, 5
      %v4487 = vsel %vm4355, %v4485, %v4486
      %v4488 = vrot.slane %v4437, 5
      %v4489 = vsel %vm4355, %v4486, %v4488
      %v4490 = vrot.slane %v4438, 5
      %v4491 = vrot.slane %v4439, 5
      %v4492 = vsel %vm4355, %v4490, %v4491
      %v4493 = vrot.slane %v4440, 5
      %v4494 = vsel %vm4355, %v4491, %v4493
      %v4495 = vrot.slane %v4441, 5
      %v4496 = vrot.slane %v4442, 5
      %v4497 = vsel %vm4355, %v4495, %v4496
      %v4498 = vrot.slane %v4443, 5
      %v4499 = vsel %vm4355, %v4496, %v4498
      %v4500 = vrot.slane %v4444, 5
      %v4501 = vrot.slane %v4445, 5
      %v4502 = vsel %vm4355, %v4500, %v4501
      %v4503 = vrot.slane %v4446, 5
      %v4504 = vsel %vm4355, %v4501, %v4503
      %v4505 = vrot.slane %v4447, 5
      %v4506 = vrot.slane %v4448, 5
      %v4507 = vsel %vm4355, %v4505, %v4506
      %v4508 = vrot.slane %v4449, 5
      %v4509 = vsel %vm4355, %v4506, %v4508
      %v4510 = vrot.slane %v4450, 5
      %v4511 = vrot.slane %v4451, 5
      %v4512 = vsel %vm4355, %v4510, %v4511
      %v4513 = vrot.slane %v4452, 5
      %v4514 = vsel %vm4355, %v4511, %v4513
      %v4515 = vrot.slane %v4453, 5
      %v4516 = vrot.slane %v4454, 5
      %v4517 = vsel %vm4355, %v4515, %v4516
      %v4518 = vrot.slane %v4455, 5
      %v4519 = vsel %vm4355, %v4516, %v4518
      %v4536 = vadd.f32 %v4412, %v4482
      %v4537 = vadd.f32 %v4413, %v4484
      %v4538 = vadd.f32 %v4414, %v4487
      %v4539 = vadd.f32 %v4415, %v4489
      %v4540 = vadd.f32 %v4416, %v4492
      %v4541 = vadd.f32 %v4417, %v4494
      %v4542 = vadd.f32 %v4418, %v4497
      %v4543 = vadd.f32 %v4419, %v4499
      %v4544 = vadd.f32 %v4420, %v4502
      %v4545 = vadd.f32 %v4421, %v4504
      %v4546 = vadd.f32 %v4422, %v4507
      %v4547 = vadd.f32 %v4423, %v4509
      %v4548 = vadd.f32 %v4424, %v4512
      %v4549 = vadd.f32 %v4425, %v4514
      %v4550 = vadd.f32 %v4426, %v4517
      %v4551 = vadd.f32 %v4427, %v4519
      %v4552 = vlaneseq
      %v4553 = vshrl.u32 %v4552, 7
      %v4554 = vsub.s32 5, %v4553
      %v4555 = vrot.slane %v570, %v4554
      %v4556 = vmul.f32 %v532, %v4555
      %v4557 = vmul.f32 %v533, %v4555
      %v4558 = vmul.f32 %v534, %v4555
      %v4559 = vmul.f32 %v535, %v4555
      %v4560 = vmul.f32 %v536, %v4555
      %v4561 = vmul.f32 %v537, %v4555
      %v4562 = vmul.f32 %v538, %v4555
      %v4563 = vmul.f32 %v539, %v4555
      %v4564 = vmul.f32 %v540, %v4555
      %v4565 = vmul.f32 %v541, %v4555
      %v4566 = vmul.f32 %v542, %v4555
      %v4567 = vmul.f32 %v543, %v4555
      %v4568 = vmul.f32 %v544, %v4555
      %v4569 = vmul.f32 %v545, %v4555
      %v4570 = vmul.f32 %v546, %v4555
      %v4571 = vmul.f32 %v547, %v4555
      %v4572 = vmul.f32 %v548, %v4555
      %v4573 = vmul.f32 %v549, %v4555
      %v4574 = vmul.f32 %v550, %v4555
      %v4575 = vmul.f32 %v551, %v4555
      %v4576 = vmul.f32 %v552, %v4555
      %v4577 = vmul.f32 %v553, %v4555
      %v4578 = vmul.f32 %v554, %v4555
      %v4579 = vmul.f32 %v555, %v4555
      %v4604 = vrot.slane %v4556, 5
      %v4605 = vrot.slane %v4557, 5
      %v4606 = vsel %vm4355, %v4604, %v4605
      %v4607 = vrot.slane %v4558, 5
      %v4608 = vsel %vm4355, %v4605, %v4607
      %v4609 = vrot.slane %v4559, 5
      %v4610 = vrot.slane %v4560, 5
      %v4611 = vsel %vm4355, %v4609, %v4610
      %v4612 = vrot.slane %v4561, 5
      %v4613 = vsel %vm4355, %v4610, %v4612
      %v4614 = vrot.slane %v4562, 5
      %v4615 = vrot.slane %v4563, 5
      %v4616 = vsel %vm4355, %v4614, %v4615
      %v4617 = vrot.slane %v4564, 5
      %v4618 = vsel %vm4355, %v4615, %v4617
      %v4619 = vrot.slane %v4565, 5
      %v4620 = vrot.slane %v4566, 5
      %v4621 = vsel %vm4355, %v4619, %v4620
      %v4622 = vrot.slane %v4567, 5
      %v4623 = vsel %vm4355, %v4620, %v4622
      %v4624 = vrot.slane %v4568, 5
      %v4625 = vrot.slane %v4569, 5
      %v4626 = vsel %vm4355, %v4624, %v4625
      %v4627 = vrot.slane %v4570, 5
      %v4628 = vsel %vm4355, %v4625, %v4627
      %v4629 = vrot.slane %v4571, 5
      %v4630 = vrot.slane %v4572, 5
      %v4631 = vsel %vm4355, %v4629, %v4630
      %v4632 = vrot.slane %v4573, 5
      %v4633 = vsel %vm4355, %v4630, %v4632
      %v4634 = vrot.slane %v4574, 5
      %v4635 = vrot.slane %v4575, 5
      %v4636 = vsel %vm4355, %v4634, %v4635
      %v4637 = vrot.slane %v4576, 5
      %v4638 = vsel %vm4355, %v4635, %v4637
      %v4639 = vrot.slane %v4577, 5
      %v4640 = vrot.slane %v4578, 5
      %v4641 = vsel %vm4355, %v4639, %v4640
      %v4642 = vrot.slane %v4579, 5
      %v4643 = vsel %vm4355, %v4640, %v4642
      %v4660 = vadd.f32 %v4536, %v4606
      %v4661 = vadd.f32 %v4537, %v4608
      %v4662 = vadd.f32 %v4538, %v4611
      %v4663 = vadd.f32 %v4539, %v4613
      %v4664 = vadd.f32 %v4540, %v4616
      %v4665 = vadd.f32 %v4541, %v4618
      %v4666 = vadd.f32 %v4542, %v4621
      %v4667 = vadd.f32 %v4543, %v4623
      %v4668 = vadd.f32 %v4544, %v4626
      %v4669 = vadd.f32 %v4545, %v4628
      %v4670 = vadd.f32 %v4546, %v4631
      %v4671 = vadd.f32 %v4547, %v4633
      %v4672 = vadd.f32 %v4548, %v4636
      %v4673 = vadd.f32 %v4549, %v4638
      %v4674 = vadd.f32 %v4550, %v4641
      %v4675 = vadd.f32 %v4551, %v4643
      %v4676 = vlaneseq
      %v4677 = vshrl.u32 %v4676, 7
      %v4678 = vsub.s32 5, %v4677
      %v4679 = vrot.slane %v571, %v4678
      %v4680 = vmul.f32 %v535, %v4679
      %v4681 = vmul.f32 %v536, %v4679
      %v4682 = vmul.f32 %v537, %v4679
      %v4683 = vmul.f32 %v538, %v4679
      %v4684 = vmul.f32 %v539, %v4679
      %v4685 = vmul.f32 %v540, %v4679
      %v4686 = vmul.f32 %v541, %v4679
      %v4687 = vmul.f32 %v542, %v4679
      %v4688 = vmul.f32 %v543, %v4679
      %v4689 = vmul.f32 %v544, %v4679
      %v4690 = vmul.f32 %v545, %v4679
      %v4691 = vmul.f32 %v546, %v4679
      %v4692 = vmul.f32 %v547, %v4679
      %v4693 = vmul.f32 %v548, %v4679
      %v4694 = vmul.f32 %v549, %v4679
      %v4695 = vmul.f32 %v550, %v4679
      %v4696 = vmul.f32 %v551, %v4679
      %v4697 = vmul.f32 %v552, %v4679
      %v4698 = vmul.f32 %v553, %v4679
      %v4699 = vmul.f32 %v554, %v4679
      %v4700 = vmul.f32 %v555, %v4679
      %v4701 = vmul.f32 %v556, %v4679
      %v4702 = vmul.f32 %v557, %v4679
      %v4703 = vmul.f32 %v558, %v4679
      %v4728 = vrot.slane %v4680, 5
      %v4729 = vrot.slane %v4681, 5
      %v4730 = vsel %vm4355, %v4728, %v4729
      %v4731 = vrot.slane %v4682, 5
      %v4732 = vsel %vm4355, %v4729, %v4731
      %v4733 = vrot.slane %v4683, 5
      %v4734 = vrot.slane %v4684, 5
      %v4735 = vsel %vm4355, %v4733, %v4734
      %v4736 = vrot.slane %v4685, 5
      %v4737 = vsel %vm4355, %v4734, %v4736
      %v4738 = vrot.slane %v4686, 5
      %v4739 = vrot.slane %v4687, 5
      %v4740 = vsel %vm4355, %v4738, %v4739
      %v4741 = vrot.slane %v4688, 5
      %v4742 = vsel %vm4355, %v4739, %v4741
      %v4743 = vrot.slane %v4689, 5
      %v4744 = vrot.slane %v4690, 5
      %v4745 = vsel %vm4355, %v4743, %v4744
      %v4746 = vrot.slane %v4691, 5
      %v4747 = vsel %vm4355, %v4744, %v4746
      %v4748 = vrot.slane %v4692, 5
      %v4749 = vrot.slane %v4693, 5
      %v4750 = vsel %vm4355, %v4748, %v4749
      %v4751 = vrot.slane %v4694, 5
      %v4752 = vsel %vm4355, %v4749, %v4751
      %v4753 = vrot.slane %v4695, 5
      %v4754 = vrot.slane %v4696, 5
      %v4755 = vsel %vm4355, %v4753, %v4754
      %v4756 = vrot.slane %v4697, 5
      %v4757 = vsel %vm4355, %v4754, %v4756
      %v4758 = vrot.slane %v4698, 5
      %v4759 = vrot.slane %v4699, 5
      %v4760 = vsel %vm4355, %v4758, %v4759
      %v4761 = vrot.slane %v4700, 5
      %v4762 = vsel %vm4355, %v4759, %v4761
      %v4763 = vrot.slane %v4701, 5
      %v4764 = vrot.slane %v4702, 5
      %v4765 = vsel %vm4355, %v4763, %v4764
      %v4766 = vrot.slane %v4703, 5
      %v4767 = vsel %vm4355, %v4764, %v4766
      %v4784 = vadd.f32 %v4660, %v4730
      %v4785 = vadd.f32 %v4661, %v4732
      %v4786 = vadd.f32 %v4662, %v4735
      %v4787 = vadd.f32 %v4663, %v4737
      %v4788 = vadd.f32 %v4664, %v4740
      %v4789 = vadd.f32 %v4665, %v4742
      %v4790 = vadd.f32 %v4666, %v4745
      %v4791 = vadd.f32 %v4667, %v4747
      %v4792 = vadd.f32 %v4668, %v4750
      %v4793 = vadd.f32 %v4669, %v4752
      %v4794 = vadd.f32 %v4670, %v4755
      %v4795 = vadd.f32 %v4671, %v4757
      %v4796 = vadd.f32 %v4672, %v4760
      %v4797 = vadd.f32 %v4673, %v4762
      %v4798 = vadd.f32 %v4674, %v4765
      %v4799 = vadd.f32 %v4675, %v4767
      %v4800 = vlaneseq
      %v4801 = vshrl.u32 %v4800, 7
      %v4802 = vsub.s32 5, %v4801
      %v4803 = vrot.slane %v572, %v4802
      %v4804 = vmul.f32 %v538, %v4803
      %v4805 = vmul.f32 %v539, %v4803
      %v4806 = vmul.f32 %v540, %v4803
      %v4807 = vmul.f32 %v541, %v4803
      %v4808 = vmul.f32 %v542, %v4803
      %v4809 = vmul.f32 %v543, %v4803
      %v4810 = vmul.f32 %v544, %v4803
      %v4811 = vmul.f32 %v545, %v4803
      %v4812 = vmul.f32 %v546, %v4803
      %v4813 = vmul.f32 %v547, %v4803
      %v4814 = vmul.f32 %v548, %v4803
      %v4815 = vmul.f32 %v549, %v4803
      %v4816 = vmul.f32 %v550, %v4803
      %v4817 = vmul.f32 %v551, %v4803
      %v4818 = vmul.f32 %v552, %v4803
      %v4819 = vmul.f32 %v553, %v4803
      %v4820 = vmul.f32 %v554, %v4803
      %v4821 = vmul.f32 %v555, %v4803
      %v4822 = vmul.f32 %v556, %v4803
      %v4823 = vmul.f32 %v557, %v4803
      %v4824 = vmul.f32 %v558, %v4803
      %v4825 = vmul.f32 %v559, %v4803
      %v4826 = vmul.f32 %v560, %v4803
      %v4827 = vmul.f32 %v561, %v4803
      %v4852 = vrot.slane %v4804, 5
      %v4853 = vrot.slane %v4805, 5
      %v4854 = vsel %vm4355, %v4852, %v4853
      %v4855 = vrot.slane %v4806, 5
      %v4856 = vsel %vm4355, %v4853, %v4855
      %v4857 = vrot.slane %v4807, 5
      %v4858 = vrot.slane %v4808, 5
      %v4859 = vsel %vm4355, %v4857, %v4858
      %v4860 = vrot.slane %v4809, 5
      %v4861 = vsel %vm4355, %v4858, %v4860
      %v4862 = vrot.slane %v4810, 5
      %v4863 = vrot.slane %v4811, 5
      %v4864 = vsel %vm4355, %v4862, %v4863
      %v4865 = vrot.slane %v4812, 5
      %v4866 = vsel %vm4355, %v4863, %v4865
      %v4867 = vrot.slane %v4813, 5
      %v4868 = vrot.slane %v4814, 5
      %v4869 = vsel %vm4355, %v4867, %v4868
      %v4870 = vrot.slane %v4815, 5
      %v4871 = vsel %vm4355, %v4868, %v4870
      %v4872 = vrot.slane %v4816, 5
      %v4873 = vrot.slane %v4817, 5
      %v4874 = vsel %vm4355, %v4872, %v4873
      %v4875 = vrot.slane %v4818, 5
      %v4876 = vsel %vm4355, %v4873, %v4875
      %v4877 = vrot.slane %v4819, 5
      %v4878 = vrot.slane %v4820, 5
      %v4879 = vsel %vm4355, %v4877, %v4878
      %v4880 = vrot.slane %v4821, 5
      %v4881 = vsel %vm4355, %v4878, %v4880
      %v4882 = vrot.slane %v4822, 5
      %v4883 = vrot.slane %v4823, 5
      %v4884 = vsel %vm4355, %v4882, %v4883
      %v4885 = vrot.slane %v4824, 5
      %v4886 = vsel %vm4355, %v4883, %v4885
      %v4887 = vrot.slane %v4825, 5
      %v4888 = vrot.slane %v4826, 5
      %v4889 = vsel %vm4355, %v4887, %v4888
      %v4890 = vrot.slane %v4827, 5
      %v4891 = vsel %vm4355, %v4888, %v4890
      %v4908 = vadd.f32 %v4784, %v4854
      %v4909 = vadd.f32 %v4785, %v4856
      %v4910 = vadd.f32 %v4786, %v4859
      %v4911 = vadd.f32 %v4787, %v4861
      %v4912 = vadd.f32 %v4788, %v4864
      %v4913 = vadd.f32 %v4789, %v4866
      %v4914 = vadd.f32 %v4790, %v4869
      %v4915 = vadd.f32 %v4791, %v4871
      %v4916 = vadd.f32 %v4792, %v4874
      %v4917 = vadd.f32 %v4793, %v4876
      %v4918 = vadd.f32 %v4794, %v4879
      %v4919 = vadd.f32 %v4795, %v4881
      %v4920 = vadd.f32 %v4796, %v4884
      %v4921 = vadd.f32 %v4797, %v4886
      %v4922 = vadd.f32 %v4798, %v4889
      %v4923 = vadd.f32 %v4799, %v4891
      %v4924 = vlaneseq
      %v4925 = vshrl.u32 %v4924, 7
      %v4926 = vsub.s32 5, %v4925
      %v4927 = vrot.slane %v573, %v4926
      %v4928 = vmul.f32 %v541, %v4927
      %v4929 = vmul.f32 %v542, %v4927
      %v4930 = vmul.f32 %v543, %v4927
      %v4931 = vmul.f32 %v544, %v4927
      %v4932 = vmul.f32 %v545, %v4927
      %v4933 = vmul.f32 %v546, %v4927
      %v4934 = vmul.f32 %v547, %v4927
      %v4935 = vmul.f32 %v548, %v4927
      %v4936 = vmul.f32 %v549, %v4927
      %v4937 = vmul.f32 %v550, %v4927
      %v4938 = vmul.f32 %v551, %v4927
      %v4939 = vmul.f32 %v552, %v4927
      %v4940 = vmul.f32 %v553, %v4927
      %v4941 = vmul.f32 %v554, %v4927
      %v4942 = vmul.f32 %v555, %v4927
      %v4943 = vmul.f32 %v556, %v4927
      %v4944 = vmul.f32 %v557, %v4927
      %v4945 = vmul.f32 %v558, %v4927
      %v4946 = vmul.f32 %v559, %v4927
      %v4947 = vmul.f32 %v560, %v4927
      %v4948 = vmul.f32 %v561, %v4927
      %v4949 = vmul.f32 %v562, %v4927
      %v4950 = vmul.f32 %v563, %v4927
      %v4951 = vmul.f32 %v564, %v4927
      %v4976 = vrot.slane %v4928, 5
      %v4977 = vrot.slane %v4929, 5
      %v4978 = vsel %vm4355, %v4976, %v4977
      %v4979 = vrot.slane %v4930, 5
      %v4980 = vsel %vm4355, %v4977, %v4979
      %v4981 = vrot.slane %v4931, 5
      %v4982 = vrot.slane %v4932, 5
      %v4983 = vsel %vm4355, %v4981, %v4982
      %v4984 = vrot.slane %v4933, 5
      %v4985 = vsel %vm4355, %v4982, %v4984
      %v4986 = vrot.slane %v4934, 5
      %v4987 = vrot.slane %v4935, 5
      %v4988 = vsel %vm4355, %v4986, %v4987
      %v4989 = vrot.slane %v4936, 5
      %v4990 = vsel %vm4355, %v4987, %v4989
      %v4991 = vrot.slane %v4937, 5
      %v4992 = vrot.slane %v4938, 5
      %v4993 = vsel %vm4355, %v4991, %v4992
      %v4994 = vrot.slane %v4939, 5
      %v4995 = vsel %vm4355, %v4992, %v4994
      %v4996 = vrot.slane %v4940, 5
      %v4997 = vrot.slane %v4941, 5
      %v4998 = vsel %vm4355, %v4996, %v4997
      %v4999 = vrot.slane %v4942, 5
      %v5000 = vsel %vm4355, %v4997, %v4999
      %v5001 = vrot.slane %v4943, 5
      %v5002 = vrot.slane %v4944, 5
      %v5003 = vsel %vm4355, %v5001, %v5002
      %v5004 = vrot.slane %v4945, 5
      %v5005 = vsel %vm4355, %v5002, %v5004
      %v5006 = vrot.slane %v4946, 5
      %v5007 = vrot.slane %v4947, 5
      %v5008 = vsel %vm4355, %v5006, %v5007
      %v5009 = vrot.slane %v4948, 5
      %v5010 = vsel %vm4355, %v5007, %v5009
      %v5011 = vrot.slane %v4949, 5
      %v5012 = vrot.slane %v4950, 5
      %v5013 = vsel %vm4355, %v5011, %v5012
      %v5014 = vrot.slane %v4951, 5
      %v5015 = vsel %vm4355, %v5012, %v5014
      %v5032 = vadd.f32 %v4908, %v4978
      %v5033 = vadd.f32 %v4909, %v4980
      %v5034 = vadd.f32 %v4910, %v4983
      %v5035 = vadd.f32 %v4911, %v4985
      %v5036 = vadd.f32 %v4912, %v4988
      %v5037 = vadd.f32 %v4913, %v4990
      %v5038 = vadd.f32 %v4914, %v4993
      %v5039 = vadd.f32 %v4915, %v4995
      %v5040 = vadd.f32 %v4916, %v4998
      %v5041 = vadd.f32 %v4917, %v5000
      %v5042 = vadd.f32 %v4918, %v5003
      %v5043 = vadd.f32 %v4919, %v5005
      %v5044 = vadd.f32 %v4920, %v5008
      %v5045 = vadd.f32 %v4921, %v5010
      %v5046 = vadd.f32 %v4922, %v5013
      %v5047 = vadd.f32 %v4923, %v5015
      %v5048 = vlaneseq
      %v5049 = vshrl.u32 %v5048, 7
      %v5050 = vsub.s32 5, %v5049
      %v5051 = vrot.slane %v574, %v5050
      %v5052 = vmul.f32 %v544, %v5051
      %v5053 = vmul.f32 %v545, %v5051
      %v5054 = vmul.f32 %v546, %v5051
      %v5055 = vmul.f32 %v547, %v5051
      %v5056 = vmul.f32 %v548, %v5051
      %v5057 = vmul.f32 %v549, %v5051
      %v5058 = vmul.f32 %v550, %v5051
      %v5059 = vmul.f32 %v551, %v5051
      %v5060 = vmul.f32 %v552, %v5051
      %v5061 = vmul.f32 %v553, %v5051
      %v5062 = vmul.f32 %v554, %v5051
      %v5063 = vmul.f32 %v555, %v5051
      %v5064 = vmul.f32 %v556, %v5051
      %v5065 = vmul.f32 %v557, %v5051
      %v5066 = vmul.f32 %v558, %v5051
      %v5067 = vmul.f32 %v559, %v5051
      %v5068 = vmul.f32 %v560, %v5051
      %v5069 = vmul.f32 %v561, %v5051
      %v5070 = vmul.f32 %v562, %v5051
      %v5071 = vmul.f32 %v563, %v5051
      %v5072 = vmul.f32 %v564, %v5051
      %v5073 = vmul.f32 %v565, %v5051
      %v5074 = vmul.f32 %v566, %v5051
      %v5075 = vmul.f32 %v567, %v5051
      %v5100 = vrot.slane %v5052, 5
      %v5101 = vrot.slane %v5053, 5
      %v5102 = vsel %vm4355, %v5100, %v5101
      %v5103 = vrot.slane %v5054, 5
      %v5104 = vsel %vm4355, %v5101, %v5103
      %v5105 = vrot.slane %v5055, 5
      %v5106 = vrot.slane %v5056, 5
      %v5107 = vsel %vm4355, %v5105, %v5106
      %v5108 = vrot.slane %v5057, 5
      %v5109 = vsel %vm4355, %v5106, %v5108
      %v5110 = vrot.slane %v5058, 5
      %v5111 = vrot.slane %v5059, 5
      %v5112 = vsel %vm4355, %v5110, %v5111
      %v5113 = vrot.slane %v5060, 5
      %v5114 = vsel %vm4355, %v5111, %v5113
      %v5115 = vrot.slane %v5061, 5
      %v5116 = vrot.slane %v5062, 5
      %v5117 = vsel %vm4355, %v5115, %v5116
      %v5118 = vrot.slane %v5063, 5
      %v5119 = vsel %vm4355, %v5116, %v5118
      %v5120 = vrot.slane %v5064, 5
      %v5121 = vrot.slane %v5065, 5
      %v5122 = vsel %vm4355, %v5120, %v5121
      %v5123 = vrot.slane %v5066, 5
      %v5124 = vsel %vm4355, %v5121, %v5123
      %v5125 = vrot.slane %v5067, 5
      %v5126 = vrot.slane %v5068, 5
      %v5127 = vsel %vm4355, %v5125, %v5126
      %v5128 = vrot.slane %v5069, 5
      %v5129 = vsel %vm4355, %v5126, %v5128
      %v5130 = vrot.slane %v5070, 5
      %v5131 = vrot.slane %v5071, 5
      %v5132 = vsel %vm4355, %v5130, %v5131
      %v5133 = vrot.slane %v5072, 5
      %v5134 = vsel %vm4355, %v5131, %v5133
      %v5135 = vrot.slane %v5073, 5
      %v5136 = vrot.slane %v5074, 5
      %v5137 = vsel %vm4355, %v5135, %v5136
      %v5138 = vrot.slane %v5075, 5
      %v5139 = vsel %vm4355, %v5136, %v5138
      %v5156 = vadd.f32 %v5032, %v5102
      %v5157 = vadd.f32 %v5033, %v5104
      %v5158 = vadd.f32 %v5034, %v5107
      %v5159 = vadd.f32 %v5035, %v5109
      %v5160 = vadd.f32 %v5036, %v5112
      %v5161 = vadd.f32 %v5037, %v5114
      %v5162 = vadd.f32 %v5038, %v5117
      %v5163 = vadd.f32 %v5039, %v5119
      %v5164 = vadd.f32 %v5040, %v5122
      %v5165 = vadd.f32 %v5041, %v5124
      %v5166 = vadd.f32 %v5042, %v5127
      %v5167 = vadd.f32 %v5043, %v5129
      %v5168 = vadd.f32 %v5044, %v5132
      %v5169 = vadd.f32 %v5045, %v5134
      %v5170 = vadd.f32 %v5046, %v5137
      %v5171 = vadd.f32 %v5047, %v5139
      %v5172 = vlaneseq
      %v5173 = vshrl.u32 %v5172, 7
      %v5174 = vsub.s32 6, %v5173
      %v5175 = vrot.slane %v568, %v5174
      %v5176 = vmul.f32 %v526, %v5175
      %v5177 = vmul.f32 %v527, %v5175
      %v5178 = vmul.f32 %v528, %v5175
      %v5179 = vmul.f32 %v529, %v5175
      %v5180 = vmul.f32 %v530, %v5175
      %v5181 = vmul.f32 %v531, %v5175
      %v5182 = vmul.f32 %v532, %v5175
      %v5183 = vmul.f32 %v533, %v5175
      %v5184 = vmul.f32 %v534, %v5175
      %v5185 = vmul.f32 %v535, %v5175
      %v5186 = vmul.f32 %v536, %v5175
      %v5187 = vmul.f32 %v537, %v5175
      %v5188 = vmul.f32 %v538, %v5175
      %v5189 = vmul.f32 %v539, %v5175
      %v5190 = vmul.f32 %v540, %v5175
      %v5191 = vmul.f32 %v541, %v5175
      %v5192 = vmul.f32 %v542, %v5175
      %v5193 = vmul.f32 %v543, %v5175
      %v5194 = vmul.f32 %v544, %v5175
      %v5195 = vmul.f32 %v545, %v5175
      %v5196 = vmul.f32 %v546, %v5175
      %v5197 = vmul.f32 %v547, %v5175
      %v5198 = vmul.f32 %v548, %v5175
      %v5199 = vmul.f32 %v549, %v5175
      %vm5224 = vcmask 1041408
      %v5225 = vrot.slane %v5176, 6
      %v5226 = vrot.slane %v5177, 6
      %v5227 = vsel %vm5224, %v5225, %v5226
      %v5228 = vrot.slane %v5178, 6
      %v5229 = vsel %vm5224, %v5226, %v5228
      %v5230 = vrot.slane %v5179, 6
      %v5231 = vrot.slane %v5180, 6
      %v5232 = vsel %vm5224, %v5230, %v5231
      %v5233 = vrot.slane %v5181, 6
      %v5234 = vsel %vm5224, %v5231, %v5233
      %v5235 = vrot.slane %v5182, 6
      %v5236 = vrot.slane %v5183, 6
      %v5237 = vsel %vm5224, %v5235, %v5236
      %v5238 = vrot.slane %v5184, 6
      %v5239 = vsel %vm5224, %v5236, %v5238
      %v5240 = vrot.slane %v5185, 6
      %v5241 = vrot.slane %v5186, 6
      %v5242 = vsel %vm5224, %v5240, %v5241
      %v5243 = vrot.slane %v5187, 6
      %v5244 = vsel %vm5224, %v5241, %v5243
      %v5245 = vrot.slane %v5188, 6
      %v5246 = vrot.slane %v5189, 6
      %v5247 = vsel %vm5224, %v5245, %v5246
      %v5248 = vrot.slane %v5190, 6
      %v5249 = vsel %vm5224, %v5246, %v5248
      %v5250 = vrot.slane %v5191, 6
      %v5251 = vrot.slane %v5192, 6
      %v5252 = vsel %vm5224, %v5250, %v5251
      %v5253 = vrot.slane %v5193, 6
      %v5254 = vsel %vm5224, %v5251, %v5253
      %v5255 = vrot.slane %v5194, 6
      %v5256 = vrot.slane %v5195, 6
      %v5257 = vsel %vm5224, %v5255, %v5256
      %v5258 = vrot.slane %v5196, 6
      %v5259 = vsel %vm5224, %v5256, %v5258
      %v5260 = vrot.slane %v5197, 6
      %v5261 = vrot.slane %v5198, 6
      %v5262 = vsel %vm5224, %v5260, %v5261
      %v5263 = vrot.slane %v5199, 6
      %v5264 = vsel %vm5224, %v5261, %v5263
      %v5281 = vadd.f32 %v5156, %v5227
      %v5282 = vadd.f32 %v5157, %v5229
      %v5283 = vadd.f32 %v5158, %v5232
      %v5284 = vadd.f32 %v5159, %v5234
      %v5285 = vadd.f32 %v5160, %v5237
      %v5286 = vadd.f32 %v5161, %v5239
      %v5287 = vadd.f32 %v5162, %v5242
      %v5288 = vadd.f32 %v5163, %v5244
      %v5289 = vadd.f32 %v5164, %v5247
      %v5290 = vadd.f32 %v5165, %v5249
      %v5291 = vadd.f32 %v5166, %v5252
      %v5292 = vadd.f32 %v5167, %v5254
      %v5293 = vadd.f32 %v5168, %v5257
      %v5294 = vadd.f32 %v5169, %v5259
      %v5295 = vadd.f32 %v5170, %v5262
      %v5296 = vadd.f32 %v5171, %v5264
      %v5297 = vlaneseq
      %v5298 = vshrl.u32 %v5297, 7
      %v5299 = vsub.s32 6, %v5298
      %v5300 = vrot.slane %v569, %v5299
      %v5301 = vmul.f32 %v529, %v5300
      %v5302 = vmul.f32 %v530, %v5300
      %v5303 = vmul.f32 %v531, %v5300
      %v5304 = vmul.f32 %v532, %v5300
      %v5305 = vmul.f32 %v533, %v5300
      %v5306 = vmul.f32 %v534, %v5300
      %v5307 = vmul.f32 %v535, %v5300
      %v5308 = vmul.f32 %v536, %v5300
      %v5309 = vmul.f32 %v537, %v5300
      %v5310 = vmul.f32 %v538, %v5300
      %v5311 = vmul.f32 %v539, %v5300
      %v5312 = vmul.f32 %v540, %v5300
      %v5313 = vmul.f32 %v541, %v5300
      %v5314 = vmul.f32 %v542, %v5300
      %v5315 = vmul.f32 %v543, %v5300
      %v5316 = vmul.f32 %v544, %v5300
      %v5317 = vmul.f32 %v545, %v5300
      %v5318 = vmul.f32 %v546, %v5300
      %v5319 = vmul.f32 %v547, %v5300
      %v5320 = vmul.f32 %v548, %v5300
      %v5321 = vmul.f32 %v549, %v5300
      %v5322 = vmul.f32 %v550, %v5300
      %v5323 = vmul.f32 %v551, %v5300
      %v5324 = vmul.f32 %v552, %v5300
      %v5349 = vrot.slane %v5301, 6
      %v5350 = vrot.slane %v5302, 6
      %v5351 = vsel %vm5224, %v5349, %v5350
      %v5352 = vrot.slane %v5303, 6
      %v5353 = vsel %vm5224, %v5350, %v5352
      %v5354 = vrot.slane %v5304, 6
      %v5355 = vrot.slane %v5305, 6
      %v5356 = vsel %vm5224, %v5354, %v5355
      %v5357 = vrot.slane %v5306, 6
      %v5358 = vsel %vm5224, %v5355, %v5357
      %v5359 = vrot.slane %v5307, 6
      %v5360 = vrot.slane %v5308, 6
      %v5361 = vsel %vm5224, %v5359, %v5360
      %v5362 = vrot.slane %v5309, 6
      %v5363 = vsel %vm5224, %v5360, %v5362
      %v5364 = vrot.slane %v5310, 6
      %v5365 = vrot.slane %v5311, 6
      %v5366 = vsel %vm5224, %v5364, %v5365
      %v5367 = vrot.slane %v5312, 6
      %v5368 = vsel %vm5224, %v5365, %v5367
      %v5369 = vrot.slane %v5313, 6
      %v5370 = vrot.slane %v5314, 6
      %v5371 = vsel %vm5224, %v5369, %v5370
      %v5372 = vrot.slane %v5315, 6
      %v5373 = vsel %vm5224, %v5370, %v5372
      %v5374 = vrot.slane %v5316, 6
      %v5375 = vrot.slane %v5317, 6
      %v5376 = vsel %vm5224, %v5374, %v5375
      %v5377 = vrot.slane %v5318, 6
      %v5378 = vsel %vm5224, %v5375, %v5377
      %v5379 = vrot.slane %v5319, 6
      %v5380 = vrot.slane %v5320, 6
      %v5381 = vsel %vm5224, %v5379, %v5380
      %v5382 = vrot.slane %v5321, 6
      %v5383 = vsel %vm5224, %v5380, %v5382
      %v5384 = vrot.slane %v5322, 6
      %v5385 = vrot.slane %v5323, 6
      %v5386 = vsel %vm5224, %v5384, %v5385
      %v5387 = vrot.slane %v5324, 6
      %v5388 = vsel %vm5224, %v5385, %v5387
      %v5405 = vadd.f32 %v5281, %v5351
      %v5406 = vadd.f32 %v5282, %v5353
      %v5407 = vadd.f32 %v5283, %v5356
      %v5408 = vadd.f32 %v5284, %v5358
      %v5409 = vadd.f32 %v5285, %v5361
      %v5410 = vadd.f32 %v5286, %v5363
      %v5411 = vadd.f32 %v5287, %v5366
      %v5412 = vadd.f32 %v5288, %v5368
      %v5413 = vadd.f32 %v5289, %v5371
      %v5414 = vadd.f32 %v5290, %v5373
      %v5415 = vadd.f32 %v5291, %v5376
      %v5416 = vadd.f32 %v5292, %v5378
      %v5417 = vadd.f32 %v5293, %v5381
      %v5418 = vadd.f32 %v5294, %v5383
      %v5419 = vadd.f32 %v5295, %v5386
      %v5420 = vadd.f32 %v5296, %v5388
      %v5421 = vlaneseq
      %v5422 = vshrl.u32 %v5421, 7
      %v5423 = vsub.s32 6, %v5422
      %v5424 = vrot.slane %v570, %v5423
      %v5425 = vmul.f32 %v532, %v5424
      %v5426 = vmul.f32 %v533, %v5424
      %v5427 = vmul.f32 %v534, %v5424
      %v5428 = vmul.f32 %v535, %v5424
      %v5429 = vmul.f32 %v536, %v5424
      %v5430 = vmul.f32 %v537, %v5424
      %v5431 = vmul.f32 %v538, %v5424
      %v5432 = vmul.f32 %v539, %v5424
      %v5433 = vmul.f32 %v540, %v5424
      %v5434 = vmul.f32 %v541, %v5424
      %v5435 = vmul.f32 %v542, %v5424
      %v5436 = vmul.f32 %v543, %v5424
      %v5437 = vmul.f32 %v544, %v5424
      %v5438 = vmul.f32 %v545, %v5424
      %v5439 = vmul.f32 %v546, %v5424
      %v5440 = vmul.f32 %v547, %v5424
      %v5441 = vmul.f32 %v548, %v5424
      %v5442 = vmul.f32 %v549, %v5424
      %v5443 = vmul.f32 %v550, %v5424
      %v5444 = vmul.f32 %v551, %v5424
      %v5445 = vmul.f32 %v552, %v5424
      %v5446 = vmul.f32 %v553, %v5424
      %v5447 = vmul.f32 %v554, %v5424
      %v5448 = vmul.f32 %v555, %v5424
      %v5473 = vrot.slane %v5425, 6
      %v5474 = vrot.slane %v5426, 6
      %v5475 = vsel %vm5224, %v5473, %v5474
      %v5476 = vrot.slane %v5427, 6
      %v5477 = vsel %vm5224, %v5474, %v5476
      %v5478 = vrot.slane %v5428, 6
      %v5479 = vrot.slane %v5429, 6
      %v5480 = vsel %vm5224, %v5478, %v5479
      %v5481 = vrot.slane %v5430, 6
      %v5482 = vsel %vm5224, %v5479, %v5481
      %v5483 = vrot.slane %v5431, 6
      %v5484 = vrot.slane %v5432, 6
      %v5485 = vsel %vm5224, %v5483, %v5484
      %v5486 = vrot.slane %v5433, 6
      %v5487 = vsel %vm5224, %v5484, %v5486
      %v5488 = vrot.slane %v5434, 6
      %v5489 = vrot.slane %v5435, 6
      %v5490 = vsel %vm5224, %v5488, %v5489
      %v5491 = vrot.slane %v5436, 6
      %v5492 = vsel %vm5224, %v5489, %v5491
      %v5493 = vrot.slane %v5437, 6
      %v5494 = vrot.slane %v5438, 6
      %v5495 = vsel %vm5224, %v5493, %v5494
      %v5496 = vrot.slane %v5439, 6
      %v5497 = vsel %vm5224, %v5494, %v5496
      %v5498 = vrot.slane %v5440, 6
      %v5499 = vrot.slane %v5441, 6
      %v5500 = vsel %vm5224, %v5498, %v5499
      %v5501 = vrot.slane %v5442, 6
      %v5502 = vsel %vm5224, %v5499, %v5501
      %v5503 = vrot.slane %v5443, 6
      %v5504 = vrot.slane %v5444, 6
      %v5505 = vsel %vm5224, %v5503, %v5504
      %v5506 = vrot.slane %v5445, 6
      %v5507 = vsel %vm5224, %v5504, %v5506
      %v5508 = vrot.slane %v5446, 6
      %v5509 = vrot.slane %v5447, 6
      %v5510 = vsel %vm5224, %v5508, %v5509
      %v5511 = vrot.slane %v5448, 6
      %v5512 = vsel %vm5224, %v5509, %v5511
      %v5529 = vadd.f32 %v5405, %v5475
      %v5530 = vadd.f32 %v5406, %v5477
      %v5531 = vadd.f32 %v5407, %v5480
      %v5532 = vadd.f32 %v5408, %v5482
      %v5533 = vadd.f32 %v5409, %v5485
      %v5534 = vadd.f32 %v5410, %v5487
      %v5535 = vadd.f32 %v5411, %v5490
      %v5536 = vadd.f32 %v5412, %v5492
      %v5537 = vadd.f32 %v5413, %v5495
      %v5538 = vadd.f32 %v5414, %v5497
      %v5539 = vadd.f32 %v5415, %v5500
      %v5540 = vadd.f32 %v5416, %v5502
      %v5541 = vadd.f32 %v5417, %v5505
      %v5542 = vadd.f32 %v5418, %v5507
      %v5543 = vadd.f32 %v5419, %v5510
      %v5544 = vadd.f32 %v5420, %v5512
      %v5545 = vlaneseq
      %v5546 = vshrl.u32 %v5545, 7
      %v5547 = vsub.s32 6, %v5546
      %v5548 = vrot.slane %v571, %v5547
      %v5549 = vmul.f32 %v535, %v5548
      %v5550 = vmul.f32 %v536, %v5548
      %v5551 = vmul.f32 %v537, %v5548
      %v5552 = vmul.f32 %v538, %v5548
      %v5553 = vmul.f32 %v539, %v5548
      %v5554 = vmul.f32 %v540, %v5548
      %v5555 = vmul.f32 %v541, %v5548
      %v5556 = vmul.f32 %v542, %v5548
      %v5557 = vmul.f32 %v543, %v5548
      %v5558 = vmul.f32 %v544, %v5548
      %v5559 = vmul.f32 %v545, %v5548
      %v5560 = vmul.f32 %v546, %v5548
      %v5561 = vmul.f32 %v547, %v5548
      %v5562 = vmul.f32 %v548, %v5548
      %v5563 = vmul.f32 %v549, %v5548
      %v5564 = vmul.f32 %v550, %v5548
      %v5565 = vmul.f32 %v551, %v5548
      %v5566 = vmul.f32 %v552, %v5548
      %v5567 = vmul.f32 %v553, %v5548
      %v5568 = vmul.f32 %v554, %v5548
      %v5569 = vmul.f32 %v555, %v5548
      %v5570 = vmul.f32 %v556, %v5548
      %v5571 = vmul.f32 %v557, %v5548
      %v5572 = vmul.f32 %v558, %v5548
      %v5597 = vrot.slane %v5549, 6
      %v5598 = vrot.slane %v5550, 6
      %v5599 = vsel %vm5224, %v5597, %v5598
      %v5600 = vrot.slane %v5551, 6
      %v5601 = vsel %vm5224, %v5598, %v5600
      %v5602 = vrot.slane %v5552, 6
      %v5603 = vrot.slane %v5553, 6
      %v5604 = vsel %vm5224, %v5602, %v5603
      %v5605 = vrot.slane %v5554, 6
      %v5606 = vsel %vm5224, %v5603, %v5605
      %v5607 = vrot.slane %v5555, 6
      %v5608 = vrot.slane %v5556, 6
      %v5609 = vsel %vm5224, %v5607, %v5608
      %v5610 = vrot.slane %v5557, 6
      %v5611 = vsel %vm5224, %v5608, %v5610
      %v5612 = vrot.slane %v5558, 6
      %v5613 = vrot.slane %v5559, 6
      %v5614 = vsel %vm5224, %v5612, %v5613
      %v5615 = vrot.slane %v5560, 6
      %v5616 = vsel %vm5224, %v5613, %v5615
      %v5617 = vrot.slane %v5561, 6
      %v5618 = vrot.slane %v5562, 6
      %v5619 = vsel %vm5224, %v5617, %v5618
      %v5620 = vrot.slane %v5563, 6
      %v5621 = vsel %vm5224, %v5618, %v5620
      %v5622 = vrot.slane %v5564, 6
      %v5623 = vrot.slane %v5565, 6
      %v5624 = vsel %vm5224, %v5622, %v5623
      %v5625 = vrot.slane %v5566, 6
      %v5626 = vsel %vm5224, %v5623, %v5625
      %v5627 = vrot.slane %v5567, 6
      %v5628 = vrot.slane %v5568, 6
      %v5629 = vsel %vm5224, %v5627, %v5628
      %v5630 = vrot.slane %v5569, 6
      %v5631 = vsel %vm5224, %v5628, %v5630
      %v5632 = vrot.slane %v5570, 6
      %v5633 = vrot.slane %v5571, 6
      %v5634 = vsel %vm5224, %v5632, %v5633
      %v5635 = vrot.slane %v5572, 6
      %v5636 = vsel %vm5224, %v5633, %v5635
      %v5653 = vadd.f32 %v5529, %v5599
      %v5654 = vadd.f32 %v5530, %v5601
      %v5655 = vadd.f32 %v5531, %v5604
      %v5656 = vadd.f32 %v5532, %v5606
      %v5657 = vadd.f32 %v5533, %v5609
      %v5658 = vadd.f32 %v5534, %v5611
      %v5659 = vadd.f32 %v5535, %v5614
      %v5660 = vadd.f32 %v5536, %v5616
      %v5661 = vadd.f32 %v5537, %v5619
      %v5662 = vadd.f32 %v5538, %v5621
      %v5663 = vadd.f32 %v5539, %v5624
      %v5664 = vadd.f32 %v5540, %v5626
      %v5665 = vadd.f32 %v5541, %v5629
      %v5666 = vadd.f32 %v5542, %v5631
      %v5667 = vadd.f32 %v5543, %v5634
      %v5668 = vadd.f32 %v5544, %v5636
      %v5669 = vlaneseq
      %v5670 = vshrl.u32 %v5669, 7
      %v5671 = vsub.s32 6, %v5670
      %v5672 = vrot.slane %v572, %v5671
      %v5673 = vmul.f32 %v538, %v5672
      %v5674 = vmul.f32 %v539, %v5672
      %v5675 = vmul.f32 %v540, %v5672
      %v5676 = vmul.f32 %v541, %v5672
      %v5677 = vmul.f32 %v542, %v5672
      %v5678 = vmul.f32 %v543, %v5672
      %v5679 = vmul.f32 %v544, %v5672
      %v5680 = vmul.f32 %v545, %v5672
      %v5681 = vmul.f32 %v546, %v5672
      %v5682 = vmul.f32 %v547, %v5672
      %v5683 = vmul.f32 %v548, %v5672
      %v5684 = vmul.f32 %v549, %v5672
      %v5685 = vmul.f32 %v550, %v5672
      %v5686 = vmul.f32 %v551, %v5672
      %v5687 = vmul.f32 %v552, %v5672
      %v5688 = vmul.f32 %v553, %v5672
      %v5689 = vmul.f32 %v554, %v5672
      %v5690 = vmul.f32 %v555, %v5672
      %v5691 = vmul.f32 %v556, %v5672
      %v5692 = vmul.f32 %v557, %v5672
      %v5693 = vmul.f32 %v558, %v5672
      %v5694 = vmul.f32 %v559, %v5672
      %v5695 = vmul.f32 %v560, %v5672
      %v5696 = vmul.f32 %v561, %v5672
      %v5721 = vrot.slane %v5673, 6
      %v5722 = vrot.slane %v5674, 6
      %v5723 = vsel %vm5224, %v5721, %v5722
      %v5724 = vrot.slane %v5675, 6
      %v5725 = vsel %vm5224, %v5722, %v5724
      %v5726 = vrot.slane %v5676, 6
      %v5727 = vrot.slane %v5677, 6
      %v5728 = vsel %vm5224, %v5726, %v5727
      %v5729 = vrot.slane %v5678, 6
      %v5730 = vsel %vm5224, %v5727, %v5729
      %v5731 = vrot.slane %v5679, 6
      %v5732 = vrot.slane %v5680, 6
      %v5733 = vsel %vm5224, %v5731, %v5732
      %v5734 = vrot.slane %v5681, 6
      %v5735 = vsel %vm5224, %v5732, %v5734
      %v5736 = vrot.slane %v5682, 6
      %v5737 = vrot.slane %v5683, 6
      %v5738 = vsel %vm5224, %v5736, %v5737
      %v5739 = vrot.slane %v5684, 6
      %v5740 = vsel %vm5224, %v5737, %v5739
      %v5741 = vrot.slane %v5685, 6
      %v5742 = vrot.slane %v5686, 6
      %v5743 = vsel %vm5224, %v5741, %v5742
      %v5744 = vrot.slane %v5687, 6
      %v5745 = vsel %vm5224, %v5742, %v5744
      %v5746 = vrot.slane %v5688, 6
      %v5747 = vrot.slane %v5689, 6
      %v5748 = vsel %vm5224, %v5746, %v5747
      %v5749 = vrot.slane %v5690, 6
      %v5750 = vsel %vm5224, %v5747, %v5749
      %v5751 = vrot.slane %v5691, 6
      %v5752 = vrot.slane %v5692, 6
      %v5753 = vsel %vm5224, %v5751, %v5752
      %v5754 = vrot.slane %v5693, 6
      %v5755 = vsel %vm5224, %v5752, %v5754
      %v5756 = vrot.slane %v5694, 6
      %v5757 = vrot.slane %v5695, 6
      %v5758 = vsel %vm5224, %v5756, %v5757
      %v5759 = vrot.slane %v5696, 6
      %v5760 = vsel %vm5224, %v5757, %v5759
      %v5777 = vadd.f32 %v5653, %v5723
      %v5778 = vadd.f32 %v5654, %v5725
      %v5779 = vadd.f32 %v5655, %v5728
      %v5780 = vadd.f32 %v5656, %v5730
      %v5781 = vadd.f32 %v5657, %v5733
      %v5782 = vadd.f32 %v5658, %v5735
      %v5783 = vadd.f32 %v5659, %v5738
      %v5784 = vadd.f32 %v5660, %v5740
      %v5785 = vadd.f32 %v5661, %v5743
      %v5786 = vadd.f32 %v5662, %v5745
      %v5787 = vadd.f32 %v5663, %v5748
      %v5788 = vadd.f32 %v5664, %v5750
      %v5789 = vadd.f32 %v5665, %v5753
      %v5790 = vadd.f32 %v5666, %v5755
      %v5791 = vadd.f32 %v5667, %v5758
      %v5792 = vadd.f32 %v5668, %v5760
      %v5793 = vlaneseq
      %v5794 = vshrl.u32 %v5793, 7
      %v5795 = vsub.s32 6, %v5794
      %v5796 = vrot.slane %v573, %v5795
      %v5797 = vmul.f32 %v541, %v5796
      %v5798 = vmul.f32 %v542, %v5796
      %v5799 = vmul.f32 %v543, %v5796
      %v5800 = vmul.f32 %v544, %v5796
      %v5801 = vmul.f32 %v545, %v5796
      %v5802 = vmul.f32 %v546, %v5796
      %v5803 = vmul.f32 %v547, %v5796
      %v5804 = vmul.f32 %v548, %v5796
      %v5805 = vmul.f32 %v549, %v5796
      %v5806 = vmul.f32 %v550, %v5796
      %v5807 = vmul.f32 %v551, %v5796
      %v5808 = vmul.f32 %v552, %v5796
      %v5809 = vmul.f32 %v553, %v5796
      %v5810 = vmul.f32 %v554, %v5796
      %v5811 = vmul.f32 %v555, %v5796
      %v5812 = vmul.f32 %v556, %v5796
      %v5813 = vmul.f32 %v557, %v5796
      %v5814 = vmul.f32 %v558, %v5796
      %v5815 = vmul.f32 %v559, %v5796
      %v5816 = vmul.f32 %v560, %v5796
      %v5817 = vmul.f32 %v561, %v5796
      %v5818 = vmul.f32 %v562, %v5796
      %v5819 = vmul.f32 %v563, %v5796
      %v5820 = vmul.f32 %v564, %v5796
      %v5845 = vrot.slane %v5797, 6
      %v5846 = vrot.slane %v5798, 6
      %v5847 = vsel %vm5224, %v5845, %v5846
      %v5848 = vrot.slane %v5799, 6
      %v5849 = vsel %vm5224, %v5846, %v5848
      %v5850 = vrot.slane %v5800, 6
      %v5851 = vrot.slane %v5801, 6
      %v5852 = vsel %vm5224, %v5850, %v5851
      %v5853 = vrot.slane %v5802, 6
      %v5854 = vsel %vm5224, %v5851, %v5853
      %v5855 = vrot.slane %v5803, 6
      %v5856 = vrot.slane %v5804, 6
      %v5857 = vsel %vm5224, %v5855, %v5856
      %v5858 = vrot.slane %v5805, 6
      %v5859 = vsel %vm5224, %v5856, %v5858
      %v5860 = vrot.slane %v5806, 6
      %v5861 = vrot.slane %v5807, 6
      %v5862 = vsel %vm5224, %v5860, %v5861
      %v5863 = vrot.slane %v5808, 6
      %v5864 = vsel %vm5224, %v5861, %v5863
      %v5865 = vrot.slane %v5809, 6
      %v5866 = vrot.slane %v5810, 6
      %v5867 = vsel %vm5224, %v5865, %v5866
      %v5868 = vrot.slane %v5811, 6
      %v5869 = vsel %vm5224, %v5866, %v5868
      %v5870 = vrot.slane %v5812, 6
      %v5871 = vrot.slane %v5813, 6
      %v5872 = vsel %vm5224, %v5870, %v5871
      %v5873 = vrot.slane %v5814, 6
      %v5874 = vsel %vm5224, %v5871, %v5873
      %v5875 = vrot.slane %v5815, 6
      %v5876 = vrot.slane %v5816, 6
      %v5877 = vsel %vm5224, %v5875, %v5876
      %v5878 = vrot.slane %v5817, 6
      %v5879 = vsel %vm5224, %v5876, %v5878
      %v5880 = vrot.slane %v5818, 6
      %v5881 = vrot.slane %v5819, 6
      %v5882 = vsel %vm5224, %v5880, %v5881
      %v5883 = vrot.slane %v5820, 6
      %v5884 = vsel %vm5224, %v5881, %v5883
      %v5901 = vadd.f32 %v5777, %v5847
      %v5902 = vadd.f32 %v5778, %v5849
      %v5903 = vadd.f32 %v5779, %v5852
      %v5904 = vadd.f32 %v5780, %v5854
      %v5905 = vadd.f32 %v5781, %v5857
      %v5906 = vadd.f32 %v5782, %v5859
      %v5907 = vadd.f32 %v5783, %v5862
      %v5908 = vadd.f32 %v5784, %v5864
      %v5909 = vadd.f32 %v5785, %v5867
      %v5910 = vadd.f32 %v5786, %v5869
      %v5911 = vadd.f32 %v5787, %v5872
      %v5912 = vadd.f32 %v5788, %v5874
      %v5913 = vadd.f32 %v5789, %v5877
      %v5914 = vadd.f32 %v5790, %v5879
      %v5915 = vadd.f32 %v5791, %v5882
      %v5916 = vadd.f32 %v5792, %v5884
      %v5917 = vlaneseq
      %v5918 = vshrl.u32 %v5917, 7
      %v5919 = vsub.s32 6, %v5918
      %v5920 = vrot.slane %v574, %v5919
      %v5921 = vmul.f32 %v544, %v5920
      %v5922 = vmul.f32 %v545, %v5920
      %v5923 = vmul.f32 %v546, %v5920
      %v5924 = vmul.f32 %v547, %v5920
      %v5925 = vmul.f32 %v548, %v5920
      %v5926 = vmul.f32 %v549, %v5920
      %v5927 = vmul.f32 %v550, %v5920
      %v5928 = vmul.f32 %v551, %v5920
      %v5929 = vmul.f32 %v552, %v5920
      %v5930 = vmul.f32 %v553, %v5920
      %v5931 = vmul.f32 %v554, %v5920
      %v5932 = vmul.f32 %v555, %v5920
      %v5933 = vmul.f32 %v556, %v5920
      %v5934 = vmul.f32 %v557, %v5920
      %v5935 = vmul.f32 %v558, %v5920
      %v5936 = vmul.f32 %v559, %v5920
      %v5937 = vmul.f32 %v560, %v5920
      %v5938 = vmul.f32 %v561, %v5920
      %v5939 = vmul.f32 %v562, %v5920
      %v5940 = vmul.f32 %v563, %v5920
      %v5941 = vmul.f32 %v564, %v5920
      %v5942 = vmul.f32 %v565, %v5920
      %v5943 = vmul.f32 %v566, %v5920
      %v5944 = vmul.f32 %v567, %v5920
      %v5969 = vrot.slane %v5921, 6
      %v5970 = vrot.slane %v5922, 6
      %v5971 = vsel %vm5224, %v5969, %v5970
      %v5972 = vrot.slane %v5923, 6
      %v5973 = vsel %vm5224, %v5970, %v5972
      %v5974 = vrot.slane %v5924, 6
      %v5975 = vrot.slane %v5925, 6
      %v5976 = vsel %vm5224, %v5974, %v5975
      %v5977 = vrot.slane %v5926, 6
      %v5978 = vsel %vm5224, %v5975, %v5977
      %v5979 = vrot.slane %v5927, 6
      %v5980 = vrot.slane %v5928, 6
      %v5981 = vsel %vm5224, %v5979, %v5980
      %v5982 = vrot.slane %v5929, 6
      %v5983 = vsel %vm5224, %v5980, %v5982
      %v5984 = vrot.slane %v5930, 6
      %v5985 = vrot.slane %v5931, 6
      %v5986 = vsel %vm5224, %v5984, %v5985
      %v5987 = vrot.slane %v5932, 6
      %v5988 = vsel %vm5224, %v5985, %v5987
      %v5989 = vrot.slane %v5933, 6
      %v5990 = vrot.slane %v5934, 6
      %v5991 = vsel %vm5224, %v5989, %v5990
      %v5992 = vrot.slane %v5935, 6
      %v5993 = vsel %vm5224, %v5990, %v5992
      %v5994 = vrot.slane %v5936, 6
      %v5995 = vrot.slane %v5937, 6
      %v5996 = vsel %vm5224, %v5994, %v5995
      %v5997 = vrot.slane %v5938, 6
      %v5998 = vsel %vm5224, %v5995, %v5997
      %v5999 = vrot.slane %v5939, 6
      %v6000 = vrot.slane %v5940, 6
      %v6001 = vsel %vm5224, %v5999, %v6000
      %v6002 = vrot.slane %v5941, 6
      %v6003 = vsel %vm5224, %v6000, %v6002
      %v6004 = vrot.slane %v5942, 6
      %v6005 = vrot.slane %v5943, 6
      %v6006 = vsel %vm5224, %v6004, %v6005
      %v6007 = vrot.slane %v5944, 6
      %v6008 = vsel %vm5224, %v6005, %v6007
      %v6025 = vadd.f32 %v5901, %v5971
      %v6026 = vadd.f32 %v5902, %v5973
      %v6027 = vadd.f32 %v5903, %v5976
      %v6028 = vadd.f32 %v5904, %v5978
      %v6029 = vadd.f32 %v5905, %v5981
      %v6030 = vadd.f32 %v5906, %v5983
      %v6031 = vadd.f32 %v5907, %v5986
      %v6032 = vadd.f32 %v5908, %v5988
      %v6033 = vadd.f32 %v5909, %v5991
      %v6034 = vadd.f32 %v5910, %v5993
      %v6035 = vadd.f32 %v5911, %v5996
      %v6036 = vadd.f32 %v5912, %v5998
      %v6037 = vadd.f32 %v5913, %v6001
      %v6038 = vadd.f32 %v5914, %v6003
      %v6039 = vadd.f32 %v5915, %v6006
      %v6040 = vadd.f32 %v5916, %v6008
      %v6041 = vld [vmem:[%s2] sm:$0x1]
      %v6043 = vlaneseq
      %v6044 = vshrl.u32 %v6043, 7
      %v6045 = vsub.s32 0, %v6044
      %v6046 = vrot.slane %v6041, %v6045
      %v6048 = vadd.f32 %v6025, %v6046
      %v6049 = vadd.f32 %v6026, %v6046
      %v6050 = vadd.f32 %v6027, %v6046
      %v6051 = vadd.f32 %v6028, %v6046
      %v6052 = vadd.f32 %v6029, %v6046
      %v6053 = vadd.f32 %v6030, %v6046
      %v6054 = vadd.f32 %v6031, %v6046
      %v6055 = vadd.f32 %v6032, %v6046
      %v6056 = vadd.f32 %v6033, %v6046
      %v6057 = vadd.f32 %v6034, %v6046
      %v6058 = vadd.f32 %v6035, %v6046
      %v6059 = vadd.f32 %v6036, %v6046
      %v6060 = vadd.f32 %v6037, %v6046
      %v6061 = vadd.f32 %v6038, %v6046
      %v6062 = vadd.f32 %v6039, %v6046
      %v6063 = vadd.f32 %v6040, %v6046
      %vm6064 = vcmask 31744
      %v6065 = vsel %vm6064, %v6048, 0.0
      %6066 = vadd.xlane.f32.xlu0 %v6065
      %v6067 = vpop.xlane.xlu0 %6066
      %v6068 = vsel %vm6064, %v6049, 0.0
      %6069 = vadd.xlane.f32.xlu0 %v6068
      %v6070 = vpop.xlane.xlu0 %6069
      %v6071 = vsel %vm6064, %v6050, 0.0
      %6072 = vadd.xlane.f32.xlu0 %v6071
      %v6073 = vpop.xlane.xlu0 %6072
      %v6074 = vsel %vm6064, %v6051, 0.0
      %6075 = vadd.xlane.f32.xlu0 %v6074
      %v6076 = vpop.xlane.xlu0 %6075
      %v6077 = vsel %vm6064, %v6052, 0.0
      %6078 = vadd.xlane.f32.xlu0 %v6077
      %v6079 = vpop.xlane.xlu0 %6078
      %v6080 = vsel %vm6064, %v6053, 0.0
      %6081 = vadd.xlane.f32.xlu0 %v6080
      %v6082 = vpop.xlane.xlu0 %6081
      %v6083 = vsel %vm6064, %v6054, 0.0
      %6084 = vadd.xlane.f32.xlu0 %v6083
      %v6085 = vpop.xlane.xlu0 %6084
      %v6086 = vsel %vm6064, %v6055, 0.0
      %6087 = vadd.xlane.f32.xlu0 %v6086
      %v6088 = vpop.xlane.xlu0 %6087
      %v6089 = vsel %vm6064, %v6056, 0.0
      %6090 = vadd.xlane.f32.xlu0 %v6089
      %v6091 = vpop.xlane.xlu0 %6090
      %v6092 = vsel %vm6064, %v6057, 0.0
      %6093 = vadd.xlane.f32.xlu0 %v6092
      %v6094 = vpop.xlane.xlu0 %6093
      %v6095 = vsel %vm6064, %v6058, 0.0
      %6096 = vadd.xlane.f32.xlu0 %v6095
      %v6097 = vpop.xlane.xlu0 %6096
      %v6098 = vsel %vm6064, %v6059, 0.0
      %6099 = vadd.xlane.f32.xlu0 %v6098
      %v6100 = vpop.xlane.xlu0 %6099
      %v6101 = vsel %vm6064, %v6060, 0.0
      %6102 = vadd.xlane.f32.xlu0 %v6101
      %v6103 = vpop.xlane.xlu0 %6102
      %v6104 = vsel %vm6064, %v6061, 0.0
      %6105 = vadd.xlane.f32.xlu0 %v6104
      %v6106 = vpop.xlane.xlu0 %6105
      %v6107 = vsel %vm6064, %v6062, 0.0
      %6108 = vadd.xlane.f32.xlu0 %v6107
      %v6109 = vpop.xlane.xlu0 %6108
      %v6110 = vsel %vm6064, %v6063, 0.0
      %6111 = vadd.xlane.f32.xlu0 %v6110
      %v6112 = vpop.xlane.xlu0 %6111
      %v6113 = vmul.f32 %v6048, %v6048
      %v6114 = vmul.f32 %v6049, %v6049
      %v6115 = vmul.f32 %v6050, %v6050
      %v6116 = vmul.f32 %v6051, %v6051
      %v6117 = vmul.f32 %v6052, %v6052
      %v6118 = vmul.f32 %v6053, %v6053
      %v6119 = vmul.f32 %v6054, %v6054
      %v6120 = vmul.f32 %v6055, %v6055
      %v6121 = vmul.f32 %v6056, %v6056
      %v6122 = vmul.f32 %v6057, %v6057
      %v6123 = vmul.f32 %v6058, %v6058
      %v6124 = vmul.f32 %v6059, %v6059
      %v6125 = vmul.f32 %v6060, %v6060
      %v6126 = vmul.f32 %v6061, %v6061
      %v6127 = vmul.f32 %v6062, %v6062
      %v6128 = vmul.f32 %v6063, %v6063
      %v6129 = vsel %vm6064, %v6113, 0.0
      %6130 = vadd.xlane.f32.xlu0 %v6129
      %v6131 = vpop.xlane.xlu0 %6130
      %v6132 = vsel %vm6064, %v6114, 0.0
      %6133 = vadd.xlane.f32.xlu0 %v6132
      %v6134 = vpop.xlane.xlu0 %6133
      %v6135 = vsel %vm6064, %v6115, 0.0
      %6136 = vadd.xlane.f32.xlu0 %v6135
      %v6137 = vpop.xlane.xlu0 %6136
      %v6138 = vsel %vm6064, %v6116, 0.0
      %6139 = vadd.xlane.f32.xlu0 %v6138
      %v6140 = vpop.xlane.xlu0 %6139
      %v6141 = vsel %vm6064, %v6117, 0.0
      %6142 = vadd.xlane.f32.xlu0 %v6141
      %v6143 = vpop.xlane.xlu0 %6142
      %v6144 = vsel %vm6064, %v6118, 0.0
      %6145 = vadd.xlane.f32.xlu0 %v6144
      %v6146 = vpop.xlane.xlu0 %6145
      %v6147 = vsel %vm6064, %v6119, 0.0
      %6148 = vadd.xlane.f32.xlu0 %v6147
      %v6149 = vpop.xlane.xlu0 %6148
      %v6150 = vsel %vm6064, %v6120, 0.0
      %6151 = vadd.xlane.f32.xlu0 %v6150
      %v6152 = vpop.xlane.xlu0 %6151
      %v6153 = vsel %vm6064, %v6121, 0.0
      %6154 = vadd.xlane.f32.xlu0 %v6153
      %v6155 = vpop.xlane.xlu0 %6154
      %v6156 = vsel %vm6064, %v6122, 0.0
      %6157 = vadd.xlane.f32.xlu0 %v6156
      %v6158 = vpop.xlane.xlu0 %6157
      %v6159 = vsel %vm6064, %v6123, 0.0
      %6160 = vadd.xlane.f32.xlu0 %v6159
      %v6161 = vpop.xlane.xlu0 %6160
      %v6162 = vsel %vm6064, %v6124, 0.0
      %6163 = vadd.xlane.f32.xlu0 %v6162
      %v6164 = vpop.xlane.xlu0 %6163
      %v6165 = vsel %vm6064, %v6125, 0.0
      %6166 = vadd.xlane.f32.xlu0 %v6165
      %v6167 = vpop.xlane.xlu0 %6166
      %v6168 = vsel %vm6064, %v6126, 0.0
      %6169 = vadd.xlane.f32.xlu0 %v6168
      %v6170 = vpop.xlane.xlu0 %6169
      %v6171 = vsel %vm6064, %v6127, 0.0
      %6172 = vadd.xlane.f32.xlu0 %v6171
      %v6173 = vpop.xlane.xlu0 %6172
      %v6174 = vsel %vm6064, %v6128, 0.0
      %6175 = vadd.xlane.f32.xlu0 %v6174
      %v6176 = vpop.xlane.xlu0 %6175
      %v6177 = vmul.f32 %v6067, 0.25
      %v6178 = vmul.f32 %v6070, 0.25
      %v6179 = vmul.f32 %v6073, 0.25
      %v6180 = vmul.f32 %v6076, 0.25
      %v6181 = vmul.f32 %v6079, 0.25
      %v6182 = vmul.f32 %v6082, 0.25
      %v6183 = vmul.f32 %v6085, 0.25
      %v6184 = vmul.f32 %v6088, 0.25
      %v6185 = vmul.f32 %v6091, 0.25
      %v6186 = vmul.f32 %v6094, 0.25
      %v6187 = vmul.f32 %v6097, 0.25
      %v6188 = vmul.f32 %v6100, 0.25
      %v6189 = vmul.f32 %v6103, 0.25
      %v6190 = vmul.f32 %v6106, 0.25
      %v6191 = vmul.f32 %v6109, 0.25
      %v6192 = vmul.f32 %v6112, 0.25
      %v6193 = vmul.f32 %v6131, 0.25
      %v6194 = vmul.f32 %v6134, 0.25
      %v6195 = vmul.f32 %v6137, 0.25
      %v6196 = vmul.f32 %v6140, 0.25
      %v6197 = vmul.f32 %v6143, 0.25
      %v6198 = vmul.f32 %v6146, 0.25
      %v6199 = vmul.f32 %v6149, 0.25
      %v6200 = vmul.f32 %v6152, 0.25
      %v6201 = vmul.f32 %v6155, 0.25
      %v6202 = vmul.f32 %v6158, 0.25
      %v6203 = vmul.f32 %v6161, 0.25
      %v6204 = vmul.f32 %v6164, 0.25
      %v6205 = vmul.f32 %v6167, 0.25
      %v6206 = vmul.f32 %v6170, 0.25
      %v6207 = vmul.f32 %v6173, 0.25
      %v6208 = vmul.f32 %v6176, 0.25
      %v6209 = vmul.f32 %v6177, %v6177
      %v6210 = vmul.f32 %v6178, %v6178
      %v6211 = vmul.f32 %v6179, %v6179
      %v6212 = vmul.f32 %v6180, %v6180
      %v6213 = vmul.f32 %v6181, %v6181
      %v6214 = vmul.f32 %v6182, %v6182
      %v6215 = vmul.f32 %v6183, %v6183
      %v6216 = vmul.f32 %v6184, %v6184
      %v6217 = vmul.f32 %v6185, %v6185
      %v6218 = vmul.f32 %v6186, %v6186
      %v6219 = vmul.f32 %v6187, %v6187
      %v6220 = vmul.f32 %v6188, %v6188
      %v6221 = vmul.f32 %v6189, %v6189
      %v6222 = vmul.f32 %v6190, %v6190
      %v6223 = vmul.f32 %v6191, %v6191
      %v6224 = vmul.f32 %v6192, %v6192
      %v6225 = vsub.f32 %v6193, %v6209
      %v6226 = vsub.f32 %v6194, %v6210
      %v6227 = vsub.f32 %v6195, %v6211
      %v6228 = vsub.f32 %v6196, %v6212
      %v6229 = vsub.f32 %v6197, %v6213
      %v6230 = vsub.f32 %v6198, %v6214
      %v6231 = vsub.f32 %v6199, %v6215
      %v6232 = vsub.f32 %v6200, %v6216
      %v6233 = vsub.f32 %v6201, %v6217
      %v6234 = vsub.f32 %v6202, %v6218
      %v6235 = vsub.f32 %v6203, %v6219
      %v6236 = vsub.f32 %v6204, %v6220
      %v6237 = vsub.f32 %v6205, %v6221
      %v6238 = vsub.f32 %v6206, %v6222
      %v6239 = vsub.f32 %v6207, %v6223
      %v6240 = vsub.f32 %v6208, %v6224
      %v6241 = vsub.f32 %v6048, %v6177
      %v6242 = vsub.f32 %v6049, %v6178
      %v6243 = vsub.f32 %v6050, %v6179
      %v6244 = vsub.f32 %v6051, %v6180
      %v6245 = vsub.f32 %v6052, %v6181
      %v6246 = vsub.f32 %v6053, %v6182
      %v6247 = vsub.f32 %v6054, %v6183
      %v6248 = vsub.f32 %v6055, %v6184
      %v6249 = vsub.f32 %v6056, %v6185
      %v6250 = vsub.f32 %v6057, %v6186
      %v6251 = vsub.f32 %v6058, %v6187
      %v6252 = vsub.f32 %v6059, %v6188
      %v6253 = vsub.f32 %v6060, %v6189
      %v6254 = vsub.f32 %v6061, %v6190
      %v6255 = vsub.f32 %v6062, %v6191
      %v6256 = vsub.f32 %v6063, %v6192
      %v6257 = vadd.f32 %v6225, 1e-05
      %v6258 = vadd.f32 %v6226, 1e-05
      %v6259 = vadd.f32 %v6227, 1e-05
      %v6260 = vadd.f32 %v6228, 1e-05
      %v6261 = vadd.f32 %v6229, 1e-05
      %v6262 = vadd.f32 %v6230, 1e-05
      %v6263 = vadd.f32 %v6231, 1e-05
      %v6264 = vadd.f32 %v6232, 1e-05
      %v6265 = vadd.f32 %v6233, 1e-05
      %v6266 = vadd.f32 %v6234, 1e-05
      %v6267 = vadd.f32 %v6235, 1e-05
      %v6268 = vadd.f32 %v6236, 1e-05
      %v6269 = vadd.f32 %v6237, 1e-05
      %v6270 = vadd.f32 %v6238, 1e-05
      %v6271 = vadd.f32 %v6239, 1e-05
      %v6272 = vadd.f32 %v6240, 1e-05
      %v6273 = vrsqrt.pop %v6257
      %v6274 = vrsqrt.pop %v6258
      %v6275 = vrsqrt.pop %v6259
      %v6276 = vrsqrt.pop %v6260
      %v6277 = vrsqrt.pop %v6261
      %v6278 = vrsqrt.pop %v6262
      %v6279 = vrsqrt.pop %v6263
      %v6280 = vrsqrt.pop %v6264
      %v6281 = vrsqrt.pop %v6265
      %v6282 = vrsqrt.pop %v6266
      %v6283 = vrsqrt.pop %v6267
      %v6284 = vrsqrt.pop %v6268
      %v6285 = vrsqrt.pop %v6269
      %v6286 = vrsqrt.pop %v6270
      %v6287 = vrsqrt.pop %v6271
      %v6288 = vrsqrt.pop %v6272
      %v6289 = vmul.f32 %v6241, %v6273
      %v6290 = vmul.f32 %v6242, %v6274
      %v6291 = vmul.f32 %v6243, %v6275
      %v6292 = vmul.f32 %v6244, %v6276
      %v6293 = vmul.f32 %v6245, %v6277
      %v6294 = vmul.f32 %v6246, %v6278
      %v6295 = vmul.f32 %v6247, %v6279
      %v6296 = vmul.f32 %v6248, %v6280
      %v6297 = vmul.f32 %v6249, %v6281
      %v6298 = vmul.f32 %v6250, %v6282
      %v6299 = vmul.f32 %v6251, %v6283
      %v6300 = vmul.f32 %v6252, %v6284
      %v6301 = vmul.f32 %v6253, %v6285
      %v6302 = vmul.f32 %v6254, %v6286
      %v6303 = vmul.f32 %v6255, %v6287
      %v6304 = vmul.f32 %v6256, %v6288
      %v6305 = vld [vmem:[%s3] sm:$0x1]
      %v6307 = vlaneseq
      %v6308 = vshrl.u32 %v6307, 7
      %v6309 = vsub.s32 0, %v6308
      %v6310 = vrot.slane %v6305, %v6309
      %v6312 = vmul.f32 %v6289, %v6310
      %v6313 = vmul.f32 %v6290, %v6310
      %v6314 = vmul.f32 %v6291, %v6310
      %v6315 = vmul.f32 %v6292, %v6310
      %v6316 = vmul.f32 %v6293, %v6310
      %v6317 = vmul.f32 %v6294, %v6310
      %v6318 = vmul.f32 %v6295, %v6310
      %v6319 = vmul.f32 %v6296, %v6310
      %v6320 = vmul.f32 %v6297, %v6310
      %v6321 = vmul.f32 %v6298, %v6310
      %v6322 = vmul.f32 %v6299, %v6310
      %v6323 = vmul.f32 %v6300, %v6310
      %v6324 = vmul.f32 %v6301, %v6310
      %v6325 = vmul.f32 %v6302, %v6310
      %v6326 = vmul.f32 %v6303, %v6310
      %v6327 = vmul.f32 %v6304, %v6310
      %v6328 = vld [vmem:[%s4] sm:$0x1]
      %v6330 = vlaneseq
      %v6331 = vshrl.u32 %v6330, 7
      %v6332 = vsub.s32 0, %v6331
      %v6333 = vrot.slane %v6328, %v6332
      %v6335 = vadd.f32 %v6312, %v6333
      %v6336 = vadd.f32 %v6313, %v6333
      %v6337 = vadd.f32 %v6314, %v6333
      %v6338 = vadd.f32 %v6315, %v6333
      %v6339 = vadd.f32 %v6316, %v6333
      %v6340 = vadd.f32 %v6317, %v6333
      %v6341 = vadd.f32 %v6318, %v6333
      %v6342 = vadd.f32 %v6319, %v6333
      %v6343 = vadd.f32 %v6320, %v6333
      %v6344 = vadd.f32 %v6321, %v6333
      %v6345 = vadd.f32 %v6322, %v6333
      %v6346 = vadd.f32 %v6323, %v6333
      %v6347 = vadd.f32 %v6324, %v6333
      %v6348 = vadd.f32 %v6325, %v6333
      %v6349 = vadd.f32 %v6326, %v6333
      %v6350 = vadd.f32 %v6327, %v6333
      %v6351 = vpack.c.bf16 %v6336, %v6335
      %v6352 = vpack.c.bf16 %v6338, %v6337
      %v6353 = vpack.c.bf16 %v6340, %v6339
      %v6354 = vpack.c.bf16 %v6342, %v6341
      %v6355 = vpack.c.bf16 %v6344, %v6343
      %v6356 = vpack.c.bf16 %v6346, %v6345
      %v6357 = vpack.c.bf16 %v6348, %v6347
      %v6358 = vpack.c.bf16 %v6350, %v6349
      %v6359 = vld [vmem:[%s5] sm:$0x3]
      %v6360 = vld [vmem:[%s6] sm:$0x1]
      %v6362 = vlaneseq
      %v6363 = vshrl.u32 %v6362, 7
      %v6364 = vsub.s32 0, %v6363
      %v6365 = vrot.slane %v6360, %v6364
      %v6368 = vsel %vm6064, %v6351, 0
      %v6371 = vsel %vm6064, %v6352, 0
      %v6374 = vsel %vm6064, %v6353, 0
      %v6377 = vsel %vm6064, %v6354, 0
      %v6380 = vsel %vm6064, %v6355, 0
      %v6383 = vsel %vm6064, %v6356, 0
      %v6386 = vsel %vm6064, %v6357, 0
      %v6389 = vsel %vm6064, %v6358, 0
      %v6392 = vsel %vm5224, %v6359, 0
      %6394 = vmatprep.subr.bf16.mxu0 0
      %6395 = vmatpush1.bf16.msra.mxu0 %v6392
      %6396 = vmatprep.subr.bf16.mxu0 0
      %6397 = vmatpush1.bf16.msra.mxu0 0
      %6398 = vmatprep.subr.bf16.mxu0 0
      %6399 = vmatpush1.bf16.msra.mxu0 0
      %6400 = vmatprep.subr.bf16.mxu0 0
      %6401 = vmatpush1.bf16.msra.mxu0 0
      %6402 = vmatprep.subr.bf16.mxu0 0
      %6403 = vmatpush1.bf16.msra.mxu0 0
      %6404 = vmatprep.subr.bf16.mxu0 0
      %6405 = vmatpush1.bf16.msra.mxu0 0
      %6406 = vmatprep.subr.bf16.mxu0 0
      %6407 = vmatpush1.bf16.msra.mxu0 0
      %6408 = vmatprep.subr.bf16.mxu0 0
      %6409 = vmatpush1.bf16.msra.mxu0 0
      %6410 = vmatprep.subr.bf16.mxu0 0
      %6411 = vmatpush1.bf16.msra.mxu0 0
      %6412 = vmatprep.subr.bf16.mxu0 0
      %6413 = vmatpush1.bf16.msra.mxu0 0
      %6414 = vmatprep.subr.bf16.mxu0 0
      %6415 = vmatpush1.bf16.msra.mxu0 0
      %6416 = vmatprep.subr.bf16.mxu0 0
      %6417 = vmatpush1.bf16.msra.mxu0 0
      %6418 = vmatprep.subr.bf16.mxu0 0
      %6419 = vmatpush1.bf16.msra.mxu0 0
      %6420 = vmatprep.subr.bf16.mxu0 0
      %6421 = vmatpush1.bf16.msra.mxu0 0
      %6422 = vmatprep.subr.bf16.mxu0 0
      %6423 = vmatpush1.bf16.msra.mxu0 0
      %6424 = vmatprep.subr.bf16.mxu0 0
      %6425 = vmatpush1.bf16.msra.mxu0 0
      %6426 = vmatprep.mubr.bf16.mxu0 0
      %6427 = vmatmul.mubr.bf16.gmra.mrb[0].mxu0 %v6368
      %v6428 = vpop.f32.mrb[0].mxu0
      %v6429 = vadd.f32 %v6365, %v6428
      %v6430 = vpop.f32.mrb[0].mxu0
      %v6431 = vpop.f32.mrb[0].mxu0
      %v6432 = vadd.f32 %v6365, %v6431
      %v6433 = vpop.f32.mrb[0].mxu0
      %6434 = vmatprep.mubr.bf16.mxu0 0
      %6435 = vmatmul.mubr.bf16.gmra.mrb[0].mxu0 %v6371
      %v6436 = vpop.f32.mrb[0].mxu0
      %v6437 = vadd.f32 %v6365, %v6436
      %v6438 = vpop.f32.mrb[0].mxu0
      %v6439 = vpop.f32.mrb[0].mxu0
      %v6440 = vadd.f32 %v6365, %v6439
      %v6441 = vpop.f32.mrb[0].mxu0
      %6442 = vmatprep.mubr.bf16.mxu0 0
      %6443 = vmatmul.mubr.bf16.gmra.mrb[0].mxu0 %v6374
      %v6444 = vpop.f32.mrb[0].mxu0
      %v6445 = vadd.f32 %v6365, %v6444
      %v6446 = vpop.f32.mrb[0].mxu0
      %v6447 = vpop.f32.mrb[0].mxu0
      %v6448 = vadd.f32 %v6365, %v6447
      %v6449 = vpop.f32.mrb[0].mxu0
      %6450 = vmatprep.mubr.bf16.mxu0 0
      %6451 = vmatmul.mubr.bf16.gmra.mrb[0].mxu0 %v6377
      %v6452 = vpop.f32.mrb[0].mxu0
      %v6453 = vadd.f32 %v6365, %v6452
      %v6454 = vpop.f32.mrb[0].mxu0
      %v6455 = vpop.f32.mrb[0].mxu0
      %v6456 = vadd.f32 %v6365, %v6455
      %v6457 = vpop.f32.mrb[0].mxu0
      %6458 = vmatprep.mubr.bf16.mxu0 0
      %6459 = vmatmul.mubr.bf16.gmra.mrb[0].mxu0 %v6380
      %v6460 = vpop.f32.mrb[0].mxu0
      %v6461 = vadd.f32 %v6365, %v6460
      %v6462 = vpop.f32.mrb[0].mxu0
      %v6463 = vpop.f32.mrb[0].mxu0
      %v6464 = vadd.f32 %v6365, %v6463
      %v6465 = vpop.f32.mrb[0].mxu0
      %6466 = vmatprep.mubr.bf16.mxu0 0
      %6467 = vmatmul.mubr.bf16.gmra.mrb[0].mxu0 %v6383
      %v6468 = vpop.f32.mrb[0].mxu0
      %v6469 = vadd.f32 %v6365, %v6468
      %v6470 = vpop.f32.mrb[0].mxu0
      %v6471 = vpop.f32.mrb[0].mxu0
      %v6472 = vadd.f32 %v6365, %v6471
      %v6473 = vpop.f32.mrb[0].mxu0
      %6474 = vmatprep.mubr.bf16.mxu0 0
      %6475 = vmatmul.mubr.bf16.gmra.mrb[0].mxu0 %v6386
      %v6476 = vpop.f32.mrb[0].mxu0
      %v6477 = vadd.f32 %v6365, %v6476
      %v6478 = vpop.f32.mrb[0].mxu0
      %v6479 = vpop.f32.mrb[0].mxu0
      %v6480 = vadd.f32 %v6365, %v6479
      %v6481 = vpop.f32.mrb[0].mxu0
      %6482 = vmatprep.mubr.bf16.mxu0 0
      %6483 = vmatmul.mubr.bf16.gmra.mrb[0].mxu0 %v6389
      %v6484 = vpop.f32.mrb[0].mxu0
      %v6485 = vadd.f32 %v6365, %v6484
      %v6486 = vpop.f32.mrb[0].mxu0
      %v6487 = vpop.f32.mrb[0].mxu0
      %v6488 = vadd.f32 %v6365, %v6487
      %v6489 = vpop.f32.mrb[0].mxu0
      %6490 = vdwg.mxu0
      %v6491 = vmul.f32 %v6429, 0.5
      %v6492 = vmul.f32 %v6432, 0.5
      %v6493 = vmul.f32 %v6437, 0.5
      %v6494 = vmul.f32 %v6440, 0.5
      %v6495 = vmul.f32 %v6445, 0.5
      %v6496 = vmul.f32 %v6448, 0.5
      %v6497 = vmul.f32 %v6453, 0.5
      %v6498 = vmul.f32 %v6456, 0.5
      %v6499 = vmul.f32 %v6461, 0.5
      %v6500 = vmul.f32 %v6464, 0.5
      %v6501 = vmul.f32 %v6469, 0.5
      %v6502 = vmul.f32 %v6472, 0.5
      %v6503 = vmul.f32 %v6477, 0.5
      %v6504 = vmul.f32 %v6480, 0.5
      %v6505 = vmul.f32 %v6485, 0.5
      %v6506 = vmul.f32 %v6488, 0.5
      %v6507 = vmul.f32 %v6429, 0.70710677
      %v6508 = vmul.f32 %v6432, 0.70710677
      %v6509 = vmul.f32 %v6437, 0.70710677
      %v6510 = vmul.f32 %v6440, 0.70710677
      %v6511 = vmul.f32 %v6445, 0.70710677
      %v6512 = vmul.f32 %v6448, 0.70710677
      %v6513 = vmul.f32 %v6453, 0.70710677
      %v6514 = vmul.f32 %v6456, 0.70710677
      %v6515 = vmul.f32 %v6461, 0.70710677
      %v6516 = vmul.f32 %v6464, 0.70710677
      %v6517 = vmul.f32 %v6469, 0.70710677
      %v6518 = vmul.f32 %v6472, 0.70710677
      %v6519 = vmul.f32 %v6477, 0.70710677
      %v6520 = vmul.f32 %v6480, 0.70710677
      %v6521 = vmul.f32 %v6485, 0.70710677
      %v6522 = vmul.f32 %v6488, 0.70710677
      %v6523 = verf.f32.pop %v6507
      %v6524 = verf.f32.pop %v6508
      %v6525 = verf.f32.pop %v6509
      %v6526 = verf.f32.pop %v6510
      %v6527 = verf.f32.pop %v6511
      %v6528 = verf.f32.pop %v6512
      %v6529 = verf.f32.pop %v6513
      %v6530 = verf.f32.pop %v6514
      %v6531 = verf.f32.pop %v6515
      %v6532 = verf.f32.pop %v6516
      %v6533 = verf.f32.pop %v6517
      %v6534 = verf.f32.pop %v6518
      %v6535 = verf.f32.pop %v6519
      %v6536 = verf.f32.pop %v6520
      %v6537 = verf.f32.pop %v6521
      %v6538 = verf.f32.pop %v6522
      %v6539 = vadd.f32 %v6523, 1.0
      %v6540 = vadd.f32 %v6524, 1.0
      %v6541 = vadd.f32 %v6525, 1.0
      %v6542 = vadd.f32 %v6526, 1.0
      %v6543 = vadd.f32 %v6527, 1.0
      %v6544 = vadd.f32 %v6528, 1.0
      %v6545 = vadd.f32 %v6529, 1.0
      %v6546 = vadd.f32 %v6530, 1.0
      %v6547 = vadd.f32 %v6531, 1.0
      %v6548 = vadd.f32 %v6532, 1.0
      %v6549 = vadd.f32 %v6533, 1.0
      %v6550 = vadd.f32 %v6534, 1.0
      %v6551 = vadd.f32 %v6535, 1.0
      %v6552 = vadd.f32 %v6536, 1.0
      %v6553 = vadd.f32 %v6537, 1.0
      %v6554 = vadd.f32 %v6538, 1.0
      %v6555 = vmul.f32 %v6491, %v6539
      %v6556 = vmul.f32 %v6492, %v6540
      %v6557 = vmul.f32 %v6493, %v6541
      %v6558 = vmul.f32 %v6494, %v6542
      %v6559 = vmul.f32 %v6495, %v6543
      %v6560 = vmul.f32 %v6496, %v6544
      %v6561 = vmul.f32 %v6497, %v6545
      %v6562 = vmul.f32 %v6498, %v6546
      %v6563 = vmul.f32 %v6499, %v6547
      %v6564 = vmul.f32 %v6500, %v6548
      %v6565 = vmul.f32 %v6501, %v6549
      %v6566 = vmul.f32 %v6502, %v6550
      %v6567 = vmul.f32 %v6503, %v6551
      %v6568 = vmul.f32 %v6504, %v6552
      %v6569 = vmul.f32 %v6505, %v6553
      %v6570 = vmul.f32 %v6506, %v6554
      %v6571 = vpack.c.bf16 %v6556, %v6555
      %v6572 = vpack.c.bf16 %v6558, %v6557
      %v6573 = vpack.c.bf16 %v6560, %v6559
      %v6574 = vpack.c.bf16 %v6562, %v6561
      %v6575 = vpack.c.bf16 %v6564, %v6563
      %v6576 = vpack.c.bf16 %v6566, %v6565
      %v6577 = vpack.c.bf16 %v6568, %v6567
      %v6578 = vpack.c.bf16 %v6570, %v6569
      %v6579 = vld [vmem:[%s7] sm:$0xf]
      %v6580 = vld [vmem:[%s7 + $0x4] sm:$0xf]
      %v6581 = vld [vmem:[%s8] sm:$0x1]
      %v6583 = vlaneseq
      %v6584 = vshrl.u32 %v6583, 7
      %v6585 = vsub.s32 0, %v6584
      %v6586 = vrot.slane %v6581, %v6585
      %v6590 = vunpack.c.l.b16 %v6579
      %v6591 = vunpack.c.l.b16 %v6580
      %v6592 = vpack.c.b16 %v6591, %v6590
      %vm6594 = vcmask 130048
      %v6596 = vsel %vm6594, %v6571, 0
      %v6599 = vsel %vm6594, %v6572, 0
      %v6602 = vsel %vm6594, %v6573, 0
      %v6605 = vsel %vm6594, %v6574, 0
      %v6608 = vsel %vm6594, %v6575, 0
      %v6611 = vsel %vm6594, %v6576, 0
      %v6614 = vsel %vm6594, %v6577, 0
      %v6617 = vsel %vm6594, %v6578, 0
      %6619 = vmatprep.subr.bf16.mxu0 0
      %6620 = vmatpush1.bf16.msra.mxu0 %v6592
      %6621 = vmatprep.subr.bf16.mxu0 0
      %6622 = vmatpush1.bf16.msra.mxu0 0
      %6623 = vmatprep.subr.bf16.mxu0 0
      %6624 = vmatpush1.bf16.msra.mxu0 0
      %6625 = vmatprep.subr.bf16.mxu0 0
      %6626 = vmatpush1.bf16.msra.mxu0 0
      %6627 = vmatprep.subr.bf16.mxu0 0
      %6628 = vmatpush1.bf16.msra.mxu0 0
      %6629 = vmatprep.subr.bf16.mxu0 0
      %6630 = vmatpush1.bf16.msra.mxu0 0
      %6631 = vmatprep.subr.bf16.mxu0 0
      %6632 = vmatpush1.bf16.msra.mxu0 0
      %6633 = vmatprep.subr.bf16.mxu0 0
      %6634 = vmatpush1.bf16.msra.mxu0 0
      %6635 = vmatprep.subr.bf16.mxu0 0
      %6636 = vmatpush1.bf16.msra.mxu0 0
      %6637 = vmatprep.subr.bf16.mxu0 0
      %6638 = vmatpush1.bf16.msra.mxu0 0
      %6639 = vmatprep.subr.bf16.mxu0 0
      %6640 = vmatpush1.bf16.msra.mxu0 0
      %6641 = vmatprep.subr.bf16.mxu0 0
      %6642 = vmatpush1.bf16.msra.mxu0 0
      %6643 = vmatprep.subr.bf16.mxu0 0
      %6644 = vmatpush1.bf16.msra.mxu0 0
      %6645 = vmatprep.subr.bf16.mxu0 0
      %6646 = vmatpush1.bf16.msra.mxu0 0
      %6647 = vmatprep.subr.bf16.mxu0 0
      %6648 = vmatpush1.bf16.msra.mxu0 0
      %6649 = vmatprep.subr.bf16.mxu0 0
      %6650 = vmatpush1.bf16.msra.mxu0 0
      %6651 = vmatprep.mubr.bf16.mxu0 0
      %6652 = vmatmul.mubr.bf16.gmra.mrb[0].mxu0 %v6596
      %v6653 = vpop.f32.mrb[0].mxu0
      %v6654 = vadd.f32 %v6586, %v6653
      %v6655 = vpop.f32.mrb[0].mxu0
      %v6656 = vpop.f32.mrb[0].mxu0
      %v6657 = vadd.f32 %v6586, %v6656
      %v6658 = vpop.f32.mrb[0].mxu0
      %6659 = vmatprep.mubr.bf16.mxu0 0
      %6660 = vmatmul.mubr.bf16.gmra.mrb[0].mxu0 %v6599
      %v6661 = vpop.f32.mrb[0].mxu0
      %v6662 = vadd.f32 %v6586, %v6661
      %v6663 = vpop.f32.mrb[0].mxu0
      %v6664 = vpop.f32.mrb[0].mxu0
      %v6665 = vadd.f32 %v6586, %v6664
      %v6666 = vpop.f32.mrb[0].mxu0
      %6667 = vmatprep.mubr.bf16.mxu0 0
      %6668 = vmatmul.mubr.bf16.gmra.mrb[0].mxu0 %v6602
      %v6669 = vpop.f32.mrb[0].mxu0
      %v6670 = vadd.f32 %v6586, %v6669
      %v6671 = vpop.f32.mrb[0].mxu0
      %v6672 = vpop.f32.mrb[0].mxu0
      %v6673 = vadd.f32 %v6586, %v6672
      %v6674 = vpop.f32.mrb[0].mxu0
      %6675 = vmatprep.mubr.bf16.mxu0 0
      %6676 = vmatmul.mubr.bf16.gmra.mrb[0].mxu0 %v6605
      %v6677 = vpop.f32.mrb[0].mxu0
      %v6678 = vadd.f32 %v6586, %v6677
      %v6679 = vpop.f32.mrb[0].mxu0
      %v6680 = vpop.f32.mrb[0].mxu0
      %v6681 = vadd.f32 %v6586, %v6680
      %v6682 = vpop.f32.mrb[0].mxu0
      %6683 = vmatprep.mubr.bf16.mxu0 0
      %6684 = vmatmul.mubr.bf16.gmra.mrb[0].mxu0 %v6608
      %v6685 = vpop.f32.mrb[0].mxu0
      %v6686 = vadd.f32 %v6586, %v6685
      %v6687 = vpop.f32.mrb[0].mxu0
      %v6688 = vpop.f32.mrb[0].mxu0
      %v6689 = vadd.f32 %v6586, %v6688
      %v6690 = vpop.f32.mrb[0].mxu0
      %6691 = vmatprep.mubr.bf16.mxu0 0
      %6692 = vmatmul.mubr.bf16.gmra.mrb[0].mxu0 %v6611
      %v6693 = vpop.f32.mrb[0].mxu0
      %v6694 = vadd.f32 %v6586, %v6693
      %v6695 = vpop.f32.mrb[0].mxu0
      %v6696 = vpop.f32.mrb[0].mxu0
      %v6697 = vadd.f32 %v6586, %v6696
      %v6698 = vpop.f32.mrb[0].mxu0
      %6699 = vmatprep.mubr.bf16.mxu0 0
      %6700 = vmatmul.mubr.bf16.gmra.mrb[0].mxu0 %v6614
      %v6701 = vpop.f32.mrb[0].mxu0
      %v6702 = vadd.f32 %v6586, %v6701
      %v6703 = vpop.f32.mrb[0].mxu0
      %v6704 = vpop.f32.mrb[0].mxu0
      %v6705 = vadd.f32 %v6586, %v6704
      %v6706 = vpop.f32.mrb[0].mxu0
      %6707 = vmatprep.mubr.bf16.mxu0 0
      %6708 = vmatmul.mubr.bf16.gmra.mrb[0].mxu0 %v6617
      %v6709 = vpop.f32.mrb[0].mxu0
      %v6710 = vadd.f32 %v6586, %v6709
      %v6711 = vpop.f32.mrb[0].mxu0
      %v6712 = vpop.f32.mrb[0].mxu0
      %v6713 = vadd.f32 %v6586, %v6712
      %v6714 = vpop.f32.mrb[0].mxu0
      %6715 = vdwg.mxu0
      %v6716 = vld [vmem:[%s9] sm:$0x1]
      %v6718 = vlaneseq
      %v6719 = vshrl.u32 %v6718, 7
      %v6720 = vsub.s32 0, %v6719
      %v6721 = vrot.slane %v6716, %v6720
      %v6723 = vmul.f32 %v6654, %v6721
      %v6724 = vmul.f32 %v6657, %v6721
      %v6725 = vmul.f32 %v6662, %v6721
      %v6726 = vmul.f32 %v6665, %v6721
      %v6727 = vmul.f32 %v6670, %v6721
      %v6728 = vmul.f32 %v6673, %v6721
      %v6729 = vmul.f32 %v6678, %v6721
      %v6730 = vmul.f32 %v6681, %v6721
      %v6731 = vmul.f32 %v6686, %v6721
      %v6732 = vmul.f32 %v6689, %v6721
      %v6733 = vmul.f32 %v6694, %v6721
      %v6734 = vmul.f32 %v6697, %v6721
      %v6735 = vmul.f32 %v6702, %v6721
      %v6736 = vmul.f32 %v6705, %v6721
      %v6737 = vmul.f32 %v6710, %v6721
      %v6738 = vmul.f32 %v6713, %v6721
      %s6739 = smul.u32 %s386, 16
      %s6740 = scalar_lea.vmem %s373, %s6739
      %v6741 = vld [vmem:[%s6740] sm:$0xff]
      %v6742 = vld [vmem:[%s6740 + $0x8] sm:$0xff]
      %v6743 = vld [vmem:[%s6740 + $0x10] sm:$0xff]
      %v6744 = vld [vmem:[%s6740 + $0x18] sm:$0xff]
      %v6745 = vld [vmem:[%s6740 + $0x20] sm:$0xff]
      %v6746 = vld [vmem:[%s6740 + $0x28] sm:$0xff]
      %v6747 = vld [vmem:[%s6740 + $0x30] sm:$0xff]
      %v6748 = vld [vmem:[%s6740 + $0x38] sm:$0xff]
      %v6749 = vld [vmem:[%s6740 + $0x40] sm:$0xff]
      %v6750 = vld [vmem:[%s6740 + $0x48] sm:$0xff]
      %v6751 = vld [vmem:[%s6740 + $0x50] sm:$0xff]
      %v6752 = vld [vmem:[%s6740 + $0x58] sm:$0xff]
      %v6753 = vld [vmem:[%s6740 + $0x60] sm:$0xff]
      %v6754 = vld [vmem:[%s6740 + $0x68] sm:$0xff]
      %v6755 = vld [vmem:[%s6740 + $0x70] sm:$0xff]
      %v6756 = vld [vmem:[%s6740 + $0x78] sm:$0xff]
      %v6757 = vadd.f32 %v6741, %v6723
      %v6758 = vadd.f32 %v6742, %v6724
      %v6759 = vadd.f32 %v6743, %v6725
      %v6760 = vadd.f32 %v6744, %v6726
      %v6761 = vadd.f32 %v6745, %v6727
      %v6762 = vadd.f32 %v6746, %v6728
      %v6763 = vadd.f32 %v6747, %v6729
      %v6764 = vadd.f32 %v6748, %v6730
      %v6765 = vadd.f32 %v6749, %v6731
      %v6766 = vadd.f32 %v6750, %v6732
      %v6767 = vadd.f32 %v6751, %v6733
      %v6768 = vadd.f32 %v6752, %v6734
      %v6769 = vadd.f32 %v6753, %v6735
      %v6770 = vadd.f32 %v6754, %v6736
      %v6771 = vadd.f32 %v6755, %v6737
      %v6772 = vadd.f32 %v6756, %v6738
      %6773 = vst.msk [vmem:[%s383] sm:$0xff] %vm6064, %v6757
      %6774 = vst.msk [vmem:[%s383 + $0x8] sm:$0xff] %vm6064, %v6758
      %6775 = vst.msk [vmem:[%s383 + $0x10] sm:$0xff] %vm6064, %v6759
      %6776 = vst.msk [vmem:[%s383 + $0x18] sm:$0xff] %vm6064, %v6760
      %6777 = vst.msk [vmem:[%s383 + $0x20] sm:$0xff] %vm6064, %v6761
      %6778 = vst.msk [vmem:[%s383 + $0x28] sm:$0xff] %vm6064, %v6762
      %6779 = vst.msk [vmem:[%s383 + $0x30] sm:$0xff] %vm6064, %v6763
      %6780 = vst.msk [vmem:[%s383 + $0x38] sm:$0xff] %vm6064, %v6764
      %6781 = vst.msk [vmem:[%s383 + $0x40] sm:$0xff] %vm6064, %v6765
      %6782 = vst.msk [vmem:[%s383 + $0x48] sm:$0xff] %vm6064, %v6766
      %6783 = vst.msk [vmem:[%s383 + $0x50] sm:$0xff] %vm6064, %v6767
      %6784 = vst.msk [vmem:[%s383 + $0x58] sm:$0xff] %vm6064, %v6768
      %6785 = vst.msk [vmem:[%s383 + $0x60] sm:$0xff] %vm6064, %v6769
      %6786 = vst.msk [vmem:[%s383 + $0x68] sm:$0xff] %vm6064, %v6770
      %6787 = vst.msk [vmem:[%s383 + $0x70] sm:$0xff] %vm6064, %v6771
      %6788 = vst.msk [vmem:[%s383 + $0x78] sm:$0xff] %vm6064, %v6772
      %s6789 = smul.u32 8, %s26
      %p6790 = scmp.lt.s32.totalorder %s25, 1
      %s6791 = scalar_select %p6790, %s25, 1
      %p6792 = scmp.lt.s32.totalorder %s6789, 15
      %s6793 = scalar_select %p6792, %s6789, 15
      %s6794 = smul.addr %s6793, 2
      %s6795 = smul.addr %s6791, 32
      %s6796 = sadd.s32 %s6794, %s6795
      %s6797 = smul.addr %s6796, 8
      %s6798 = scalar_lea.vmem %s10, %s6797
      // Predicated region
      $region65: #{tpu_custom_call.1} parent=59 // pred_check
        %p6799 = pneg %p268
      $region66: #{tpu_custom_call.1} parent=59 // pred_check_branch
        %6801 = sbr.rel (%p6799) target = $region68
      $region67: #{tpu_custom_call.1} parent=59 // pred_region
        %s6802 = smul.u32 8, %s26
      $region68: #{tpu_custom_call.1} parent=59 // pred_fallthru
        _
    $region60: #{tpu_custom_call.1} parent=5 // pred_fallthru
      _
    %p6803 = scmp.le.s32.totalorder 2, %s16
    // Predicated region
    $region69: #{tpu_custom_call.1} parent=5 // pred_check
      %p6804 = pneg %p6803
    $region70: #{tpu_custom_call.1} parent=5 // pred_check_branch
      %6806 = sbr.rel (%p6804) target = $region72
    $region71: #{tpu_custom_call.1} parent=5 // pred_region
      %s6807 = ssub.s32 %s16, 2
      // Predicated region
      $region73: #{tpu_custom_call.1} parent=71 // pred_check
        %p6808 = pneg %p274
      $region74: #{tpu_custom_call.1} parent=71 // pred_check_branch
        %6810 = sbr.rel (%p6808) target = $region76
      $region75: #{tpu_custom_call.1} parent=71 // pred_region
        %s6811 = smul.u32 8, %s28
        %p6812 = scmp.lt.s32.totalorder %s27, 1
        %s6813 = scalar_select %p6812, %s27, 1
        %p6814 = scmp.lt.s32.totalorder %s6811, 15
        %s6815 = scalar_select %p6814, %s6811, 15
        %s6816 = smul.addr %s6815, 2
        %s6817 = smul.addr %s6813, 32
        %s6818 = sadd.s32 %s6816, %s6817
        %s6819 = smul.addr %s6818, 8
        %s6820 = scalar_lea.vmem %s10, %s6819
      $region76: #{tpu_custom_call.1} parent=71 // pred_fallthru
        _
    $region72: #{tpu_custom_call.1} parent=5 // pred_fallthru
      _
  $region6: #{tpu_custom_call.1} parent=0 // loop_footer
    %s20 = sadd.s32 1, %s16
  $region7: #{tpu_custom_call.1} parent=0 // loop_footer_branch
    %15 = sbr.rel target = $region3
  $region8: #{tpu_custom_call.1} parent=0 // loop_exit
    _

</llo_original>
